<compile_context>
chip_gen: v6e
topology: v6e:2x2x1
jax: 0.10.0
libtpu: 0.0.40
codegen_flags: <defaults>
</compile_context>

<pallas_src>
import functools

import jax
import jax.numpy as jnp
from jax.experimental import pallas as pl
from jax.experimental.pallas import tpu as pltpu

LANE = 128


def _round_up(n, m):
    return (n + m - 1) // m * m


def _postnet_fused_kernel(xl_ref, xc_ref, xr_ref,
                          w0_ref, b0_ref, wm_ref, bm_ref, wn_ref, bn_ref,
                          o_ref, *, T, TT, HALO, K, PAD, n_mid, compute_dtype):
    # xl/xc/xr : (1, HALO, Cin), (1, TT, Cin), (1, HALO, Cin)  left halo / tile / right halo
    # w0 : (K, Cin, C)       b0 : (1, C)        first layer (BN + bias folded, padded)
    # wm : (n_mid, K, C, C)  bm : (n_mid, 1, C) middle layers
    # wn : (K, C, Cout)      bn : (1, Cout)     last layer (no tanh)
    # o  : (1, TT, Cout)
    j = pl.program_id(1)
    E0 = TT + 2 * HALO

    # Global time index of every buffer row. Rows outside [0, T) must behave as zeros
    # between layers — exactly what per-layer 'same' zero padding sees in the module.
    g = jax.lax.broadcasted_iota(jnp.int32, (E0, 1), 0) + (j * TT - HALO)
    in_range = (g >= 0) & (g < T)

    def conv_bn(a, w_taps, bias, apply_tanh):
        # 'same' conv1d == sum of K shifted matmuls. Keep every matmul operand
        # sublane-aligned (full E0 rows) and realize the tap shift with an XLU roll of
        # the f32 result:  out[r] = sum_k (a @ w[k])[r - PAD + k].
        acc = jnp.zeros((E0, w_taps[0].shape[-1]), jnp.float32)
        for k in range(K):
            y = jnp.dot(a, w_taps[k], preferred_element_type=jnp.float32)
            acc = acc + pltpu.roll(y, shift=(PAD - k) % E0, axis=0)
        acc = acc + bias                       # conv bias + BatchNorm affine (folded), f32
        if apply_tanh:
            acc = jnp.tanh(acc)
        # TODO(synk): F.dropout(p=0.5, training=self.training) — eval mode => identity.
        return acc

    x = jnp.concatenate([xl_ref[0], xc_ref[0], xr_ref[0]], axis=0)   # (E0, Cin)
    a = jnp.where(in_range, x, 0)              # zero time padding / clamped halo duplicates

    a = jnp.where(in_range,
                  conv_bn(a, [w0_ref[k] for k in range(K)], b0_ref[...], True),
                  0.0).astype(compute_dtype)
    for m in range(n_mid):
        a = jnp.where(in_range,
                      conv_bn(a, [wm_ref[m, k] for k in range(K)], bm_ref[m], True),
                      0.0).astype(compute_dtype)
    out = conv_bn(a, [wn_ref[k] for k in range(K)], bn_ref[...], False)

    o_ref[0] = out[HALO:HALO + TT, :].astype(o_ref.dtype)   # HALO is 16-aligned


def init_postnet_params(key, n_mel, emb_dim, kernel_size, n_convs):
    """Synthetic parameters matching the PyTorch module (conv weight stored tap-major
    as (K, C_in, C_out); BatchNorm1d affine + running stats)."""
    dims = [(n_mel, emb_dim)] + [(emb_dim, emb_dim)] * (n_convs - 2) + [(emb_dim, n_mel)]
    layers = []
    for cin, cout in dims:
        key, k1, k2, k3, k4, k5, k6 = jax.random.split(key, 7)
        layers.append(dict(
            w=0.05 * jax.random.normal(k1, (kernel_size, cin, cout), jnp.float32),
            b=0.05 * jax.random.normal(k2, (cout,), jnp.float32),
            gamma=1.0 + 0.1 * jax.random.normal(k3, (cout,), jnp.float32),
            beta=0.1 * jax.random.normal(k4, (cout,), jnp.float32),
            mean=0.1 * jax.random.normal(k5, (cout,), jnp.float32),
            var=jnp.abs(1.0 + 0.1 * jax.random.normal(k6, (cout,), jnp.float32)),
        ))
    return layers


def pack_postnet_params(params, *, compute_dtype=jnp.bfloat16, eps=1e-5):
    """Fold conv bias + BatchNorm(eval) into the weights, zero-pad channels to the
    128-lane width, and group/stack layers for the fused kernel."""
    assert len(params) >= 3, "fused kernel expects first / middle / last layer groups"
    folded = []
    for p in params:
        s = p["gamma"] / jnp.sqrt(p["var"] + eps)            # (cout,)
        w = p["w"] * s[None, None, :]                        # (K, cin, cout)
        b = p["b"] * s + (p["beta"] - p["mean"] * s)         # (cout,)
        folded.append((w, b))

    def pad_w(w):
        _, ci, co = w.shape
        return jnp.pad(w, ((0, 0), (0, _round_up(ci, LANE) - ci),
                           (0, _round_up(co, LANE) - co))).astype(compute_dtype)

    def pad_b(b):
        co = b.shape[0]
        return jnp.pad(b, (0, _round_up(co, LANE) - co))[None, :].astype(jnp.float32)

    w_first, b_first = pad_w(folded[0][0]), pad_b(folded[0][1])
    w_mid = jnp.stack([pad_w(w) for w, _ in folded[1:-1]])
    b_mid = jnp.stack([pad_b(b) for _, b in folded[1:-1]])
    w_last, b_last = pad_w(folded[-1][0]), pad_b(folded[-1][1])
    return w_first, b_first, w_mid, b_mid, w_last, b_last


def postnet_forward(x, packed_params, *, n_mel, t_tile=128, compute_dtype=jnp.bfloat16):
    """x: (B, T, n_mel) -> (B, T, n_mel). Mirrors PostNet.forward in eval mode."""
    w_first, b_first, w_mid, b_mid, w_last, b_last = packed_params
    B, T, c_in = x.shape
    assert c_in == n_mel
    K, C_mel, _ = w_first.shape
    C_out = w_last.shape[2]
    n_mid = w_mid.shape[0]
    n_layers = n_mid + 2
    pad = (K - 1) // 2

    # Halo covering the whole stack's receptive field, rounded to 16 rows (sublane/bf16 aligned).
    halo = _round_up(n_layers * pad, 16)
    tt = _round_up(max(halo, min(t_tile, _round_up(T, halo))), halo)
    T_pad = _round_up(T, tt)
    n_t = T_pad // tt
    s = tt // halo            # tile size measured in halo-sized blocks
    n_hblk = T_pad // halo    # number of halo-sized blocks along time

    # Single pad of the input: time -> tile multiple, channels -> lane multiple.
    xp = jnp.pad(x.astype(compute_dtype),
                 ((0, 0), (0, T_pad - T), (0, C_mel - n_mel)))

    kernel = functools.partial(
        _postnet_fused_kernel, T=T, TT=tt, HALO=halo, K=K, PAD=pad,
        n_mid=n_mid, compute_dtype=compute_dtype)

    out = pl.pallas_call(
        kernel,
        out_shape=jax.ShapeDtypeStruct((B, T_pad, C_out), jnp.float32),
        grid=(B, n_t),
        in_specs=[
            # left halo / center tile / right halo of the SAME padded input array
            # (clamped indices; clamped duplicates are re-zeroed inside the kernel).
            pl.BlockSpec((1, halo, C_mel),
                         lambda b, j: (b, jnp.maximum(j * s - 1, 0), 0)),
            pl.BlockSpec((1, tt, C_mel), lambda b, j: (b, j, 0)),
            pl.BlockSpec((1, halo, C_mel),
                         lambda b, j: (b, jnp.minimum((j + 1) * s, n_hblk - 1), 0)),
            # layer parameters: constant index maps -> fetched once, stay VMEM-resident.
            pl.BlockSpec(w_first.shape, lambda b, j: (0, 0, 0)),
            pl.BlockSpec(b_first.shape, lambda b, j: (0, 0)),
            pl.BlockSpec(w_mid.shape, lambda b, j: (0, 0, 0, 0)),
            pl.BlockSpec(b_mid.shape, lambda b, j: (0, 0, 0)),
            pl.BlockSpec(w_last.shape, lambda b, j: (0, 0, 0)),
            pl.BlockSpec(b_last.shape, lambda b, j: (0, 0)),
        ],
        out_specs=pl.BlockSpec((1, tt, C_out), lambda b, j: (b, j, 0)),
        compiler_params=pltpu.CompilerParams(
            dimension_semantics=("parallel", "parallel"),
            vmem_limit_bytes=32 * 1024 * 1024),
    )(xp, xp, xp, w_first, b_first, w_mid, b_mid, w_last, b_last)

    return out[:, :T, :n_mel].astype(x.dtype)


def postnet_reference(x, params, eps=1e-5):
    """Pure-jnp f32 reference of PostNet.forward (eval mode)."""
    h = x
    n = len(params)
    for i, p in enumerate(params):
        K = p["w"].shape[0]
        pad = (K - 1) // 2
        T = h.shape[1]
        hp = jnp.pad(h, ((0, 0), (pad, pad), (0, 0)))
        acc = jnp.zeros(h.shape[:2] + (p["w"].shape[2],), jnp.float32)
        for k in range(K):
            acc = acc + jnp.einsum("btc,cd->btd", hp[:, k:k + T, :], p["w"][k],
                                   precision="highest")
        y = acc + p["b"]
        y = (y - p["mean"]) / jnp.sqrt(p["var"] + eps) * p["gamma"] + p["beta"]
        if i < n - 1:
            y = jnp.tanh(y)
        h = y
    return h


if __name__ == "__main__":
    # Small shapes consistent with the module (scaled-down channel dims).
    B, T = 2, 24
    N_MEL, EMB, KSIZE, NCONV = 16, 32, 5, 5

    key = jax.random.PRNGKey(0)
    key, xkey, pkey = jax.random.split(key, 3)
    x = jax.random.normal(xkey, (B, T, N_MEL), jnp.float32)

    params = init_postnet_params(pkey, N_MEL, EMB, KSIZE, NCONV)
    packed = pack_postnet_params(params, compute_dtype=jnp.bfloat16)

    fwd = jax.jit(postnet_forward,
                  static_argnames=("n_mel", "t_tile", "compute_dtype"))
    # t_tile=16 -> two time tiles, exercising the halo / boundary-masking path.
    out = fwd(x, packed, n_mel=N_MEL, t_tile=16, compute_dtype=jnp.bfloat16)
    out = jax.block_until_ready(out)

    assert out.shape == (B, T, N_MEL) and out.dtype == jnp.float32

    ref = postnet_reference(x, params)
    max_err = float(jnp.max(jnp.abs(out - ref)))
    assert max_err < 8e-2, f"mismatch vs reference: {max_err}"
    print("KERNEL_OK")
</pallas_src>

<mosaic_0001>
module attributes {stable_mosaic.version = 11 : i64} {
  func.func @_postnet_fused_kernel(%arg0: i32, %arg1: i32, %arg2: memref<1x16x128xbf16, #tpu.memory_space<vmem>>, %arg3: memref<1x16x128xbf16, #tpu.memory_space<vmem>>, %arg4: memref<1x16x128xbf16, #tpu.memory_space<vmem>>, %arg5: memref<5x128x128xbf16, #tpu.memory_space<vmem>>, %arg6: memref<1x128xf32, #tpu.memory_space<vmem>>, %arg7: memref<3x5x128x128xbf16, #tpu.memory_space<vmem>>, %arg8: memref<3x1x128xf32, #tpu.memory_space<vmem>>, %arg9: memref<5x128x128xbf16, #tpu.memory_space<vmem>>, %arg10: memref<1x128xf32, #tpu.memory_space<vmem>>, %arg11: memref<1x16x128xf32, #tpu.memory_space<vmem>>) attributes {dimension_semantics = [#tpu.dimension_semantics<parallel>, #tpu.dimension_semantics<parallel>], iteration_bounds = array<i64: 2, 2>, scalar_prefetch = 0 : i64, scratch_operands = 0 : i64, tpu.core_type = #tpu.core_type<tc>, window_params = [{transform_indices = @transform_0, window_bounds = array<i64: 1, 16, 128>}, {transform_indices = @transform_1, window_bounds = array<i64: 1, 16, 128>}, {transform_indices = @transform_2, window_bounds = array<i64: 1, 16, 128>}, {pipeline_mode = #tpu.pipeline_mode<synchronous>, transform_indices = @transform_3, window_bounds = array<i64: 5, 128, 128>}, {pipeline_mode = #tpu.pipeline_mode<synchronous>, transform_indices = @transform_4, window_bounds = array<i64: 1, 128>}, {pipeline_mode = #tpu.pipeline_mode<synchronous>, transform_indices = @transform_5, window_bounds = array<i64: 3, 5, 128, 128>}, {pipeline_mode = #tpu.pipeline_mode<synchronous>, transform_indices = @transform_6, window_bounds = array<i64: 3, 1, 128>}, {pipeline_mode = #tpu.pipeline_mode<synchronous>, transform_indices = @transform_7, window_bounds = array<i64: 5, 128, 128>}, {pipeline_mode = #tpu.pipeline_mode<synchronous>, transform_indices = @transform_8, window_bounds = array<i64: 1, 128>}, {transform_indices = @transform_9, window_bounds = array<i64: 1, 16, 128>}]} {
    %0 = tpu.iota {dimensions = array<i32: 0>} : vector<48x1xi32>
    %c16_i32 = arith.constant 16 : i32
    %1 = arith.muli %arg1, %c16_i32 : i32
    %c16_i32_0 = arith.constant 16 : i32
    %2 = arith.subi %1, %c16_i32_0 : i32
    %3 = vector.broadcast %2 : i32 to vector<48x1xi32>
    %4 = arith.addi %0, %3 : vector<48x1xi32>
    %c0_i32 = arith.constant 0 : i32
    %5 = vector.broadcast %c0_i32 : i32 to vector<48x1xi32>
    %6 = arith.cmpi sge, %4, %5 : vector<48x1xi32>
    %c24_i32 = arith.constant 24 : i32
    %7 = vector.broadcast %c24_i32 : i32 to vector<48x1xi32>
    %8 = arith.cmpi slt, %4, %7 : vector<48x1xi32>
    %9 = arith.andi %6, %8 : vector<48x1xi1>
    %c0 = arith.constant 0 : index
    %c0_1 = arith.constant 0 : index
    %c0_2 = arith.constant 0 : index
    %10 = vector.load %arg2[%c0, %c0_1, %c0_2] : memref<1x16x128xbf16, #tpu.memory_space<vmem>>, vector<1x16x128xbf16>
    %11 = vector.shape_cast %10 : vector<1x16x128xbf16> to vector<16x128xbf16>
    %c0_3 = arith.constant 0 : index
    %c0_4 = arith.constant 0 : index
    %c0_5 = arith.constant 0 : index
    %12 = vector.load %arg3[%c0_3, %c0_4, %c0_5] : memref<1x16x128xbf16, #tpu.memory_space<vmem>>, vector<1x16x128xbf16>
    %13 = vector.shape_cast %12 : vector<1x16x128xbf16> to vector<16x128xbf16>
    %c0_6 = arith.constant 0 : index
    %c0_7 = arith.constant 0 : index
    %c0_8 = arith.constant 0 : index
    %14 = vector.load %arg4[%c0_6, %c0_7, %c0_8] : memref<1x16x128xbf16, #tpu.memory_space<vmem>>, vector<1x16x128xbf16>
    %15 = vector.shape_cast %14 : vector<1x16x128xbf16> to vector<16x128xbf16>
    %16 = tpu.concatenate %11, %13, %15 in 0 : vector<16x128xbf16>, vector<16x128xbf16>, vector<16x128xbf16> -> vector<48x128xbf16>
    %c0_i32_9 = arith.constant 0 : i32
    %17 = arith.sitofp %c0_i32_9 : i32 to bf16
    %18 = vector.shape_cast %9 : vector<48x1xi1> to vector<48x1xi1>
    %19 = vector.broadcast %18 : vector<48x1xi1> to vector<48x128xi1>
    %20 = vector.broadcast %17 : bf16 to vector<48x128xbf16>
    %21 = arith.select %19, %16, %20 : vector<48x128xi1>, vector<48x128xbf16>
    %c0_10 = arith.constant 0 : index
    %c0_11 = arith.constant 0 : index
    %c0_12 = arith.constant 0 : index
    %22 = vector.load %arg5[%c0_10, %c0_11, %c0_12] : memref<5x128x128xbf16, #tpu.memory_space<vmem>>, vector<1x128x128xbf16>
    %23 = vector.shape_cast %22 : vector<1x128x128xbf16> to vector<128x128xbf16>
    %c1 = arith.constant 1 : index
    %c0_13 = arith.constant 0 : index
    %c0_14 = arith.constant 0 : index
    %24 = vector.load %arg5[%c1, %c0_13, %c0_14] : memref<5x128x128xbf16, #tpu.memory_space<vmem>>, vector<1x128x128xbf16>
    %25 = vector.shape_cast %24 : vector<1x128x128xbf16> to vector<128x128xbf16>
    %c2 = arith.constant 2 : index
    %c0_15 = arith.constant 0 : index
    %c0_16 = arith.constant 0 : index
    %26 = vector.load %arg5[%c2, %c0_15, %c0_16] : memref<5x128x128xbf16, #tpu.memory_space<vmem>>, vector<1x128x128xbf16>
    %27 = vector.shape_cast %26 : vector<1x128x128xbf16> to vector<128x128xbf16>
    %c3 = arith.constant 3 : index
    %c0_17 = arith.constant 0 : index
    %c0_18 = arith.constant 0 : index
    %28 = vector.load %arg5[%c3, %c0_17, %c0_18] : memref<5x128x128xbf16, #tpu.memory_space<vmem>>, vector<1x128x128xbf16>
    %29 = vector.shape_cast %28 : vector<1x128x128xbf16> to vector<128x128xbf16>
    %c4 = arith.constant 4 : index
    %c0_19 = arith.constant 0 : index
    %c0_20 = arith.constant 0 : index
    %30 = vector.load %arg5[%c4, %c0_19, %c0_20] : memref<5x128x128xbf16, #tpu.memory_space<vmem>>, vector<1x128x128xbf16>
    %31 = vector.shape_cast %30 : vector<1x128x128xbf16> to vector<128x128xbf16>
    %c0_21 = arith.constant 0 : index
    %c0_22 = arith.constant 0 : index
    %32 = vector.load %arg6[%c0_21, %c0_22] : memref<1x128xf32, #tpu.memory_space<vmem>>, vector<1x128xf32>
    %cst = arith.constant 0.000000e+00 : f32
    %33 = vector.broadcast %cst : f32 to vector<48x128xf32>
    %cst_23 = arith.constant dense<0.000000e+00> : vector<48x128xf32>
    %34 = tpu.matmul %21, %23, %cst_23 {dimension_numbers = #tpu.dot_dimension_numbers<[1], [0], [0], [1], [0, 0, 1, 1], [], []>} : vector<48x128xbf16>, vector<128x128xbf16>, vector<48x128xf32> -> vector<48x128xf32>
    %c2_i32 = arith.constant 2 : i32
    %35 = tpu.dynamic_rotate %34 by %c2_i32 dim 0 : vector<48x128xf32>, i32 -> vector<48x128xf32>
    %36 = arith.addf %33, %35 : vector<48x128xf32>
    %cst_24 = arith.constant dense<0.000000e+00> : vector<48x128xf32>
    %37 = tpu.matmul %21, %25, %cst_24 {dimension_numbers = #tpu.dot_dimension_numbers<[1], [0], [0], [1], [0, 0, 1, 1], [], []>} : vector<48x128xbf16>, vector<128x128xbf16>, vector<48x128xf32> -> vector<48x128xf32>
    %c1_i32 = arith.constant 1 : i32
    %38 = tpu.dynamic_rotate %37 by %c1_i32 dim 0 : vector<48x128xf32>, i32 -> vector<48x128xf32>
    %39 = arith.addf %36, %38 : vector<48x128xf32>
    %cst_25 = arith.constant dense<0.000000e+00> : vector<48x128xf32>
    %40 = tpu.matmul %21, %27, %cst_25 {dimension_numbers = #tpu.dot_dimension_numbers<[1], [0], [0], [1], [0, 0, 1, 1], [], []>} : vector<48x128xbf16>, vector<128x128xbf16>, vector<48x128xf32> -> vector<48x128xf32>
    %c0_i32_26 = arith.constant 0 : i32
    %41 = tpu.dynamic_rotate %40 by %c0_i32_26 dim 0 : vector<48x128xf32>, i32 -> vector<48x128xf32>
    %42 = arith.addf %39, %41 : vector<48x128xf32>
    %cst_27 = arith.constant dense<0.000000e+00> : vector<48x128xf32>
    %43 = tpu.matmul %21, %29, %cst_27 {dimension_numbers = #tpu.dot_dimension_numbers<[1], [0], [0], [1], [0, 0, 1, 1], [], []>} : vector<48x128xbf16>, vector<128x128xbf16>, vector<48x128xf32> -> vector<48x128xf32>
    %c47_i32 = arith.constant 47 : i32
    %44 = tpu.dynamic_rotate %43 by %c47_i32 dim 0 : vector<48x128xf32>, i32 -> vector<48x128xf32>
    %45 = arith.addf %42, %44 : vector<48x128xf32>
    %cst_28 = arith.constant dense<0.000000e+00> : vector<48x128xf32>
    %46 = tpu.matmul %21, %31, %cst_28 {dimension_numbers = #tpu.dot_dimension_numbers<[1], [0], [0], [1], [0, 0, 1, 1], [], []>} : vector<48x128xbf16>, vector<128x128xbf16>, vector<48x128xf32> -> vector<48x128xf32>
    %c46_i32 = arith.constant 46 : i32
    %47 = tpu.dynamic_rotate %46 by %c46_i32 dim 0 : vector<48x128xf32>, i32 -> vector<48x128xf32>
    %48 = arith.addf %45, %47 : vector<48x128xf32>
    %49 = vector.broadcast %32 : vector<1x128xf32> to vector<48x128xf32>
    %50 = arith.addf %48, %49 : vector<48x128xf32>
    %51 = math.tanh %50 : vector<48x128xf32>
    %cst_29 = arith.constant 0.000000e+00 : f32
    %52 = vector.shape_cast %9 : vector<48x1xi1> to vector<48x1xi1>
    %53 = vector.broadcast %52 : vector<48x1xi1> to vector<48x128xi1>
    %54 = vector.broadcast %cst_29 : f32 to vector<48x128xf32>
    %55 = arith.select %53, %51, %54 : vector<48x128xi1>, vector<48x128xf32>
    %56 = arith.truncf %55 : vector<48x128xf32> to vector<48x128xbf16>
    %c0_30 = arith.constant 0 : index
    %c0_31 = arith.constant 0 : index
    %c0_32 = arith.constant 0 : index
    %c0_33 = arith.constant 0 : index
    %57 = vector.load %arg7[%c0_30, %c0_31, %c0_32, %c0_33] : memref<3x5x128x128xbf16, #tpu.memory_space<vmem>>, vector<1x1x128x128xbf16>
    %58 = vector.shape_cast %57 : vector<1x1x128x128xbf16> to vector<128x128xbf16>
    %c0_34 = arith.constant 0 : index
    %c1_35 = arith.constant 1 : index
    %c0_36 = arith.constant 0 : index
    %c0_37 = arith.constant 0 : index
    %59 = vector.load %arg7[%c0_34, %c1_35, %c0_36, %c0_37] : memref<3x5x128x128xbf16, #tpu.memory_space<vmem>>, vector<1x1x128x128xbf16>
    %60 = vector.shape_cast %59 : vector<1x1x128x128xbf16> to vector<128x128xbf16>
    %c0_38 = arith.constant 0 : index
    %c2_39 = arith.constant 2 : index
    %c0_40 = arith.constant 0 : index
    %c0_41 = arith.constant 0 : index
    %61 = vector.load %arg7[%c0_38, %c2_39, %c0_40, %c0_41] : memref<3x5x128x128xbf16, #tpu.memory_space<vmem>>, vector<1x1x128x128xbf16>
    %62 = vector.shape_cast %61 : vector<1x1x128x128xbf16> to vector<128x128xbf16>
    %c0_42 = arith.constant 0 : index
    %c3_43 = arith.constant 3 : index
    %c0_44 = arith.constant 0 : index
    %c0_45 = arith.constant 0 : index
    %63 = vector.load %arg7[%c0_42, %c3_43, %c0_44, %c0_45] : memref<3x5x128x128xbf16, #tpu.memory_space<vmem>>, vector<1x1x128x128xbf16>
    %64 = vector.shape_cast %63 : vector<1x1x128x128xbf16> to vector<128x128xbf16>
    %c0_46 = arith.constant 0 : index
    %c4_47 = arith.constant 4 : index
    %c0_48 = arith.constant 0 : index
    %c0_49 = arith.constant 0 : index
    %65 = vector.load %arg7[%c0_46, %c4_47, %c0_48, %c0_49] : memref<3x5x128x128xbf16, #tpu.memory_space<vmem>>, vector<1x1x128x128xbf16>
    %66 = vector.shape_cast %65 : vector<1x1x128x128xbf16> to vector<128x128xbf16>
    %c0_50 = arith.constant 0 : index
    %c0_51 = arith.constant 0 : index
    %c0_52 = arith.constant 0 : index
    %67 = vector.load %arg8[%c0_50, %c0_51, %c0_52] : memref<3x1x128xf32, #tpu.memory_space<vmem>>, vector<1x1x128xf32>
    %68 = vector.shape_cast %67 : vector<1x1x128xf32> to vector<1x128xf32>
    %cst_53 = arith.constant 0.000000e+00 : f32
    %69 = vector.broadcast %cst_53 : f32 to vector<48x128xf32>
    %cst_54 = arith.constant dense<0.000000e+00> : vector<48x128xf32>
    %70 = tpu.matmul %56, %58, %cst_54 {dimension_numbers = #tpu.dot_dimension_numbers<[1], [0], [0], [1], [0, 0, 1, 1], [], []>} : vector<48x128xbf16>, vector<128x128xbf16>, vector<48x128xf32> -> vector<48x128xf32>
    %c2_i32_55 = arith.constant 2 : i32
    %71 = tpu.dynamic_rotate %70 by %c2_i32_55 dim 0 : vector<48x128xf32>, i32 -> vector<48x128xf32>
    %72 = arith.addf %69, %71 : vector<48x128xf32>
    %cst_56 = arith.constant dense<0.000000e+00> : vector<48x128xf32>
    %73 = tpu.matmul %56, %60, %cst_56 {dimension_numbers = #tpu.dot_dimension_numbers<[1], [0], [0], [1], [0, 0, 1, 1], [], []>} : vector<48x128xbf16>, vector<128x128xbf16>, vector<48x128xf32> -> vector<48x128xf32>
    %c1_i32_57 = arith.constant 1 : i32
    %74 = tpu.dynamic_rotate %73 by %c1_i32_57 dim 0 : vector<48x128xf32>, i32 -> vector<48x128xf32>
    %75 = arith.addf %72, %74 : vector<48x128xf32>
    %cst_58 = arith.constant dense<0.000000e+00> : vector<48x128xf32>
    %76 = tpu.matmul %56, %62, %cst_58 {dimension_numbers = #tpu.dot_dimension_numbers<[1], [0], [0], [1], [0, 0, 1, 1], [], []>} : vector<48x128xbf16>, vector<128x128xbf16>, vector<48x128xf32> -> vector<48x128xf32>
    %c0_i32_59 = arith.constant 0 : i32
    %77 = tpu.dynamic_rotate %76 by %c0_i32_59 dim 0 : vector<48x128xf32>, i32 -> vector<48x128xf32>
    %78 = arith.addf %75, %77 : vector<48x128xf32>
    %cst_60 = arith.constant dense<0.000000e+00> : vector<48x128xf32>
    %79 = tpu.matmul %56, %64, %cst_60 {dimension_numbers = #tpu.dot_dimension_numbers<[1], [0], [0], [1], [0, 0, 1, 1], [], []>} : vector<48x128xbf16>, vector<128x128xbf16>, vector<48x128xf32> -> vector<48x128xf32>
    %c47_i32_61 = arith.constant 47 : i32
    %80 = tpu.dynamic_rotate %79 by %c47_i32_61 dim 0 : vector<48x128xf32>, i32 -> vector<48x128xf32>
    %81 = arith.addf %78, %80 : vector<48x128xf32>
    %cst_62 = arith.constant dense<0.000000e+00> : vector<48x128xf32>
    %82 = tpu.matmul %56, %66, %cst_62 {dimension_numbers = #tpu.dot_dimension_numbers<[1], [0], [0], [1], [0, 0, 1, 1], [], []>} : vector<48x128xbf16>, vector<128x128xbf16>, vector<48x128xf32> -> vector<48x128xf32>
    %c46_i32_63 = arith.constant 46 : i32
    %83 = tpu.dynamic_rotate %82 by %c46_i32_63 dim 0 : vector<48x128xf32>, i32 -> vector<48x128xf32>
    %84 = arith.addf %81, %83 : vector<48x128xf32>
    %85 = vector.broadcast %68 : vector<1x128xf32> to vector<48x128xf32>
    %86 = arith.addf %84, %85 : vector<48x128xf32>
    %87 = math.tanh %86 : vector<48x128xf32>
    %cst_64 = arith.constant 0.000000e+00 : f32
    %88 = vector.shape_cast %9 : vector<48x1xi1> to vector<48x1xi1>
    %89 = vector.broadcast %88 : vector<48x1xi1> to vector<48x128xi1>
    %90 = vector.broadcast %cst_64 : f32 to vector<48x128xf32>
    %91 = arith.select %89, %87, %90 : vector<48x128xi1>, vector<48x128xf32>
    %92 = arith.truncf %91 : vector<48x128xf32> to vector<48x128xbf16>
    %c1_65 = arith.constant 1 : index
    %c0_66 = arith.constant 0 : index
    %c0_67 = arith.constant 0 : index
    %c0_68 = arith.constant 0 : index
    %93 = vector.load %arg7[%c1_65, %c0_66, %c0_67, %c0_68] : memref<3x5x128x128xbf16, #tpu.memory_space<vmem>>, vector<1x1x128x128xbf16>
    %94 = vector.shape_cast %93 : vector<1x1x128x128xbf16> to vector<128x128xbf16>
    %c1_69 = arith.constant 1 : index
    %c1_70 = arith.constant 1 : index
    %c0_71 = arith.constant 0 : index
    %c0_72 = arith.constant 0 : index
    %95 = vector.load %arg7[%c1_69, %c1_70, %c0_71, %c0_72] : memref<3x5x128x128xbf16, #tpu.memory_space<vmem>>, vector<1x1x128x128xbf16>
    %96 = vector.shape_cast %95 : vector<1x1x128x128xbf16> to vector<128x128xbf16>
    %c1_73 = arith.constant 1 : index
    %c2_74 = arith.constant 2 : index
    %c0_75 = arith.constant 0 : index
    %c0_76 = arith.constant 0 : index
    %97 = vector.load %arg7[%c1_73, %c2_74, %c0_75, %c0_76] : memref<3x5x128x128xbf16, #tpu.memory_space<vmem>>, vector<1x1x128x128xbf16>
    %98 = vector.shape_cast %97 : vector<1x1x128x128xbf16> to vector<128x128xbf16>
    %c1_77 = arith.constant 1 : index
    %c3_78 = arith.constant 3 : index
    %c0_79 = arith.constant 0 : index
    %c0_80 = arith.constant 0 : index
    %99 = vector.load %arg7[%c1_77, %c3_78, %c0_79, %c0_80] : memref<3x5x128x128xbf16, #tpu.memory_space<vmem>>, vector<1x1x128x128xbf16>
    %100 = vector.shape_cast %99 : vector<1x1x128x128xbf16> to vector<128x128xbf16>
    %c1_81 = arith.constant 1 : index
    %c4_82 = arith.constant 4 : index
    %c0_83 = arith.constant 0 : index
    %c0_84 = arith.constant 0 : index
    %101 = vector.load %arg7[%c1_81, %c4_82, %c0_83, %c0_84] : memref<3x5x128x128xbf16, #tpu.memory_space<vmem>>, vector<1x1x128x128xbf16>
    %102 = vector.shape_cast %101 : vector<1x1x128x128xbf16> to vector<128x128xbf16>
    %c1_85 = arith.constant 1 : index
    %c0_86 = arith.constant 0 : index
    %c0_87 = arith.constant 0 : index
    %103 = vector.load %arg8[%c1_85, %c0_86, %c0_87] : memref<3x1x128xf32, #tpu.memory_space<vmem>>, vector<1x1x128xf32>
    %104 = vector.shape_cast %103 : vector<1x1x128xf32> to vector<1x128xf32>
    %cst_88 = arith.constant 0.000000e+00 : f32
    %105 = vector.broadcast %cst_88 : f32 to vector<48x128xf32>
    %cst_89 = arith.constant dense<0.000000e+00> : vector<48x128xf32>
    %106 = tpu.matmul %92, %94, %cst_89 {dimension_numbers = #tpu.dot_dimension_numbers<[1], [0], [0], [1], [0, 0, 1, 1], [], []>} : vector<48x128xbf16>, vector<128x128xbf16>, vector<48x128xf32> -> vector<48x128xf32>
    %c2_i32_90 = arith.constant 2 : i32
    %107 = tpu.dynamic_rotate %106 by %c2_i32_90 dim 0 : vector<48x128xf32>, i32 -> vector<48x128xf32>
    %108 = arith.addf %105, %107 : vector<48x128xf32>
    %cst_91 = arith.constant dense<0.000000e+00> : vector<48x128xf32>
    %109 = tpu.matmul %92, %96, %cst_91 {dimension_numbers = #tpu.dot_dimension_numbers<[1], [0], [0], [1], [0, 0, 1, 1], [], []>} : vector<48x128xbf16>, vector<128x128xbf16>, vector<48x128xf32> -> vector<48x128xf32>
    %c1_i32_92 = arith.constant 1 : i32
    %110 = tpu.dynamic_rotate %109 by %c1_i32_92 dim 0 : vector<48x128xf32>, i32 -> vector<48x128xf32>
    %111 = arith.addf %108, %110 : vector<48x128xf32>
    %cst_93 = arith.constant dense<0.000000e+00> : vector<48x128xf32>
    %112 = tpu.matmul %92, %98, %cst_93 {dimension_numbers = #tpu.dot_dimension_numbers<[1], [0], [0], [1], [0, 0, 1, 1], [], []>} : vector<48x128xbf16>, vector<128x128xbf16>, vector<48x128xf32> -> vector<48x128xf32>
    %c0_i32_94 = arith.constant 0 : i32
    %113 = tpu.dynamic_rotate %112 by %c0_i32_94 dim 0 : vector<48x128xf32>, i32 -> vector<48x128xf32>
    %114 = arith.addf %111, %113 : vector<48x128xf32>
    %cst_95 = arith.constant dense<0.000000e+00> : vector<48x128xf32>
    %115 = tpu.matmul %92, %100, %cst_95 {dimension_numbers = #tpu.dot_dimension_numbers<[1], [0], [0], [1], [0, 0, 1, 1], [], []>} : vector<48x128xbf16>, vector<128x128xbf16>, vector<48x128xf32> -> vector<48x128xf32>
    %c47_i32_96 = arith.constant 47 : i32
    %116 = tpu.dynamic_rotate %115 by %c47_i32_96 dim 0 : vector<48x128xf32>, i32 -> vector<48x128xf32>
    %117 = arith.addf %114, %116 : vector<48x128xf32>
    %cst_97 = arith.constant dense<0.000000e+00> : vector<48x128xf32>
    %118 = tpu.matmul %92, %102, %cst_97 {dimension_numbers = #tpu.dot_dimension_numbers<[1], [0], [0], [1], [0, 0, 1, 1], [], []>} : vector<48x128xbf16>, vector<128x128xbf16>, vector<48x128xf32> -> vector<48x128xf32>
    %c46_i32_98 = arith.constant 46 : i32
    %119 = tpu.dynamic_rotate %118 by %c46_i32_98 dim 0 : vector<48x128xf32>, i32 -> vector<48x128xf32>
    %120 = arith.addf %117, %119 : vector<48x128xf32>
    %121 = vector.broadcast %104 : vector<1x128xf32> to vector<48x128xf32>
    %122 = arith.addf %120, %121 : vector<48x128xf32>
    %123 = math.tanh %122 : vector<48x128xf32>
    %cst_99 = arith.constant 0.000000e+00 : f32
    %124 = vector.shape_cast %9 : vector<48x1xi1> to vector<48x1xi1>
    %125 = vector.broadcast %124 : vector<48x1xi1> to vector<48x128xi1>
    %126 = vector.broadcast %cst_99 : f32 to vector<48x128xf32>
    %127 = arith.select %125, %123, %126 : vector<48x128xi1>, vector<48x128xf32>
    %128 = arith.truncf %127 : vector<48x128xf32> to vector<48x128xbf16>
    %c2_100 = arith.constant 2 : index
    %c0_101 = arith.constant 0 : index
    %c0_102 = arith.constant 0 : index
    %c0_103 = arith.constant 0 : index
    %129 = vector.load %arg7[%c2_100, %c0_101, %c0_102, %c0_103] : memref<3x5x128x128xbf16, #tpu.memory_space<vmem>>, vector<1x1x128x128xbf16>
    %130 = vector.shape_cast %129 : vector<1x1x128x128xbf16> to vector<128x128xbf16>
    %c2_104 = arith.constant 2 : index
    %c1_105 = arith.constant 1 : index
    %c0_106 = arith.constant 0 : index
    %c0_107 = arith.constant 0 : index
    %131 = vector.load %arg7[%c2_104, %c1_105, %c0_106, %c0_107] : memref<3x5x128x128xbf16, #tpu.memory_space<vmem>>, vector<1x1x128x128xbf16>
    %132 = vector.shape_cast %131 : vector<1x1x128x128xbf16> to vector<128x128xbf16>
    %c2_108 = arith.constant 2 : index
    %c2_109 = arith.constant 2 : index
    %c0_110 = arith.constant 0 : index
    %c0_111 = arith.constant 0 : index
    %133 = vector.load %arg7[%c2_108, %c2_109, %c0_110, %c0_111] : memref<3x5x128x128xbf16, #tpu.memory_space<vmem>>, vector<1x1x128x128xbf16>
    %134 = vector.shape_cast %133 : vector<1x1x128x128xbf16> to vector<128x128xbf16>
    %c2_112 = arith.constant 2 : index
    %c3_113 = arith.constant 3 : index
    %c0_114 = arith.constant 0 : index
    %c0_115 = arith.constant 0 : index
    %135 = vector.load %arg7[%c2_112, %c3_113, %c0_114, %c0_115] : memref<3x5x128x128xbf16, #tpu.memory_space<vmem>>, vector<1x1x128x128xbf16>
    %136 = vector.shape_cast %135 : vector<1x1x128x128xbf16> to vector<128x128xbf16>
    %c2_116 = arith.constant 2 : index
    %c4_117 = arith.constant 4 : index
    %c0_118 = arith.constant 0 : index
    %c0_119 = arith.constant 0 : index
    %137 = vector.load %arg7[%c2_116, %c4_117, %c0_118, %c0_119] : memref<3x5x128x128xbf16, #tpu.memory_space<vmem>>, vector<1x1x128x128xbf16>
    %138 = vector.shape_cast %137 : vector<1x1x128x128xbf16> to vector<128x128xbf16>
    %c2_120 = arith.constant 2 : index
    %c0_121 = arith.constant 0 : index
    %c0_122 = arith.constant 0 : index
    %139 = vector.load %arg8[%c2_120, %c0_121, %c0_122] : memref<3x1x128xf32, #tpu.memory_space<vmem>>, vector<1x1x128xf32>
    %140 = vector.shape_cast %139 : vector<1x1x128xf32> to vector<1x128xf32>
    %cst_123 = arith.constant 0.000000e+00 : f32
    %141 = vector.broadcast %cst_123 : f32 to vector<48x128xf32>
    %cst_124 = arith.constant dense<0.000000e+00> : vector<48x128xf32>
    %142 = tpu.matmul %128, %130, %cst_124 {dimension_numbers = #tpu.dot_dimension_numbers<[1], [0], [0], [1], [0, 0, 1, 1], [], []>} : vector<48x128xbf16>, vector<128x128xbf16>, vector<48x128xf32> -> vector<48x128xf32>
    %c2_i32_125 = arith.constant 2 : i32
    %143 = tpu.dynamic_rotate %142 by %c2_i32_125 dim 0 : vector<48x128xf32>, i32 -> vector<48x128xf32>
    %144 = arith.addf %141, %143 : vector<48x128xf32>
    %cst_126 = arith.constant dense<0.000000e+00> : vector<48x128xf32>
    %145 = tpu.matmul %128, %132, %cst_126 {dimension_numbers = #tpu.dot_dimension_numbers<[1], [0], [0], [1], [0, 0, 1, 1], [], []>} : vector<48x128xbf16>, vector<128x128xbf16>, vector<48x128xf32> -> vector<48x128xf32>
    %c1_i32_127 = arith.constant 1 : i32
    %146 = tpu.dynamic_rotate %145 by %c1_i32_127 dim 0 : vector<48x128xf32>, i32 -> vector<48x128xf32>
    %147 = arith.addf %144, %146 : vector<48x128xf32>
    %cst_128 = arith.constant dense<0.000000e+00> : vector<48x128xf32>
    %148 = tpu.matmul %128, %134, %cst_128 {dimension_numbers = #tpu.dot_dimension_numbers<[1], [0], [0], [1], [0, 0, 1, 1], [], []>} : vector<48x128xbf16>, vector<128x128xbf16>, vector<48x128xf32> -> vector<48x128xf32>
    %c0_i32_129 = arith.constant 0 : i32
    %149 = tpu.dynamic_rotate %148 by %c0_i32_129 dim 0 : vector<48x128xf32>, i32 -> vector<48x128xf32>
    %150 = arith.addf %147, %149 : vector<48x128xf32>
    %cst_130 = arith.constant dense<0.000000e+00> : vector<48x128xf32>
    %151 = tpu.matmul %128, %136, %cst_130 {dimension_numbers = #tpu.dot_dimension_numbers<[1], [0], [0], [1], [0, 0, 1, 1], [], []>} : vector<48x128xbf16>, vector<128x128xbf16>, vector<48x128xf32> -> vector<48x128xf32>
    %c47_i32_131 = arith.constant 47 : i32
    %152 = tpu.dynamic_rotate %151 by %c47_i32_131 dim 0 : vector<48x128xf32>, i32 -> vector<48x128xf32>
    %153 = arith.addf %150, %152 : vector<48x128xf32>
    %cst_132 = arith.constant dense<0.000000e+00> : vector<48x128xf32>
    %154 = tpu.matmul %128, %138, %cst_132 {dimension_numbers = #tpu.dot_dimension_numbers<[1], [0], [0], [1], [0, 0, 1, 1], [], []>} : vector<48x128xbf16>, vector<128x128xbf16>, vector<48x128xf32> -> vector<48x128xf32>
    %c46_i32_133 = arith.constant 46 : i32
    %155 = tpu.dynamic_rotate %154 by %c46_i32_133 dim 0 : vector<48x128xf32>, i32 -> vector<48x128xf32>
    %156 = arith.addf %153, %155 : vector<48x128xf32>
    %157 = vector.broadcast %140 : vector<1x128xf32> to vector<48x128xf32>
    %158 = arith.addf %156, %157 : vector<48x128xf32>
    %159 = math.tanh %158 : vector<48x128xf32>
    %cst_134 = arith.constant 0.000000e+00 : f32
    %160 = vector.shape_cast %9 : vector<48x1xi1> to vector<48x1xi1>
    %161 = vector.broadcast %160 : vector<48x1xi1> to vector<48x128xi1>
    %162 = vector.broadcast %cst_134 : f32 to vector<48x128xf32>
    %163 = arith.select %161, %159, %162 : vector<48x128xi1>, vector<48x128xf32>
    %164 = arith.truncf %163 : vector<48x128xf32> to vector<48x128xbf16>
    %c0_135 = arith.constant 0 : index
    %c0_136 = arith.constant 0 : index
    %c0_137 = arith.constant 0 : index
    %165 = vector.load %arg9[%c0_135, %c0_136, %c0_137] : memref<5x128x128xbf16, #tpu.memory_space<vmem>>, vector<1x128x128xbf16>
    %166 = vector.shape_cast %165 : vector<1x128x128xbf16> to vector<128x128xbf16>
    %c1_138 = arith.constant 1 : index
    %c0_139 = arith.constant 0 : index
    %c0_140 = arith.constant 0 : index
    %167 = vector.load %arg9[%c1_138, %c0_139, %c0_140] : memref<5x128x128xbf16, #tpu.memory_space<vmem>>, vector<1x128x128xbf16>
    %168 = vector.shape_cast %167 : vector<1x128x128xbf16> to vector<128x128xbf16>
    %c2_141 = arith.constant 2 : index
    %c0_142 = arith.constant 0 : index
    %c0_143 = arith.constant 0 : index
    %169 = vector.load %arg9[%c2_141, %c0_142, %c0_143] : memref<5x128x128xbf16, #tpu.memory_space<vmem>>, vector<1x128x128xbf16>
    %170 = vector.shape_cast %169 : vector<1x128x128xbf16> to vector<128x128xbf16>
    %c3_144 = arith.constant 3 : index
    %c0_145 = arith.constant 0 : index
    %c0_146 = arith.constant 0 : index
    %171 = vector.load %arg9[%c3_144, %c0_145, %c0_146] : memref<5x128x128xbf16, #tpu.memory_space<vmem>>, vector<1x128x128xbf16>
    %172 = vector.shape_cast %171 : vector<1x128x128xbf16> to vector<128x128xbf16>
    %c4_147 = arith.constant 4 : index
    %c0_148 = arith.constant 0 : index
    %c0_149 = arith.constant 0 : index
    %173 = vector.load %arg9[%c4_147, %c0_148, %c0_149] : memref<5x128x128xbf16, #tpu.memory_space<vmem>>, vector<1x128x128xbf16>
    %174 = vector.shape_cast %173 : vector<1x128x128xbf16> to vector<128x128xbf16>
    %c0_150 = arith.constant 0 : index
    %c0_151 = arith.constant 0 : index
    %175 = vector.load %arg10[%c0_150, %c0_151] : memref<1x128xf32, #tpu.memory_space<vmem>>, vector<1x128xf32>
    %cst_152 = arith.constant 0.000000e+00 : f32
    %176 = vector.broadcast %cst_152 : f32 to vector<48x128xf32>
    %cst_153 = arith.constant dense<0.000000e+00> : vector<48x128xf32>
    %177 = tpu.matmul %164, %166, %cst_153 {dimension_numbers = #tpu.dot_dimension_numbers<[1], [0], [0], [1], [0, 0, 1, 1], [], []>} : vector<48x128xbf16>, vector<128x128xbf16>, vector<48x128xf32> -> vector<48x128xf32>
    %c2_i32_154 = arith.constant 2 : i32
    %178 = tpu.dynamic_rotate %177 by %c2_i32_154 dim 0 : vector<48x128xf32>, i32 -> vector<48x128xf32>
    %179 = arith.addf %176, %178 : vector<48x128xf32>
    %cst_155 = arith.constant dense<0.000000e+00> : vector<48x128xf32>
    %180 = tpu.matmul %164, %168, %cst_155 {dimension_numbers = #tpu.dot_dimension_numbers<[1], [0], [0], [1], [0, 0, 1, 1], [], []>} : vector<48x128xbf16>, vector<128x128xbf16>, vector<48x128xf32> -> vector<48x128xf32>
    %c1_i32_156 = arith.constant 1 : i32
    %181 = tpu.dynamic_rotate %180 by %c1_i32_156 dim 0 : vector<48x128xf32>, i32 -> vector<48x128xf32>
    %182 = arith.addf %179, %181 : vector<48x128xf32>
    %cst_157 = arith.constant dense<0.000000e+00> : vector<48x128xf32>
    %183 = tpu.matmul %164, %170, %cst_157 {dimension_numbers = #tpu.dot_dimension_numbers<[1], [0], [0], [1], [0, 0, 1, 1], [], []>} : vector<48x128xbf16>, vector<128x128xbf16>, vector<48x128xf32> -> vector<48x128xf32>
    %c0_i32_158 = arith.constant 0 : i32
    %184 = tpu.dynamic_rotate %183 by %c0_i32_158 dim 0 : vector<48x128xf32>, i32 -> vector<48x128xf32>
    %185 = arith.addf %182, %184 : vector<48x128xf32>
    %cst_159 = arith.constant dense<0.000000e+00> : vector<48x128xf32>
    %186 = tpu.matmul %164, %172, %cst_159 {dimension_numbers = #tpu.dot_dimension_numbers<[1], [0], [0], [1], [0, 0, 1, 1], [], []>} : vector<48x128xbf16>, vector<128x128xbf16>, vector<48x128xf32> -> vector<48x128xf32>
    %c47_i32_160 = arith.constant 47 : i32
    %187 = tpu.dynamic_rotate %186 by %c47_i32_160 dim 0 : vector<48x128xf32>, i32 -> vector<48x128xf32>
    %188 = arith.addf %185, %187 : vector<48x128xf32>
    %cst_161 = arith.constant dense<0.000000e+00> : vector<48x128xf32>
    %189 = tpu.matmul %164, %174, %cst_161 {dimension_numbers = #tpu.dot_dimension_numbers<[1], [0], [0], [1], [0, 0, 1, 1], [], []>} : vector<48x128xbf16>, vector<128x128xbf16>, vector<48x128xf32> -> vector<48x128xf32>
    %c46_i32_162 = arith.constant 46 : i32
    %190 = tpu.dynamic_rotate %189 by %c46_i32_162 dim 0 : vector<48x128xf32>, i32 -> vector<48x128xf32>
    %191 = arith.addf %188, %190 : vector<48x128xf32>
    %192 = vector.broadcast %175 : vector<1x128xf32> to vector<48x128xf32>
    %193 = arith.addf %191, %192 : vector<48x128xf32>
    %194 = vector.extract_strided_slice %193 {offsets = [16, 0], sizes = [16, 128], strides = [1, 1]} : vector<48x128xf32> to vector<16x128xf32>
    %c0_163 = arith.constant 0 : index
    %c0_164 = arith.constant 0 : index
    %c0_165 = arith.constant 0 : index
    %195 = vector.load %arg11[%c0_163, %c0_164, %c0_165] : memref<1x16x128xf32, #tpu.memory_space<vmem>>, vector<1x16x128xf32>
    %196 = vector.shape_cast %195 : vector<1x16x128xf32> to vector<16x128xf32>
    %197 = vector.shape_cast %194 : vector<16x128xf32> to vector<1x16x128xf32>
    tpu.vector_store %arg11[%c0_163, %c0_164, %c0_165], %197 {strides = array<i32>} : memref<1x16x128xf32, #tpu.memory_space<vmem>>, vector<1x16x128xf32>,
    return
  }
  func.func @transform_0(%arg0: i32, %arg1: i32) -> (i32, i32, i32) {
    %c1_i32 = arith.constant 1 : i32
    %0 = arith.muli %arg1, %c1_i32 : i32
    %c1_i32_0 = arith.constant 1 : i32
    %1 = arith.subi %0, %c1_i32_0 : i32
    %c0_i32 = arith.constant 0 : i32
    %2 = arith.maxsi %1, %c0_i32 : i32
    %c0_i32_1 = arith.constant 0 : i32
    %c0_i32_2 = arith.constant 0 : i32
    return %arg0, %2, %c0_i32_1 : i32, i32, i32
  }
  func.func @transform_1(%arg0: i32, %arg1: i32) -> (i32, i32, i32) {
    %c0_i32 = arith.constant 0 : i32
    %c0_i32_0 = arith.constant 0 : i32
    return %arg0, %arg1, %c0_i32 : i32, i32, i32
  }
  func.func @transform_2(%arg0: i32, %arg1: i32) -> (i32, i32, i32) {
    %c1_i32 = arith.constant 1 : i32
    %0 = arith.addi %arg1, %c1_i32 : i32
    %c1_i32_0 = arith.constant 1 : i32
    %1 = arith.muli %0, %c1_i32_0 : i32
    %c1_i32_1 = arith.constant 1 : i32
    %2 = arith.minsi %1, %c1_i32_1 : i32
    %c0_i32 = arith.constant 0 : i32
    %c0_i32_2 = arith.constant 0 : i32
    return %arg0, %2, %c0_i32 : i32, i32, i32
  }
  func.func @transform_3(%arg0: i32, %arg1: i32) -> (i32, i32, i32) {
    %c0_i32 = arith.constant 0 : i32
    %c0_i32_0 = arith.constant 0 : i32
    %c0_i32_1 = arith.constant 0 : i32
    %c0_i32_2 = arith.constant 0 : i32
    return %c0_i32, %c0_i32_0, %c0_i32_1 : i32, i32, i32
  }
  func.func @transform_4(%arg0: i32, %arg1: i32) -> (i32, i32) {
    %c0_i32 = arith.constant 0 : i32
    %c0_i32_0 = arith.constant 0 : i32
    %c0_i32_1 = arith.constant 0 : i32
    return %c0_i32, %c0_i32_0 : i32, i32
  }
  func.func @transform_5(%arg0: i32, %arg1: i32) -> (i32, i32, i32, i32) {
    %c0_i32 = arith.constant 0 : i32
    %c0_i32_0 = arith.constant 0 : i32
    %c0_i32_1 = arith.constant 0 : i32
    %c0_i32_2 = arith.constant 0 : i32
    %c0_i32_3 = arith.constant 0 : i32
    return %c0_i32, %c0_i32_0, %c0_i32_1, %c0_i32_2 : i32, i32, i32, i32
  }
  func.func @transform_6(%arg0: i32, %arg1: i32) -> (i32, i32, i32) {
    %c0_i32 = arith.constant 0 : i32
    %c0_i32_0 = arith.constant 0 : i32
    %c0_i32_1 = arith.constant 0 : i32
    %c0_i32_2 = arith.constant 0 : i32
    return %c0_i32, %c0_i32_0, %c0_i32_1 : i32, i32, i32
  }
  func.func @transform_7(%arg0: i32, %arg1: i32) -> (i32, i32, i32) {
    %c0_i32 = arith.constant 0 : i32
    %c0_i32_0 = arith.constant 0 : i32
    %c0_i32_1 = arith.constant 0 : i32
    %c0_i32_2 = arith.constant 0 : i32
    return %c0_i32, %c0_i32_0, %c0_i32_1 : i32, i32, i32
  }
  func.func @transform_8(%arg0: i32, %arg1: i32) -> (i32, i32) {
    %c0_i32 = arith.constant 0 : i32
    %c0_i32_0 = arith.constant 0 : i32
    %c0_i32_1 = arith.constant 0 : i32
    return %c0_i32, %c0_i32_0 : i32, i32
  }
  func.func @transform_9(%arg0: i32, %arg1: i32) -> (i32, i32, i32) {
    %c0_i32 = arith.constant 0 : i32
    %c0_i32_0 = arith.constant 0 : i32
    return %arg0, %arg1, %c0_i32 : i32, i32, i32
  }
}

</mosaic_0001>

<llo_original>
// kernel: postnet_forward.1
$region0: #{postnet_forward.1}
  #allocation0 [shape = 'u32[]', space=smem, size = 0x4, offset = 0x4, fixed_abs, tag = 'smem constant byte address 0x4 - core index']
  #allocation1 [shape = 'u32[144,128]{1,0:T(1,128)}', space=vmem, size = 0x12000, scoped, tag = 'internal scratch']
  %s0 = inlined_call_operand.vmem [shape: bf16[2,32,128], index: 0, kind: input, shape index: {}, may-alias: {0,1,2}]
  %s1 = inlined_call_operand.vmem [shape: bf16[2,32,128], index: 1, kind: input, shape index: {}, may-alias: {0,1,2}]
  %s2 = inlined_call_operand.vmem [shape: bf16[2,32,128], index: 2, kind: input, shape index: {}, may-alias: {0,1,2}]
  %s3 = inlined_call_operand.hbm [shape: bf16[5,128,128], index: 3, kind: input, shape index: {}]
  %s4 = inlined_call_operand.vmem [shape: f32[1,128], index: 4, kind: input, shape index: {}]
  %s5 = inlined_call_operand.hbm [shape: bf16[3,5,128,128], index: 5, kind: input, shape index: {}]
  %s6 = inlined_call_operand.vmem [shape: f32[3,1,128], index: 6, kind: input, shape index: {}]
  %s7 = inlined_call_operand.hbm [shape: bf16[5,128,128], index: 7, kind: input, shape index: {}]
  %s8 = inlined_call_operand.vmem [shape: f32[1,128], index: 8, kind: input, shape index: {}]
  %s9 = inlined_call_operand.vmem [shape: f32[2,32,128], index: 9, kind: output, shape index: {}]
  %s10 = sld [smem:[#allocation0]]
  $region81: #{postnet_forward.1} parent=0
    _
  %s12 = ssub.s32 1, %s10
  %s13 = scalar_select 0, %s12, %s10
  $region1: #{postnet_forward.1} parent=0
    #allocation2 [shape = 'u8[163840]{0}', space=vmem, size = 0x28000, scoped, tag = 'input window, operand 3, single buffered']
    #allocation3 [shape = 's32[2]{0}', space=sflag, size = 0x8, scoped, tag = 'scoped memory for postnet_forward.1']
    #allocation4 [shape = 'u8[491520]{0}', space=vmem, size = 0x78000, scoped, tag = 'input window, operand 5, single buffered']
    #allocation5 [shape = 's32[1]{0}', space=sflag, size = 0x4, scoped, tag = 'scoped memory for postnet_forward.1']
    #allocation6 [shape = 'u8[163840]{0}', space=vmem, size = 0x28000, scoped, tag = 'input window, operand 7, single buffered']
    %14 = vsyncpa [#allocation3], 0
    %15 = vsyncpa [#allocation5], 0
    loop: start=0, step=1, limit=6
    $region2: #{postnet_forward.1} parent=1 // loop_pre_header
      _
    $region3: #{postnet_forward.1} parent=1 // loop_header
      %s17 = sphi 0, %s21
      %p18 = scmp.ge.s32.totalorder %s17, 6
      %s24 = sphi 0, %s36
      %s25 = sphi 0, %s32
      %s26 = sphi 0, %s24
      %s27 = sphi 0, %s25
      %s28 = sphi 0, %s26
      %s29 = sphi 0, %s27
      %s47 = sphi 0, %s49
      %s50 = sphi 0, %s47
      %s51 = sphi 0, %s50
      %s67 = sphi 0, %s51
      %s75 = sphi 0, %s77
      %s78 = sphi 0, %s75
      %s79 = sphi 0, %s78
      %s95 = sphi 0, %s79
      %s109 = sphi 0, %s111
      %s112 = sphi 0, %s109
      %s113 = sphi 0, %s112
      %s129 = sphi 0, %s113
      %s133 = sphi 0, %s133
      %s135 = sphi 0, %s133
      %s136 = sphi 0, %s135
      %s150 = sphi 0, %s136
      %s154 = sphi 0, %s154
      %s156 = sphi 0, %s154
      %s157 = sphi 0, %s156
      %s171 = sphi 0, %s157
      %s175 = sphi 0, %s175
      %s177 = sphi 0, %s175
      %s178 = sphi 0, %s177
      %s192 = sphi 0, %s178
      %s196 = sphi 0, %s196
      %s198 = sphi 0, %s196
      %s199 = sphi 0, %s198
      %s213 = sphi 0, %s199
      %s217 = sphi 0, %s217
      %s219 = sphi 0, %s217
      %s220 = sphi 0, %s219
      %s234 = sphi 0, %s220
      %s238 = sphi 0, %s238
      %s240 = sphi 0, %s238
      %s241 = sphi 0, %s240
      %s255 = sphi 0, %s241
      %s263 = sphi 0, %s265
      %s266 = sphi 0, %s263
      %s267 = sphi 0, %s266
      %s283 = sphi 0, %s267
    $region4: #{postnet_forward.1} parent=1 // loop_header_branch
      %20 = sbr.rel (%p18) target = $region8
    $region5: #{postnet_forward.1} parent=1 // loop_body
      %s22 = ssub.s32 %s17, 1
      %s23 = ssub.s32 %s17, 2
      %s30 = sadd.s32 1, %s25
      %p31 = scmp.ge.s32.totalorder %s30, 2
      %s32 = scalar_select %p31, 0, %s30
      %s33 = sadd.s32 1, %s24
      %s34 = scalar_select %p31, %s33, %s24
      %p35 = scmp.ge.s32.totalorder %s34, 2
      %s36 = scalar_select %p35, 0, %s34
      %s37 = ssub.s32 %s25, 1
      %p38 = scmp.gt.s32.totalorder %s37, 0
      %s39 = scalar_select %p38, %s37, 0
      %s40 = ssub.s32 %s32, 1
      %p41 = scmp.gt.s32.totalorder %s40, 0
      %s42 = scalar_select %p41, %s40, 0
      %s43 = ssub.s32 %s24, %s36
      %s44 = ssub.s32 %s39, %s42
      %s45 = sor.u32 %s43, %s44
      %p46 = scmp.eq.s32.totalorder %s45, 0
      %s48 = sadd.s32 %s47, 1
      %s49 = scalar_select %p46, %s47, %s48
      %p52 = pneg %p46
      %p53 = scmp.eq.s32.totalorder %s17, 3
      %p54 = por %p52, %p53
      %p55 = scmp.ne.s32.totalorder %s47, %s50
      %p56 = scmp.eq.s32.totalorder %s17, 0
      %p57 = por %p55, %p56
      %p58 = scmp.ne.s32.totalorder %s47, %s50
      %p59 = scmp.eq.s32.totalorder %s22, 3
      %p60 = por %p58, %p59
      %p61 = scmp.ne.s32.totalorder %s50, %s51
      %p62 = scmp.eq.s32.totalorder %s22, 0
      %p63 = por %p61, %p62
      %p64 = scmp.ne.s32.totalorder %s50, %s51
      %p65 = scmp.eq.s32.totalorder %s23, 3
      %p66 = por %p64, %p65
      %p68 = scmp.ne.s32.totalorder %s51, %s67
      %p69 = scmp.eq.s32.totalorder %s23, 0
      %p70 = por %p68, %p69
      %s71 = ssub.s32 %s24, %s36
      %s72 = ssub.s32 %s25, %s32
      %s73 = sor.u32 %s71, %s72
      %p74 = scmp.eq.s32.totalorder %s73, 0
      %s76 = sadd.s32 %s75, 1
      %s77 = scalar_select %p74, %s75, %s76
      %p80 = pneg %p74
      %p81 = scmp.eq.s32.totalorder %s17, 3
      %p82 = por %p80, %p81
      %p83 = scmp.ne.s32.totalorder %s75, %s78
      %p84 = scmp.eq.s32.totalorder %s17, 0
      %p85 = por %p83, %p84
      %p86 = scmp.ne.s32.totalorder %s75, %s78
      %p87 = scmp.eq.s32.totalorder %s22, 3
      %p88 = por %p86, %p87
      %p89 = scmp.ne.s32.totalorder %s78, %s79
      %p90 = scmp.eq.s32.totalorder %s22, 0
      %p91 = por %p89, %p90
      %p92 = scmp.ne.s32.totalorder %s78, %s79
      %p93 = scmp.eq.s32.totalorder %s23, 3
      %p94 = por %p92, %p93
      %p96 = scmp.ne.s32.totalorder %s79, %s95
      %p97 = scmp.eq.s32.totalorder %s23, 0
      %p98 = por %p96, %p97
      %s99 = sadd.s32 %s25, 1
      %p100 = scmp.lt.s32.totalorder %s99, 1
      %s101 = scalar_select %p100, %s99, 1
      %s102 = sadd.s32 %s32, 1
      %p103 = scmp.lt.s32.totalorder %s102, 1
      %s104 = scalar_select %p103, %s102, 1
      %s105 = ssub.s32 %s24, %s36
      %s106 = ssub.s32 %s101, %s104
      %s107 = sor.u32 %s105, %s106
      %p108 = scmp.eq.s32.totalorder %s107, 0
      %s110 = sadd.s32 %s109, 1
      %s111 = scalar_select %p108, %s109, %s110
      %p114 = pneg %p108
      %p115 = scmp.eq.s32.totalorder %s17, 3
      %p116 = por %p114, %p115
      %p117 = scmp.ne.s32.totalorder %s109, %s112
      %p118 = scmp.eq.s32.totalorder %s17, 0
      %p119 = por %p117, %p118
      %p120 = scmp.ne.s32.totalorder %s109, %s112
      %p121 = scmp.eq.s32.totalorder %s22, 3
      %p122 = por %p120, %p121
      %p123 = scmp.ne.s32.totalorder %s112, %s113
      %p124 = scmp.eq.s32.totalorder %s22, 0
      %p125 = por %p123, %p124
      %p126 = scmp.ne.s32.totalorder %s112, %s113
      %p127 = scmp.eq.s32.totalorder %s23, 3
      %p128 = por %p126, %p127
      %p130 = scmp.ne.s32.totalorder %s113, %s129
      %p131 = scmp.eq.s32.totalorder %s23, 0
      %p132 = por %p130, %p131
      %s134 = sadd.s32 %s133, 1
      %p137 = scmp.eq.s32.totalorder %s17, 3
      %p138 = scmp.ne.s32.totalorder %s133, %s135
      %p139 = scmp.eq.s32.totalorder %s17, 0
      %p140 = por %p138, %p139
      %p141 = scmp.ne.s32.totalorder %s133, %s135
      %p142 = scmp.eq.s32.totalorder %s22, 3
      %p143 = por %p141, %p142
      %p144 = scmp.ne.s32.totalorder %s135, %s136
      %p145 = scmp.eq.s32.totalorder %s22, 0
      %p146 = por %p144, %p145
      %p147 = scmp.ne.s32.totalorder %s135, %s136
      %p148 = scmp.eq.s32.totalorder %s23, 3
      %p149 = por %p147, %p148
      %p151 = scmp.ne.s32.totalorder %s136, %s150
      %p152 = scmp.eq.s32.totalorder %s23, 0
      %p153 = por %p151, %p152
      %s155 = sadd.s32 %s154, 1
      %p158 = scmp.eq.s32.totalorder %s17, 3
      %p159 = scmp.ne.s32.totalorder %s154, %s156
      %p160 = scmp.eq.s32.totalorder %s17, 0
      %p161 = por %p159, %p160
      %p162 = scmp.ne.s32.totalorder %s154, %s156
      %p163 = scmp.eq.s32.totalorder %s22, 3
      %p164 = por %p162, %p163
      %p165 = scmp.ne.s32.totalorder %s156, %s157
      %p166 = scmp.eq.s32.totalorder %s22, 0
      %p167 = por %p165, %p166
      %p168 = scmp.ne.s32.totalorder %s156, %s157
      %p169 = scmp.eq.s32.totalorder %s23, 3
      %p170 = por %p168, %p169
      %p172 = scmp.ne.s32.totalorder %s157, %s171
      %p173 = scmp.eq.s32.totalorder %s23, 0
      %p174 = por %p172, %p173
      %s176 = sadd.s32 %s175, 1
      %p179 = scmp.eq.s32.totalorder %s17, 3
      %p180 = scmp.ne.s32.totalorder %s175, %s177
      %p181 = scmp.eq.s32.totalorder %s17, 0
      %p182 = por %p180, %p181
      %p183 = scmp.ne.s32.totalorder %s175, %s177
      %p184 = scmp.eq.s32.totalorder %s22, 3
      %p185 = por %p183, %p184
      %p186 = scmp.ne.s32.totalorder %s177, %s178
      %p187 = scmp.eq.s32.totalorder %s22, 0
      %p188 = por %p186, %p187
      %p189 = scmp.ne.s32.totalorder %s177, %s178
      %p190 = scmp.eq.s32.totalorder %s23, 3
      %p191 = por %p189, %p190
      %p193 = scmp.ne.s32.totalorder %s178, %s192
      %p194 = scmp.eq.s32.totalorder %s23, 0
      %p195 = por %p193, %p194
      %s197 = sadd.s32 %s196, 1
      %p200 = scmp.eq.s32.totalorder %s17, 3
      %p201 = scmp.ne.s32.totalorder %s196, %s198
      %p202 = scmp.eq.s32.totalorder %s17, 0
      %p203 = por %p201, %p202
      %p204 = scmp.ne.s32.totalorder %s196, %s198
      %p205 = scmp.eq.s32.totalorder %s22, 3
      %p206 = por %p204, %p205
      %p207 = scmp.ne.s32.totalorder %s198, %s199
      %p208 = scmp.eq.s32.totalorder %s22, 0
      %p209 = por %p207, %p208
      %p210 = scmp.ne.s32.totalorder %s198, %s199
      %p211 = scmp.eq.s32.totalorder %s23, 3
      %p212 = por %p210, %p211
      %p214 = scmp.ne.s32.totalorder %s199, %s213
      %p215 = scmp.eq.s32.totalorder %s23, 0
      %p216 = por %p214, %p215
      %s218 = sadd.s32 %s217, 1
      %p221 = scmp.eq.s32.totalorder %s17, 3
      %p222 = scmp.ne.s32.totalorder %s217, %s219
      %p223 = scmp.eq.s32.totalorder %s17, 0
      %p224 = por %p222, %p223
      %p225 = scmp.ne.s32.totalorder %s217, %s219
      %p226 = scmp.eq.s32.totalorder %s22, 3
      %p227 = por %p225, %p226
      %p228 = scmp.ne.s32.totalorder %s219, %s220
      %p229 = scmp.eq.s32.totalorder %s22, 0
      %p230 = por %p228, %p229
      %p231 = scmp.ne.s32.totalorder %s219, %s220
      %p232 = scmp.eq.s32.totalorder %s23, 3
      %p233 = por %p231, %p232
      %p235 = scmp.ne.s32.totalorder %s220, %s234
      %p236 = scmp.eq.s32.totalorder %s23, 0
      %p237 = por %p235, %p236
      %s239 = sadd.s32 %s238, 1
      %p242 = scmp.eq.s32.totalorder %s17, 3
      %p243 = scmp.ne.s32.totalorder %s238, %s240
      %p244 = scmp.eq.s32.totalorder %s17, 0
      %p245 = por %p243, %p244
      %p246 = scmp.ne.s32.totalorder %s238, %s240
      %p247 = scmp.eq.s32.totalorder %s22, 3
      %p248 = por %p246, %p247
      %p249 = scmp.ne.s32.totalorder %s240, %s241
      %p250 = scmp.eq.s32.totalorder %s22, 0
      %p251 = por %p249, %p250
      %p252 = scmp.ne.s32.totalorder %s240, %s241
      %p253 = scmp.eq.s32.totalorder %s23, 3
      %p254 = por %p252, %p253
      %p256 = scmp.ne.s32.totalorder %s241, %s255
      %p257 = scmp.eq.s32.totalorder %s23, 0
      %p258 = por %p256, %p257
      %s259 = ssub.s32 %s24, %s36
      %s260 = ssub.s32 %s25, %s32
      %s261 = sor.u32 %s259, %s260
      %p262 = scmp.eq.s32.totalorder %s261, 0
      %s264 = sadd.s32 %s263, 1
      %s265 = scalar_select %p262, %s263, %s264
      %p268 = pneg %p262
      %p269 = scmp.eq.s32.totalorder %s17, 3
      %p270 = por %p268, %p269
      %p271 = scmp.ne.s32.totalorder %s263, %s266
      %p272 = scmp.eq.s32.totalorder %s17, 0
      %p273 = por %p271, %p272
      %p274 = scmp.ne.s32.totalorder %s263, %s266
      %p275 = scmp.eq.s32.totalorder %s22, 3
      %p276 = por %p274, %p275
      %p277 = scmp.ne.s32.totalorder %s266, %s267
      %p278 = scmp.eq.s32.totalorder %s22, 0
      %p279 = por %p277, %p278
      %p280 = scmp.ne.s32.totalorder %s266, %s267
      %p281 = scmp.eq.s32.totalorder %s23, 3
      %p282 = por %p280, %p281
      %p284 = scmp.ne.s32.totalorder %s267, %s283
      %p285 = scmp.eq.s32.totalorder %s23, 0
      %p286 = por %p284, %p285
      %p287 = scmp.le.s32.totalorder 1, %s17
      %p288 = scmp.lt.s32.totalorder %s17, 5
      %p289 = pnand %p287, %p288
      %p290 = pneg %p289
      // Predicated region
      $region9: #{postnet_forward.1} parent=5 // pred_check
        _
      $region10: #{postnet_forward.1} parent=5 // pred_check_branch
        %292 = sbr.rel (%p289) target = $region12
      $region11: #{postnet_forward.1} parent=5 // pred_region
        %s293 = ssub.s32 %s17, 1
        // Predicated region
        $region13: #{postnet_forward.1} parent=11 // pred_check
          %p294 = pneg %p146
        $region14: #{postnet_forward.1} parent=11 // pred_check_branch
          %296 = sbr.rel (%p294) target = $region16
        $region15: #{postnet_forward.1} parent=11 // pred_region
          %s298 = ssub.s32 5120, 5120
          %299 = vsyncadd [#allocation3], %s298
          %s300 = sshll.u32 [#allocation2], 4
          %s301 = int_to_ptr.vmem [resolvable:$true] %s300
          %306 = dma.hbm_to_vmem [thread:$0]  %s3, 5120, %s301, [#allocation3], 64, 64, 4
        $region16: #{postnet_forward.1} parent=11 // pred_fallthru
          _
        // Predicated region
        $region17: #{postnet_forward.1} parent=11 // pred_check
          %p307 = pneg %p167
        $region18: #{postnet_forward.1} parent=11 // pred_check_branch
          %309 = sbr.rel (%p307) target = $region20
        $region19: #{postnet_forward.1} parent=11 // pred_region
          _
        $region20: #{postnet_forward.1} parent=11 // pred_fallthru
          _
        // Predicated region
        $region21: #{postnet_forward.1} parent=11 // pred_check
          %p310 = pneg %p188
        $region22: #{postnet_forward.1} parent=11 // pred_check_branch
          %312 = sbr.rel (%p310) target = $region24
        $region23: #{postnet_forward.1} parent=11 // pred_region
          %s314 = ssub.s32 15360, 15360
          %315 = vsyncadd [#allocation5], %s314
          %s316 = sshll.u32 [#allocation4], 4
          %s317 = int_to_ptr.vmem [resolvable:$true] %s316
          %322 = dma.hbm_to_vmem [thread:$0]  %s5, 15360, %s317, [#allocation5], 64, 64, 4
        $region24: #{postnet_forward.1} parent=11 // pred_fallthru
          _
        // Predicated region
        $region25: #{postnet_forward.1} parent=11 // pred_check
          %p323 = pneg %p209
        $region26: #{postnet_forward.1} parent=11 // pred_check_branch
          %325 = sbr.rel (%p323) target = $region28
        $region27: #{postnet_forward.1} parent=11 // pred_region
          _
        $region28: #{postnet_forward.1} parent=11 // pred_fallthru
          _
        // Predicated region
        $region29: #{postnet_forward.1} parent=11 // pred_check
          %p326 = pneg %p230
        $region30: #{postnet_forward.1} parent=11 // pred_check_branch
          %328 = sbr.rel (%p326) target = $region32
        $region31: #{postnet_forward.1} parent=11 // pred_region
          %s330 = ssub.s32 5120, 5120
          %331 = vsyncadd [#allocation5], %s330
          %s332 = sshll.u32 [#allocation6], 4
          %s333 = int_to_ptr.vmem [resolvable:$true] %s332
          %338 = dma.hbm_to_vmem [thread:$0]  %s7, 5120, %s333, [#allocation5], 64, 64, 4
        $region32: #{postnet_forward.1} parent=11 // pred_fallthru
          _
        // Predicated region
        $region33: #{postnet_forward.1} parent=11 // pred_check
          %p339 = pneg %p251
        $region34: #{postnet_forward.1} parent=11 // pred_check_branch
          %341 = sbr.rel (%p339) target = $region36
        $region35: #{postnet_forward.1} parent=11 // pred_region
          _
        $region36: #{postnet_forward.1} parent=11 // pred_fallthru
          _
      $region12: #{postnet_forward.1} parent=5 // pred_fallthru
        _
      %p342 = scmp.lt.s32.totalorder %s17, 4
      // Predicated region
      $region37: #{postnet_forward.1} parent=5 // pred_check
        %p343 = pneg %p342
      $region38: #{postnet_forward.1} parent=5 // pred_check_branch
        %345 = sbr.rel (%p343) target = $region40
      $region39: #{postnet_forward.1} parent=5 // pred_region
        // Predicated region
        $region41: #{postnet_forward.1} parent=39 // pred_check
          %p346 = pneg %p57
        $region42: #{postnet_forward.1} parent=39 // pred_check_branch
          %348 = sbr.rel (%p346) target = $region44
        $region43: #{postnet_forward.1} parent=39 // pred_region
          %s349 = ssub.s32 %s25, 1
          %p350 = scmp.gt.s32.totalorder %s349, 0
          %s351 = scalar_select %p350, %s349, 0
          %s352 = smul.u32 2, %s351
          %p353 = scmp.lt.s32.totalorder %s24, 1
          %s354 = scalar_select %p353, %s24, 1
          %p355 = scmp.lt.s32.totalorder %s352, 3
          %s356 = scalar_select %p355, %s352, 3
          %s357 = smul.addr %s354, 4
          %s358 = sadd.s32 %s356, %s357
          %s359 = smul.addr %s358, 4
          %s360 = scalar_lea.vmem %s0, %s359
          %s361 = ssub.s32 %s25, 1
          %p362 = scmp.gt.s32.totalorder %s361, 0
          %s363 = scalar_select %p362, %s361, 0
          %s364 = smul.u32 2, %s363
        $region44: #{postnet_forward.1} parent=39 // pred_fallthru
          _
        // Predicated region
        $region45: #{postnet_forward.1} parent=39 // pred_check
          %p365 = pneg %p85
        $region46: #{postnet_forward.1} parent=39 // pred_check_branch
          %367 = sbr.rel (%p365) target = $region48
        $region47: #{postnet_forward.1} parent=39 // pred_region
          %s368 = smul.u32 2, %s25
          %p369 = scmp.lt.s32.totalorder %s24, 1
          %s370 = scalar_select %p369, %s24, 1
          %p371 = scmp.lt.s32.totalorder %s368, 3
          %s372 = scalar_select %p371, %s368, 3
          %s373 = smul.addr %s370, 4
          %s374 = sadd.s32 %s372, %s373
          %s375 = smul.addr %s374, 4
          %s376 = scalar_lea.vmem %s1, %s375
          %s377 = smul.u32 2, %s25
        $region48: #{postnet_forward.1} parent=39 // pred_fallthru
          _
        // Predicated region
        $region49: #{postnet_forward.1} parent=39 // pred_check
          %p378 = pneg %p119
        $region50: #{postnet_forward.1} parent=39 // pred_check_branch
          %380 = sbr.rel (%p378) target = $region52
        $region51: #{postnet_forward.1} parent=39 // pred_region
          %s381 = sadd.s32 %s25, 1
          %p382 = scmp.lt.s32.totalorder %s381, 1
          %s383 = scalar_select %p382, %s381, 1
          %s384 = smul.u32 2, %s383
          %p385 = scmp.lt.s32.totalorder %s24, 1
          %s386 = scalar_select %p385, %s24, 1
          %p387 = scmp.lt.s32.totalorder %s384, 3
          %s388 = scalar_select %p387, %s384, 3
          %s389 = smul.addr %s386, 4
          %s390 = sadd.s32 %s388, %s389
          %s391 = smul.addr %s390, 4
          %s392 = scalar_lea.vmem %s2, %s391
          %s393 = sadd.s32 %s25, 1
          %p394 = scmp.lt.s32.totalorder %s393, 1
          %s395 = scalar_select %p394, %s393, 1
          %s396 = smul.u32 2, %s395
        $region52: #{postnet_forward.1} parent=39 // pred_fallthru
          _
      $region40: #{postnet_forward.1} parent=5 // pred_fallthru
        _
      %p397 = scmp.le.s32.totalorder 1, %s17
      %p398 = scmp.lt.s32.totalorder %s17, 5
      %p399 = pnand %p397, %p398
      %p400 = pneg %p399
      // Predicated region
      $region53: #{postnet_forward.1} parent=5 // pred_check
        _
      $region54: #{postnet_forward.1} parent=5 // pred_check_branch
        %402 = sbr.rel (%p399) target = $region56
      $region55: #{postnet_forward.1} parent=5 // pred_region
        %s403 = ssub.s32 %s17, 1
        // Predicated region
        $region57: #{postnet_forward.1} parent=55 // pred_check
          %p404 = pneg %p146
        $region58: #{postnet_forward.1} parent=55 // pred_check_branch
          %406 = sbr.rel (%p404) target = $region60
        $region59: #{postnet_forward.1} parent=55 // pred_region
          %407 = dma.done [#allocation3], 5120
        $region60: #{postnet_forward.1} parent=55 // pred_fallthru
          _
        // Predicated region
        $region61: #{postnet_forward.1} parent=55 // pred_check
          %p408 = pneg %p188
        $region62: #{postnet_forward.1} parent=55 // pred_check_branch
          %410 = sbr.rel (%p408) target = $region64
        $region63: #{postnet_forward.1} parent=55 // pred_region
          %411 = dma.done [#allocation5], 15360
        $region64: #{postnet_forward.1} parent=55 // pred_fallthru
          _
        // Predicated region
        $region65: #{postnet_forward.1} parent=55 // pred_check
          %p412 = pneg %p230
        $region66: #{postnet_forward.1} parent=55 // pred_check_branch
          %414 = sbr.rel (%p412) target = $region68
        $region67: #{postnet_forward.1} parent=55 // pred_region
          %415 = dma.done [#allocation5], 5120
        $region68: #{postnet_forward.1} parent=55 // pred_fallthru
          _
        %s416 = ssub.s32 %s27, 1
        %p417 = scmp.gt.s32.totalorder %s416, 0
        %s418 = scalar_select %p417, %s416, 0
        %s419 = smul.u32 2, %s418
        %p420 = scmp.lt.s32.totalorder %s26, 1
        %s421 = scalar_select %p420, %s26, 1
        %p422 = scmp.lt.s32.totalorder %s419, 3
        %s423 = scalar_select %p422, %s419, 3
        %s424 = smul.addr %s421, 4
        %s425 = sadd.s32 %s423, %s424
        %s426 = smul.addr %s425, 4
        %s427 = scalar_lea.vmem %s0, %s426
        %p428 = pneg %p63
        %p429 = pneg %p60
        %s430 = smul.u32 2, %s27
        %p431 = scmp.lt.s32.totalorder %s26, 1
        %s432 = scalar_select %p431, %s26, 1
        %p433 = scmp.lt.s32.totalorder %s430, 3
        %s434 = scalar_select %p433, %s430, 3
        %s435 = smul.addr %s432, 4
        %s436 = sadd.s32 %s434, %s435
        %s437 = smul.addr %s436, 4
        %s438 = scalar_lea.vmem %s1, %s437
        %p439 = pneg %p91
        %p440 = pneg %p88
        %s441 = sadd.s32 %s27, 1
        %p442 = scmp.lt.s32.totalorder %s441, 1
        %s443 = scalar_select %p442, %s441, 1
        %s444 = smul.u32 2, %s443
        %p445 = scmp.lt.s32.totalorder %s26, 1
        %s446 = scalar_select %p445, %s26, 1
        %p447 = scmp.lt.s32.totalorder %s444, 3
        %s448 = scalar_select %p447, %s444, 3
        %s449 = smul.addr %s446, 4
        %s450 = sadd.s32 %s448, %s449
        %s451 = smul.addr %s450, 4
        %s452 = scalar_lea.vmem %s2, %s451
        %p453 = pneg %p125
        %p454 = pneg %p122
        %p455 = pneg %p146
        %p456 = pneg %p143
        %p457 = pneg %p167
        %p458 = pneg %p164
        %p459 = pneg %p188
        %p460 = pneg %p185
        %p461 = pneg %p209
        %p462 = pneg %p206
        %p463 = pneg %p230
        %p464 = pneg %p227
        %p465 = pneg %p251
        %p466 = pneg %p248
        %p467 = pneg %p279
        %p468 = pneg %p276
        %s469 = smul.u32 2, %s27
        %p470 = scmp.lt.s32.totalorder %s26, 1
        %s471 = scalar_select %p470, %s26, 1
        %p472 = scmp.lt.s32.totalorder %s469, 3
        %s473 = scalar_select %p472, %s469, 3
        %s474 = smul.addr %s471, 4
        %s475 = sadd.s32 %s473, %s474
        %s476 = smul.addr %s475, 8
        %s477 = scalar_lea.vmem %s9, %s476
        %s478 = ssub.s32 %s27, 1
        %p479 = scmp.gt.s32.totalorder %s478, 0
        %s480 = scalar_select %p479, %s478, 0
        %s481 = smul.u32 2, %s480
        %p482 = scmp.lt.s32.totalorder %s26, 1
        %s483 = scalar_select %p482, %s26, 1
        %p484 = scmp.lt.s32.totalorder %s481, 3
        %s485 = scalar_select %p484, %s481, 3
        %s486 = smul.addr %s483, 4
        %s487 = sadd.s32 %s485, %s486
        %s488 = smul.addr %s487, 4
        %s489 = scalar_lea.vmem %s0, %s488
        %s490 = ssub.s32 %s27, 1
        %p491 = scmp.gt.s32.totalorder %s490, 0
        %s492 = scalar_select %p491, %s490, 0
        %s493 = smul.u32 2, %s492
        %s494 = smul.u32 2, %s27
        %p495 = scmp.lt.s32.totalorder %s26, 1
        %s496 = scalar_select %p495, %s26, 1
        %p497 = scmp.lt.s32.totalorder %s494, 3
        %s498 = scalar_select %p497, %s494, 3
        %s499 = smul.addr %s496, 4
        %s500 = sadd.s32 %s498, %s499
        %s501 = smul.addr %s500, 4
        %s502 = scalar_lea.vmem %s1, %s501
        %s503 = smul.u32 2, %s27
        %s504 = sadd.s32 %s27, 1
        %p505 = scmp.lt.s32.totalorder %s504, 1
        %s506 = scalar_select %p505, %s504, 1
        %s507 = smul.u32 2, %s506
        %p508 = scmp.lt.s32.totalorder %s26, 1
        %s509 = scalar_select %p508, %s26, 1
        %p510 = scmp.lt.s32.totalorder %s507, 3
        %s511 = scalar_select %p510, %s507, 3
        %s512 = smul.addr %s509, 4
        %s513 = sadd.s32 %s511, %s512
        %s514 = smul.addr %s513, 4
        %s515 = scalar_lea.vmem %s2, %s514
        %s516 = sadd.s32 %s27, 1
        %p517 = scmp.lt.s32.totalorder %s516, 1
        %s518 = scalar_select %p517, %s516, 1
        %s519 = smul.u32 2, %s518
        %s520 = smul.u32 2, %s27
        %p521 = scmp.lt.s32.totalorder %s26, 1
        %s522 = scalar_select %p521, %s26, 1
        %p523 = scmp.lt.s32.totalorder %s520, 3
        %s524 = scalar_select %p523, %s520, 3
        %s525 = smul.addr %s522, 4
        %s526 = sadd.s32 %s524, %s525
        %s527 = smul.addr %s526, 8
        %s528 = scalar_lea.vmem %s9, %s527
        %s529 = smul.u32 2, %s27
        %v533 = vlaneseq
        %v534 = vshrl.u32 %v533, 7
        %v535 = vadd.s32 %v534, 8
        %v536 = vadd.s32 %v534, 16
        %v537 = vadd.s32 %v534, 24
        %v538 = vadd.s32 %v534, 32
        %v539 = vadd.s32 %v534, 40
        %s540 = smul.u32 %s27, 16
        %s541 = ssub.s32 %s540, 16
        %v542 = vstv %s541
        %v543 = vadd.s32 %v534, %v542
        %v544 = vadd.s32 %v535, %v542
        %v545 = vadd.s32 %v536, %v542
        %v546 = vadd.s32 %v537, %v542
        %v547 = vadd.s32 %v538, %v542
        %v548 = vadd.s32 %v539, %v542
        %vm549 = vcmp.ge.s32.totalorder %v543, 0
        %vm550 = vcmp.ge.s32.totalorder %v544, 0
        %vm551 = vcmp.ge.s32.totalorder %v545, 0
        %vm552 = vcmp.ge.s32.totalorder %v546, 0
        %vm553 = vcmp.ge.s32.totalorder %v547, 0
        %vm554 = vcmp.ge.s32.totalorder %v548, 0
        %vm555 = vcmp.lt.s32.totalorder %v543, 24
        %vm556 = vcmp.lt.s32.totalorder %v544, 24
        %vm557 = vcmp.lt.s32.totalorder %v545, 24
        %vm558 = vcmp.lt.s32.totalorder %v546, 24
        %vm559 = vcmp.lt.s32.totalorder %v547, 24
        %vm560 = vcmp.lt.s32.totalorder %v548, 24
        %vm561 = vmand %vm549, %vm555
        %vm562 = vmand %vm550, %vm556
        %vm563 = vmand %vm551, %vm557
        %vm564 = vmand %vm552, %vm558
        %vm565 = vmand %vm553, %vm559
        %vm566 = vmand %vm554, %vm560
        %v567 = vld [vmem:[%s489] sm:$0xf]
        %v568 = vld [vmem:[%s489 + $0x4] sm:$0xf]
        %v569 = vld [vmem:[%s502] sm:$0xf]
        %v570 = vld [vmem:[%s502 + $0x4] sm:$0xf]
        %v571 = vld [vmem:[%s515] sm:$0xf]
        %v572 = vld [vmem:[%s515 + $0x4] sm:$0xf]
        %v575 = vunpack.c.l.b16 %v567
        %v576 = vunpack.c.l.b16 %v568
        %v577 = vpack.c.b16 %v576, %v575
        %v581 = vunpack.c.l.b16 %v569
        %v582 = vunpack.c.l.b16 %v570
        %v583 = vpack.c.b16 %v582, %v581
        %v587 = vunpack.c.l.b16 %v571
        %v588 = vunpack.c.l.b16 %v572
        %v589 = vpack.c.b16 %v588, %v587
        %v591 = vsel %vm561, 1, 0
        %v592 = vsel %vm562, 1, 0
        %v593 = vsel %vm563, 1, 0
        %v594 = vsel %vm564, 1, 0
        %v595 = vsel %vm565, 1, 0
        %v596 = vsel %vm566, 1, 0
        %vm597 = vcmp.eq.s32.totalorder %v591, 1
        %vm598 = vcmp.eq.s32.totalorder %v592, 1
        %vm599 = vcmp.eq.s32.totalorder %v593, 1
        %vm600 = vcmp.eq.s32.totalorder %v594, 1
        %vm601 = vcmp.eq.s32.totalorder %v595, 1
        %vm602 = vcmp.eq.s32.totalorder %v596, 1
        %vm603 = vmpackc.low %vm597, %vm597
        %vm604 = vmpackc.low %vm598, %vm598
        %vm605 = vmpackc.low %vm599, %vm599
        %vm606 = vmpackc.low %vm600, %vm600
        %vm607 = vmpackc.low %vm601, %vm601
        %vm608 = vmpackc.low %vm602, %vm602
        %v609 = vsel %vm603, 65537, 0
        %v610 = vsel %vm604, 65537, 0
        %v611 = vsel %vm605, 65537, 0
        %v612 = vsel %vm606, 65537, 0
        %v613 = vsel %vm607, 65537, 0
        %v614 = vsel %vm608, 65537, 0
        %v615 = vunpack.c.l.b16 %v609
        %v616 = vunpack.c.l.b16 %v610
        %v617 = vunpack.c.l.b16 %v611
        %v618 = vunpack.c.l.b16 %v612
        %v619 = vunpack.c.l.b16 %v613
        %v620 = vunpack.c.l.b16 %v614
        %v621 = vpack.c.b16 %v616, %v615
        %v622 = vpack.c.b16 %v618, %v617
        %v623 = vpack.c.b16 %v620, %v619
        %vm624 = vcmp.ne.s16.totalorder %v621, 0
        %vm625 = vcmp.ne.s16.totalorder %v622, 0
        %vm626 = vcmp.ne.s16.totalorder %v623, 0
        %v627 = vsel %vm624, %v577, 0
        %v628 = vsel %vm625, %v583, 0
        %v629 = vsel %vm626, %v589, 0
        %v630 = vld [vmem:[#allocation2] sm:$0xf]
        %v631 = vld [vmem:[#allocation2 + $0x4] sm:$0xf]
        %v632 = vld [vmem:[#allocation2 + $0x8] sm:$0xf]
        %v633 = vld [vmem:[#allocation2 + $0xc] sm:$0xf]
        %v634 = vld [vmem:[#allocation2 + $0x10] sm:$0xf]
        %v635 = vld [vmem:[#allocation2 + $0x14] sm:$0xf]
        %v636 = vld [vmem:[#allocation2 + $0x18] sm:$0xf]
        %v637 = vld [vmem:[#allocation2 + $0x1c] sm:$0xf]
        %v638 = vld [vmem:[#allocation2 + $0x20] sm:$0xf]
        %v639 = vld [vmem:[#allocation2 + $0x24] sm:$0xf]
        %v640 = vld [vmem:[#allocation2 + $0x28] sm:$0xf]
        %v641 = vld [vmem:[#allocation2 + $0x2c] sm:$0xf]
        %v642 = vld [vmem:[#allocation2 + $0x30] sm:$0xf]
        %v643 = vld [vmem:[#allocation2 + $0x34] sm:$0xf]
        %v644 = vld [vmem:[#allocation2 + $0x38] sm:$0xf]
        %v645 = vld [vmem:[#allocation2 + $0x3c] sm:$0xf]
        %s646 = scalar_lea.vmem [#allocation2], 64
        %v647 = vld [vmem:[%s646] sm:$0xf]
        %v648 = vld [vmem:[%s646 + $0x4] sm:$0xf]
        %v649 = vld [vmem:[%s646 + $0x8] sm:$0xf]
        %v650 = vld [vmem:[%s646 + $0xc] sm:$0xf]
        %v651 = vld [vmem:[%s646 + $0x10] sm:$0xf]
        %v652 = vld [vmem:[%s646 + $0x14] sm:$0xf]
        %v653 = vld [vmem:[%s646 + $0x18] sm:$0xf]
        %v654 = vld [vmem:[%s646 + $0x1c] sm:$0xf]
        %v655 = vld [vmem:[%s646 + $0x20] sm:$0xf]
        %v656 = vld [vmem:[%s646 + $0x24] sm:$0xf]
        %v657 = vld [vmem:[%s646 + $0x28] sm:$0xf]
        %v658 = vld [vmem:[%s646 + $0x2c] sm:$0xf]
        %v659 = vld [vmem:[%s646 + $0x30] sm:$0xf]
        %v660 = vld [vmem:[%s646 + $0x34] sm:$0xf]
        %v661 = vld [vmem:[%s646 + $0x38] sm:$0xf]
        %v662 = vld [vmem:[%s646 + $0x3c] sm:$0xf]
        %s663 = scalar_lea.vmem [#allocation2], 128
        %v664 = vld [vmem:[%s663] sm:$0xf]
        %v665 = vld [vmem:[%s663 + $0x4] sm:$0xf]
        %v666 = vld [vmem:[%s663 + $0x8] sm:$0xf]
        %v667 = vld [vmem:[%s663 + $0xc] sm:$0xf]
        %v668 = vld [vmem:[%s663 + $0x10] sm:$0xf]
        %v669 = vld [vmem:[%s663 + $0x14] sm:$0xf]
        %v670 = vld [vmem:[%s663 + $0x18] sm:$0xf]
        %v671 = vld [vmem:[%s663 + $0x1c] sm:$0xf]
        %v672 = vld [vmem:[%s663 + $0x20] sm:$0xf]
        %v673 = vld [vmem:[%s663 + $0x24] sm:$0xf]
        %v674 = vld [vmem:[%s663 + $0x28] sm:$0xf]
        %v675 = vld [vmem:[%s663 + $0x2c] sm:$0xf]
        %v676 = vld [vmem:[%s663 + $0x30] sm:$0xf]
        %v677 = vld [vmem:[%s663 + $0x34] sm:$0xf]
        %v678 = vld [vmem:[%s663 + $0x38] sm:$0xf]
        %v679 = vld [vmem:[%s663 + $0x3c] sm:$0xf]
        %s680 = scalar_lea.vmem [#allocation2], 192
        %v681 = vld [vmem:[%s680] sm:$0xf]
        %v682 = vld [vmem:[%s680 + $0x4] sm:$0xf]
        %v683 = vld [vmem:[%s680 + $0x8] sm:$0xf]
        %v684 = vld [vmem:[%s680 + $0xc] sm:$0xf]
        %v685 = vld [vmem:[%s680 + $0x10] sm:$0xf]
        %v686 = vld [vmem:[%s680 + $0x14] sm:$0xf]
        %v687 = vld [vmem:[%s680 + $0x18] sm:$0xf]
        %v688 = vld [vmem:[%s680 + $0x1c] sm:$0xf]
        %v689 = vld [vmem:[%s680 + $0x20] sm:$0xf]
        %v690 = vld [vmem:[%s680 + $0x24] sm:$0xf]
        %v691 = vld [vmem:[%s680 + $0x28] sm:$0xf]
        %v692 = vld [vmem:[%s680 + $0x2c] sm:$0xf]
        %v693 = vld [vmem:[%s680 + $0x30] sm:$0xf]
        %v694 = vld [vmem:[%s680 + $0x34] sm:$0xf]
        %v695 = vld [vmem:[%s680 + $0x38] sm:$0xf]
        %v696 = vld [vmem:[%s680 + $0x3c] sm:$0xf]
        %s697 = scalar_lea.vmem [#allocation2], 256
        %v698 = vld [vmem:[%s697] sm:$0xf]
        %v699 = vld [vmem:[%s697 + $0x4] sm:$0xf]
        %v700 = vld [vmem:[%s697 + $0x8] sm:$0xf]
        %v701 = vld [vmem:[%s697 + $0xc] sm:$0xf]
        %v702 = vld [vmem:[%s697 + $0x10] sm:$0xf]
        %v703 = vld [vmem:[%s697 + $0x14] sm:$0xf]
        %v704 = vld [vmem:[%s697 + $0x18] sm:$0xf]
        %v705 = vld [vmem:[%s697 + $0x1c] sm:$0xf]
        %v706 = vld [vmem:[%s697 + $0x20] sm:$0xf]
        %v707 = vld [vmem:[%s697 + $0x24] sm:$0xf]
        %v708 = vld [vmem:[%s697 + $0x28] sm:$0xf]
        %v709 = vld [vmem:[%s697 + $0x2c] sm:$0xf]
        %v710 = vld [vmem:[%s697 + $0x30] sm:$0xf]
        %v711 = vld [vmem:[%s697 + $0x34] sm:$0xf]
        %v712 = vld [vmem:[%s697 + $0x38] sm:$0xf]
        %v713 = vld [vmem:[%s697 + $0x3c] sm:$0xf]
        %v714 = vld [vmem:[%s4] sm:$0x1]
        %v731 = vunpack.c.l.b16 %v630
        %v732 = vunpack.c.l.b16 %v631
        %v733 = vunpack.c.l.b16 %v632
        %v734 = vunpack.c.l.b16 %v633
        %v735 = vunpack.c.l.b16 %v634
        %v736 = vunpack.c.l.b16 %v635
        %v737 = vunpack.c.l.b16 %v636
        %v738 = vunpack.c.l.b16 %v637
        %v739 = vunpack.c.l.b16 %v638
        %v740 = vunpack.c.l.b16 %v639
        %v741 = vunpack.c.l.b16 %v640
        %v742 = vunpack.c.l.b16 %v641
        %v743 = vunpack.c.l.b16 %v642
        %v744 = vunpack.c.l.b16 %v643
        %v745 = vunpack.c.l.b16 %v644
        %v746 = vunpack.c.l.b16 %v645
        %v747 = vpack.c.b16 %v732, %v731
        %v748 = vpack.c.b16 %v734, %v733
        %v749 = vpack.c.b16 %v736, %v735
        %v750 = vpack.c.b16 %v738, %v737
        %v751 = vpack.c.b16 %v740, %v739
        %v752 = vpack.c.b16 %v742, %v741
        %v753 = vpack.c.b16 %v744, %v743
        %v754 = vpack.c.b16 %v746, %v745
        %763 = vmatprep.subr.bf16.mxu0 0
        %764 = vmatpush1.bf16.msra.mxu0 %v754
        %765 = vmatprep.subr.bf16.mxu0 0
        %766 = vmatpush1.bf16.msra.mxu0 %v753
        %767 = vmatprep.subr.bf16.mxu0 0
        %768 = vmatpush1.bf16.msra.mxu0 %v752
        %769 = vmatprep.subr.bf16.mxu0 0
        %770 = vmatpush1.bf16.msra.mxu0 %v751
        %771 = vmatprep.subr.bf16.mxu0 0
        %772 = vmatpush1.bf16.msra.mxu0 %v750
        %773 = vmatprep.subr.bf16.mxu0 0
        %774 = vmatpush1.bf16.msra.mxu0 %v749
        %775 = vmatprep.subr.bf16.mxu0 0
        %776 = vmatpush1.bf16.msra.mxu0 %v748
        %777 = vmatprep.subr.bf16.mxu0 0
        %778 = vmatpush1.bf16.msra.mxu0 %v747
        %779 = vmatprep.subr.bf16.mxu0 0
        %780 = vmatpush2.bf16.msra.mxu0 0
        %781 = vmatprep.subr.bf16.mxu0 0
        %782 = vmatpush2.bf16.msra.mxu0 0
        %783 = vmatprep.subr.bf16.mxu0 0
        %784 = vmatpush2.bf16.msra.mxu0 0
        %785 = vmatprep.subr.bf16.mxu0 0
        %786 = vmatpush2.bf16.msra.mxu0 0
        %787 = vmatprep.subr.bf16.mxu0 0
        %788 = vmatpush2.bf16.msra.mxu0 0
        %789 = vmatprep.subr.bf16.mxu0 0
        %790 = vmatpush2.bf16.msra.mxu0 0
        %791 = vmatprep.subr.bf16.mxu0 0
        %792 = vmatpush2.bf16.msra.mxu0 0
        %793 = vmatprep.subr.bf16.mxu0 0
        %794 = vmatpush2.bf16.msra.mxu0 0
        %795 = vmatprep.mubr.bf16.mxu0 0
        %796 = vmatmul.mubr.bf16.gmra.mxu0 %v627
        %v797 = vpop.f32.mrf.mxu0
        %v798 = vadd.f32 0.0, %v797
        %v799 = vpop.f32.mrf.mxu0
        %v800 = vpop.f32.mrf.mxu0
        %v801 = vadd.f32 0.0, %v800
        %v802 = vpop.f32.mrf.mxu0
        %803 = vmatprep.mubr.bf16.mxu0 0
        %804 = vmatmul.mubr.bf16.gmra.mxu0 %v628
        %v805 = vpop.f32.mrf.mxu0
        %v806 = vadd.f32 0.0, %v805
        %v807 = vpop.f32.mrf.mxu0
        %v808 = vpop.f32.mrf.mxu0
        %v809 = vadd.f32 0.0, %v808
        %v810 = vpop.f32.mrf.mxu0
        %811 = vmatprep.mubr.bf16.mxu0 0
        %812 = vmatmul.mubr.bf16.gmra.mxu0 %v629
        %v813 = vpop.f32.mrf.mxu0
        %v814 = vadd.f32 0.0, %v813
        %v815 = vpop.f32.mrf.mxu0
        %v816 = vpop.f32.mrf.mxu0
        %v817 = vadd.f32 0.0, %v816
        %v818 = vpop.f32.mrf.mxu0
        %819 = vdwg.mxu0
        %v820 = vrot.slane %v798, 6
        %v821 = vrot.slane %v801, 6
        %v822 = vrot.slane %v806, 6
        %v823 = vrot.slane %v809, 6
        %v824 = vrot.slane %v814, 6
        %v825 = vrot.slane %v817, 6
        %vm826 = vcmp.lt.s32.totalorder %v534, 2
        %v827 = vsel %vm826, %v824, %v825
        %v828 = vsel %vm826, %v823, %v824
        %v829 = vsel %vm826, %v822, %v823
        %v830 = vsel %vm826, %v821, %v822
        %v831 = vsel %vm826, %v820, %v821
        %v832 = vsel %vm826, %v825, %v820
        %v833 = vadd.f32 %v832, 0.0
        %v834 = vadd.f32 %v831, 0.0
        %v835 = vadd.f32 %v830, 0.0
        %v836 = vadd.f32 %v829, 0.0
        %v837 = vadd.f32 %v828, 0.0
        %v838 = vadd.f32 %v827, 0.0
        %v855 = vunpack.c.l.b16 %v647
        %v856 = vunpack.c.l.b16 %v648
        %v857 = vunpack.c.l.b16 %v649
        %v858 = vunpack.c.l.b16 %v650
        %v859 = vunpack.c.l.b16 %v651
        %v860 = vunpack.c.l.b16 %v652
        %v861 = vunpack.c.l.b16 %v653
        %v862 = vunpack.c.l.b16 %v654
        %v863 = vunpack.c.l.b16 %v655
        %v864 = vunpack.c.l.b16 %v656
        %v865 = vunpack.c.l.b16 %v657
        %v866 = vunpack.c.l.b16 %v658
        %v867 = vunpack.c.l.b16 %v659
        %v868 = vunpack.c.l.b16 %v660
        %v869 = vunpack.c.l.b16 %v661
        %v870 = vunpack.c.l.b16 %v662
        %v871 = vpack.c.b16 %v856, %v855
        %v872 = vpack.c.b16 %v858, %v857
        %v873 = vpack.c.b16 %v860, %v859
        %v874 = vpack.c.b16 %v862, %v861
        %v875 = vpack.c.b16 %v864, %v863
        %v876 = vpack.c.b16 %v866, %v865
        %v877 = vpack.c.b16 %v868, %v867
        %v878 = vpack.c.b16 %v870, %v869
        %887 = vmatprep.subr.bf16.mxu0 0
        %888 = vmatpush1.bf16.msra.mxu0 %v878
        %889 = vmatprep.subr.bf16.mxu0 0
        %890 = vmatpush1.bf16.msra.mxu0 %v877
        %891 = vmatprep.subr.bf16.mxu0 0
        %892 = vmatpush1.bf16.msra.mxu0 %v876
        %893 = vmatprep.subr.bf16.mxu0 0
        %894 = vmatpush1.bf16.msra.mxu0 %v875
        %895 = vmatprep.subr.bf16.mxu0 0
        %896 = vmatpush1.bf16.msra.mxu0 %v874
        %897 = vmatprep.subr.bf16.mxu0 0
        %898 = vmatpush1.bf16.msra.mxu0 %v873
        %899 = vmatprep.subr.bf16.mxu0 0
        %900 = vmatpush1.bf16.msra.mxu0 %v872
        %901 = vmatprep.subr.bf16.mxu0 0
        %902 = vmatpush1.bf16.msra.mxu0 %v871
        %903 = vmatprep.subr.bf16.mxu0 0
        %904 = vmatpush2.bf16.msra.mxu0 0
        %905 = vmatprep.subr.bf16.mxu0 0
        %906 = vmatpush2.bf16.msra.mxu0 0
        %907 = vmatprep.subr.bf16.mxu0 0
        %908 = vmatpush2.bf16.msra.mxu0 0
        %909 = vmatprep.subr.bf16.mxu0 0
        %910 = vmatpush2.bf16.msra.mxu0 0
        %911 = vmatprep.subr.bf16.mxu0 0
        %912 = vmatpush2.bf16.msra.mxu0 0
        %913 = vmatprep.subr.bf16.mxu0 0
        %914 = vmatpush2.bf16.msra.mxu0 0
        %915 = vmatprep.subr.bf16.mxu0 0
        %916 = vmatpush2.bf16.msra.mxu0 0
        %917 = vmatprep.subr.bf16.mxu0 0
        %918 = vmatpush2.bf16.msra.mxu0 0
        %919 = vmatprep.mubr.bf16.mxu0 0
        %920 = vmatmul.mubr.bf16.gmra.mxu0 %v627
        %v921 = vpop.f32.mrf.mxu0
        %v922 = vadd.f32 0.0, %v921
        %v923 = vpop.f32.mrf.mxu0
        %v924 = vpop.f32.mrf.mxu0
        %v925 = vadd.f32 0.0, %v924
        %v926 = vpop.f32.mrf.mxu0
        %927 = vmatprep.mubr.bf16.mxu0 0
        %928 = vmatmul.mubr.bf16.gmra.mxu0 %v628
        %v929 = vpop.f32.mrf.mxu0
        %v930 = vadd.f32 0.0, %v929
        %v931 = vpop.f32.mrf.mxu0
        %v932 = vpop.f32.mrf.mxu0
        %v933 = vadd.f32 0.0, %v932
        %v934 = vpop.f32.mrf.mxu0
        %935 = vmatprep.mubr.bf16.mxu0 0
        %936 = vmatmul.mubr.bf16.gmra.mxu0 %v629
        %v937 = vpop.f32.mrf.mxu0
        %v938 = vadd.f32 0.0, %v937
        %v939 = vpop.f32.mrf.mxu0
        %v940 = vpop.f32.mrf.mxu0
        %v941 = vadd.f32 0.0, %v940
        %v942 = vpop.f32.mrf.mxu0
        %943 = vdwg.mxu0
        %v944 = vrot.slane %v922, 7
        %v945 = vrot.slane %v925, 7
        %v946 = vrot.slane %v930, 7
        %v947 = vrot.slane %v933, 7
        %v948 = vrot.slane %v938, 7
        %v949 = vrot.slane %v941, 7
        %vm950 = vcmp.lt.s32.totalorder %v534, 1
        %v951 = vsel %vm950, %v948, %v949
        %v952 = vsel %vm950, %v947, %v948
        %v953 = vsel %vm950, %v946, %v947
        %v954 = vsel %vm950, %v945, %v946
        %v955 = vsel %vm950, %v944, %v945
        %v956 = vsel %vm950, %v949, %v944
        %v957 = vadd.f32 %v833, %v956
        %v958 = vadd.f32 %v834, %v955
        %v959 = vadd.f32 %v835, %v954
        %v960 = vadd.f32 %v836, %v953
        %v961 = vadd.f32 %v837, %v952
        %v962 = vadd.f32 %v838, %v951
        %v979 = vunpack.c.l.b16 %v664
        %v980 = vunpack.c.l.b16 %v665
        %v981 = vunpack.c.l.b16 %v666
        %v982 = vunpack.c.l.b16 %v667
        %v983 = vunpack.c.l.b16 %v668
        %v984 = vunpack.c.l.b16 %v669
        %v985 = vunpack.c.l.b16 %v670
        %v986 = vunpack.c.l.b16 %v671
        %v987 = vunpack.c.l.b16 %v672
        %v988 = vunpack.c.l.b16 %v673
        %v989 = vunpack.c.l.b16 %v674
        %v990 = vunpack.c.l.b16 %v675
        %v991 = vunpack.c.l.b16 %v676
        %v992 = vunpack.c.l.b16 %v677
        %v993 = vunpack.c.l.b16 %v678
        %v994 = vunpack.c.l.b16 %v679
        %v995 = vpack.c.b16 %v980, %v979
        %v996 = vpack.c.b16 %v982, %v981
        %v997 = vpack.c.b16 %v984, %v983
        %v998 = vpack.c.b16 %v986, %v985
        %v999 = vpack.c.b16 %v988, %v987
        %v1000 = vpack.c.b16 %v990, %v989
        %v1001 = vpack.c.b16 %v992, %v991
        %v1002 = vpack.c.b16 %v994, %v993
        %1011 = vmatprep.subr.bf16.mxu0 0
        %1012 = vmatpush1.bf16.msra.mxu0 %v1002
        %1013 = vmatprep.subr.bf16.mxu0 0
        %1014 = vmatpush1.bf16.msra.mxu0 %v1001
        %1015 = vmatprep.subr.bf16.mxu0 0
        %1016 = vmatpush1.bf16.msra.mxu0 %v1000
        %1017 = vmatprep.subr.bf16.mxu0 0
        %1018 = vmatpush1.bf16.msra.mxu0 %v999
        %1019 = vmatprep.subr.bf16.mxu0 0
        %1020 = vmatpush1.bf16.msra.mxu0 %v998
        %1021 = vmatprep.subr.bf16.mxu0 0
        %1022 = vmatpush1.bf16.msra.mxu0 %v997
        %1023 = vmatprep.subr.bf16.mxu0 0
        %1024 = vmatpush1.bf16.msra.mxu0 %v996
        %1025 = vmatprep.subr.bf16.mxu0 0
        %1026 = vmatpush1.bf16.msra.mxu0 %v995
        %1027 = vmatprep.subr.bf16.mxu0 0
        %1028 = vmatpush2.bf16.msra.mxu0 0
        %1029 = vmatprep.subr.bf16.mxu0 0
        %1030 = vmatpush2.bf16.msra.mxu0 0
        %1031 = vmatprep.subr.bf16.mxu0 0
        %1032 = vmatpush2.bf16.msra.mxu0 0
        %1033 = vmatprep.subr.bf16.mxu0 0
        %1034 = vmatpush2.bf16.msra.mxu0 0
        %1035 = vmatprep.subr.bf16.mxu0 0
        %1036 = vmatpush2.bf16.msra.mxu0 0
        %1037 = vmatprep.subr.bf16.mxu0 0
        %1038 = vmatpush2.bf16.msra.mxu0 0
        %1039 = vmatprep.subr.bf16.mxu0 0
        %1040 = vmatpush2.bf16.msra.mxu0 0
        %1041 = vmatprep.subr.bf16.mxu0 0
        %1042 = vmatpush2.bf16.msra.mxu0 0
        %1043 = vmatprep.mubr.bf16.mxu0 0
        %1044 = vmatmul.mubr.bf16.gmra.mxu0 %v627
        %v1045 = vpop.f32.mrf.mxu0
        %v1046 = vadd.f32 0.0, %v1045
        %v1047 = vpop.f32.mrf.mxu0
        %v1048 = vpop.f32.mrf.mxu0
        %v1049 = vadd.f32 0.0, %v1048
        %v1050 = vpop.f32.mrf.mxu0
        %1051 = vmatprep.mubr.bf16.mxu0 0
        %1052 = vmatmul.mubr.bf16.gmra.mxu0 %v628
        %v1053 = vpop.f32.mrf.mxu0
        %v1054 = vadd.f32 0.0, %v1053
        %v1055 = vpop.f32.mrf.mxu0
        %v1056 = vpop.f32.mrf.mxu0
        %v1057 = vadd.f32 0.0, %v1056
        %v1058 = vpop.f32.mrf.mxu0
        %1059 = vmatprep.mubr.bf16.mxu0 0
        %1060 = vmatmul.mubr.bf16.gmra.mxu0 %v629
        %v1061 = vpop.f32.mrf.mxu0
        %v1062 = vadd.f32 0.0, %v1061
        %v1063 = vpop.f32.mrf.mxu0
        %v1064 = vpop.f32.mrf.mxu0
        %v1065 = vadd.f32 0.0, %v1064
        %v1066 = vpop.f32.mrf.mxu0
        %1067 = vdwg.mxu0
        %v1068 = vadd.f32 %v957, %v1046
        %v1069 = vadd.f32 %v958, %v1049
        %v1070 = vadd.f32 %v959, %v1054
        %v1071 = vadd.f32 %v960, %v1057
        %v1072 = vadd.f32 %v961, %v1062
        %v1073 = vadd.f32 %v962, %v1065
        %v1090 = vunpack.c.l.b16 %v681
        %v1091 = vunpack.c.l.b16 %v682
        %v1092 = vunpack.c.l.b16 %v683
        %v1093 = vunpack.c.l.b16 %v684
        %v1094 = vunpack.c.l.b16 %v685
        %v1095 = vunpack.c.l.b16 %v686
        %v1096 = vunpack.c.l.b16 %v687
        %v1097 = vunpack.c.l.b16 %v688
        %v1098 = vunpack.c.l.b16 %v689
        %v1099 = vunpack.c.l.b16 %v690
        %v1100 = vunpack.c.l.b16 %v691
        %v1101 = vunpack.c.l.b16 %v692
        %v1102 = vunpack.c.l.b16 %v693
        %v1103 = vunpack.c.l.b16 %v694
        %v1104 = vunpack.c.l.b16 %v695
        %v1105 = vunpack.c.l.b16 %v696
        %v1106 = vpack.c.b16 %v1091, %v1090
        %v1107 = vpack.c.b16 %v1093, %v1092
        %v1108 = vpack.c.b16 %v1095, %v1094
        %v1109 = vpack.c.b16 %v1097, %v1096
        %v1110 = vpack.c.b16 %v1099, %v1098
        %v1111 = vpack.c.b16 %v1101, %v1100
        %v1112 = vpack.c.b16 %v1103, %v1102
        %v1113 = vpack.c.b16 %v1105, %v1104
        %1122 = vmatprep.subr.bf16.mxu0 0
        %1123 = vmatpush1.bf16.msra.mxu0 %v1113
        %1124 = vmatprep.subr.bf16.mxu0 0
        %1125 = vmatpush1.bf16.msra.mxu0 %v1112
        %1126 = vmatprep.subr.bf16.mxu0 0
        %1127 = vmatpush1.bf16.msra.mxu0 %v1111
        %1128 = vmatprep.subr.bf16.mxu0 0
        %1129 = vmatpush1.bf16.msra.mxu0 %v1110
        %1130 = vmatprep.subr.bf16.mxu0 0
        %1131 = vmatpush1.bf16.msra.mxu0 %v1109
        %1132 = vmatprep.subr.bf16.mxu0 0
        %1133 = vmatpush1.bf16.msra.mxu0 %v1108
        %1134 = vmatprep.subr.bf16.mxu0 0
        %1135 = vmatpush1.bf16.msra.mxu0 %v1107
        %1136 = vmatprep.subr.bf16.mxu0 0
        %1137 = vmatpush1.bf16.msra.mxu0 %v1106
        %1138 = vmatprep.subr.bf16.mxu0 0
        %1139 = vmatpush2.bf16.msra.mxu0 0
        %1140 = vmatprep.subr.bf16.mxu0 0
        %1141 = vmatpush2.bf16.msra.mxu0 0
        %1142 = vmatprep.subr.bf16.mxu0 0
        %1143 = vmatpush2.bf16.msra.mxu0 0
        %1144 = vmatprep.subr.bf16.mxu0 0
        %1145 = vmatpush2.bf16.msra.mxu0 0
        %1146 = vmatprep.subr.bf16.mxu0 0
        %1147 = vmatpush2.bf16.msra.mxu0 0
        %1148 = vmatprep.subr.bf16.mxu0 0
        %1149 = vmatpush2.bf16.msra.mxu0 0
        %1150 = vmatprep.subr.bf16.mxu0 0
        %1151 = vmatpush2.bf16.msra.mxu0 0
        %1152 = vmatprep.subr.bf16.mxu0 0
        %1153 = vmatpush2.bf16.msra.mxu0 0
        %1154 = vmatprep.mubr.bf16.mxu0 0
        %1155 = vmatmul.mubr.bf16.gmra.mxu0 %v627
        %v1156 = vpop.f32.mrf.mxu0
        %v1157 = vadd.f32 0.0, %v1156
        %v1158 = vpop.f32.mrf.mxu0
        %v1159 = vpop.f32.mrf.mxu0
        %v1160 = vadd.f32 0.0, %v1159
        %v1161 = vpop.f32.mrf.mxu0
        %1162 = vmatprep.mubr.bf16.mxu0 0
        %1163 = vmatmul.mubr.bf16.gmra.mxu0 %v628
        %v1164 = vpop.f32.mrf.mxu0
        %v1165 = vadd.f32 0.0, %v1164
        %v1166 = vpop.f32.mrf.mxu0
        %v1167 = vpop.f32.mrf.mxu0
        %v1168 = vadd.f32 0.0, %v1167
        %v1169 = vpop.f32.mrf.mxu0
        %1170 = vmatprep.mubr.bf16.mxu0 0
        %1171 = vmatmul.mubr.bf16.gmra.mxu0 %v629
        %v1172 = vpop.f32.mrf.mxu0
        %v1173 = vadd.f32 0.0, %v1172
        %v1174 = vpop.f32.mrf.mxu0
        %v1175 = vpop.f32.mrf.mxu0
        %v1176 = vadd.f32 0.0, %v1175
        %v1177 = vpop.f32.mrf.mxu0
        %1178 = vdwg.mxu0
        %v1179 = vrot.slane %v1157, 1
        %v1180 = vrot.slane %v1160, 1
        %v1181 = vrot.slane %v1165, 1
        %v1182 = vrot.slane %v1168, 1
        %v1183 = vrot.slane %v1173, 1
        %v1184 = vrot.slane %v1176, 1
        %vm1185 = vcmp.lt.s32.totalorder %v534, 7
        %v1186 = vsel %vm1185, %v1183, %v1184
        %v1187 = vsel %vm1185, %v1182, %v1183
        %v1188 = vsel %vm1185, %v1181, %v1182
        %v1189 = vsel %vm1185, %v1180, %v1181
        %v1190 = vsel %vm1185, %v1179, %v1180
        %v1191 = vsel %vm1185, %v1184, %v1179
        %v1192 = vadd.f32 %v1068, %v1190
        %v1193 = vadd.f32 %v1069, %v1189
        %v1194 = vadd.f32 %v1070, %v1188
        %v1195 = vadd.f32 %v1071, %v1187
        %v1196 = vadd.f32 %v1072, %v1186
        %v1197 = vadd.f32 %v1073, %v1191
        %v1214 = vunpack.c.l.b16 %v698
        %v1215 = vunpack.c.l.b16 %v699
        %v1216 = vunpack.c.l.b16 %v700
        %v1217 = vunpack.c.l.b16 %v701
        %v1218 = vunpack.c.l.b16 %v702
        %v1219 = vunpack.c.l.b16 %v703
        %v1220 = vunpack.c.l.b16 %v704
        %v1221 = vunpack.c.l.b16 %v705
        %v1222 = vunpack.c.l.b16 %v706
        %v1223 = vunpack.c.l.b16 %v707
        %v1224 = vunpack.c.l.b16 %v708
        %v1225 = vunpack.c.l.b16 %v709
        %v1226 = vunpack.c.l.b16 %v710
        %v1227 = vunpack.c.l.b16 %v711
        %v1228 = vunpack.c.l.b16 %v712
        %v1229 = vunpack.c.l.b16 %v713
        %v1230 = vpack.c.b16 %v1215, %v1214
        %v1231 = vpack.c.b16 %v1217, %v1216
        %v1232 = vpack.c.b16 %v1219, %v1218
        %v1233 = vpack.c.b16 %v1221, %v1220
        %v1234 = vpack.c.b16 %v1223, %v1222
        %v1235 = vpack.c.b16 %v1225, %v1224
        %v1236 = vpack.c.b16 %v1227, %v1226
        %v1237 = vpack.c.b16 %v1229, %v1228
        %1246 = vmatprep.subr.bf16.mxu0 0
        %1247 = vmatpush1.bf16.msra.mxu0 %v1237
        %1248 = vmatprep.subr.bf16.mxu0 0
        %1249 = vmatpush1.bf16.msra.mxu0 %v1236
        %1250 = vmatprep.subr.bf16.mxu0 0
        %1251 = vmatpush1.bf16.msra.mxu0 %v1235
        %1252 = vmatprep.subr.bf16.mxu0 0
        %1253 = vmatpush1.bf16.msra.mxu0 %v1234
        %1254 = vmatprep.subr.bf16.mxu0 0
        %1255 = vmatpush1.bf16.msra.mxu0 %v1233
        %1256 = vmatprep.subr.bf16.mxu0 0
        %1257 = vmatpush1.bf16.msra.mxu0 %v1232
        %1258 = vmatprep.subr.bf16.mxu0 0
        %1259 = vmatpush1.bf16.msra.mxu0 %v1231
        %1260 = vmatprep.subr.bf16.mxu0 0
        %1261 = vmatpush1.bf16.msra.mxu0 %v1230
        %1262 = vmatprep.subr.bf16.mxu0 0
        %1263 = vmatpush2.bf16.msra.mxu0 0
        %1264 = vmatprep.subr.bf16.mxu0 0
        %1265 = vmatpush2.bf16.msra.mxu0 0
        %1266 = vmatprep.subr.bf16.mxu0 0
        %1267 = vmatpush2.bf16.msra.mxu0 0
        %1268 = vmatprep.subr.bf16.mxu0 0
        %1269 = vmatpush2.bf16.msra.mxu0 0
        %1270 = vmatprep.subr.bf16.mxu0 0
        %1271 = vmatpush2.bf16.msra.mxu0 0
        %1272 = vmatprep.subr.bf16.mxu0 0
        %1273 = vmatpush2.bf16.msra.mxu0 0
        %1274 = vmatprep.subr.bf16.mxu0 0
        %1275 = vmatpush2.bf16.msra.mxu0 0
        %1276 = vmatprep.subr.bf16.mxu0 0
        %1277 = vmatpush2.bf16.msra.mxu0 0
        %1278 = vmatprep.mubr.bf16.mxu0 0
        %1279 = vmatmul.mubr.bf16.gmra.mxu0 %v627
        %v1280 = vpop.f32.mrf.mxu0
        %v1281 = vadd.f32 0.0, %v1280
        %v1282 = vpop.f32.mrf.mxu0
        %v1283 = vpop.f32.mrf.mxu0
        %v1284 = vadd.f32 0.0, %v1283
        %v1285 = vpop.f32.mrf.mxu0
        %1286 = vmatprep.mubr.bf16.mxu0 0
        %1287 = vmatmul.mubr.bf16.gmra.mxu0 %v628
        %v1288 = vpop.f32.mrf.mxu0
        %v1289 = vadd.f32 0.0, %v1288
        %v1290 = vpop.f32.mrf.mxu0
        %v1291 = vpop.f32.mrf.mxu0
        %v1292 = vadd.f32 0.0, %v1291
        %v1293 = vpop.f32.mrf.mxu0
        %1294 = vmatprep.mubr.bf16.mxu0 0
        %1295 = vmatmul.mubr.bf16.gmra.mxu0 %v629
        %v1296 = vpop.f32.mrf.mxu0
        %v1297 = vadd.f32 0.0, %v1296
        %v1298 = vpop.f32.mrf.mxu0
        %v1299 = vpop.f32.mrf.mxu0
        %v1300 = vadd.f32 0.0, %v1299
        %v1301 = vpop.f32.mrf.mxu0
        %1302 = vdwg.mxu0
        %v1303 = vrot.slane %v1281, 2
        %v1304 = vrot.slane %v1284, 2
        %v1305 = vrot.slane %v1289, 2
        %v1306 = vrot.slane %v1292, 2
        %v1307 = vrot.slane %v1297, 2
        %v1308 = vrot.slane %v1300, 2
        %vm1309 = vcmp.lt.s32.totalorder %v534, 6
        %v1310 = vsel %vm1309, %v1307, %v1308
        %v1311 = vsel %vm1309, %v1306, %v1307
        %v1312 = vsel %vm1309, %v1305, %v1306
        %v1313 = vsel %vm1309, %v1304, %v1305
        %v1314 = vsel %vm1309, %v1303, %v1304
        %v1315 = vsel %vm1309, %v1308, %v1303
        %v1316 = vadd.f32 %v1192, %v1314
        %v1317 = vadd.f32 %v1193, %v1313
        %v1318 = vadd.f32 %v1194, %v1312
        %v1319 = vadd.f32 %v1195, %v1311
        %v1320 = vadd.f32 %v1196, %v1310
        %v1321 = vadd.f32 %v1197, %v1315
        %v1323 = vlaneseq
        %v1324 = vshrl.u32 %v1323, 7
        %v1325 = vsub.s32 0, %v1324
        %v1326 = vrot.slane %v714, %v1325
        %v1328 = vadd.f32 %v1316, %v1326
        %v1329 = vadd.f32 %v1317, %v1326
        %v1330 = vadd.f32 %v1318, %v1326
        %v1331 = vadd.f32 %v1319, %v1326
        %v1332 = vadd.f32 %v1320, %v1326
        %v1333 = vadd.f32 %v1321, %v1326
        %v1334 = vtanh.pop %v1328
        %v1335 = vtanh.pop %v1329
        %v1336 = vtanh.pop %v1330
        %v1337 = vtanh.pop %v1331
        %v1338 = vtanh.pop %v1332
        %v1339 = vtanh.pop %v1333
        %v1340 = vsel %vm597, %v1334, 0.0
        %v1341 = vsel %vm598, %v1335, 0.0
        %v1342 = vsel %vm599, %v1336, 0.0
        %v1343 = vsel %vm600, %v1337, 0.0
        %v1344 = vsel %vm601, %v1338, 0.0
        %v1345 = vsel %vm602, %v1339, 0.0
        %v1346 = vpack.c.bf16 %v1341, %v1340
        %v1347 = vpack.c.bf16 %v1343, %v1342
        %v1348 = vpack.c.bf16 %v1345, %v1344
        %v1349 = vld [vmem:[#allocation4] sm:$0xf]
        %v1350 = vld [vmem:[#allocation4 + $0x4] sm:$0xf]
        %v1351 = vld [vmem:[#allocation4 + $0x8] sm:$0xf]
        %v1352 = vld [vmem:[#allocation4 + $0xc] sm:$0xf]
        %v1353 = vld [vmem:[#allocation4 + $0x10] sm:$0xf]
        %v1354 = vld [vmem:[#allocation4 + $0x14] sm:$0xf]
        %v1355 = vld [vmem:[#allocation4 + $0x18] sm:$0xf]
        %v1356 = vld [vmem:[#allocation4 + $0x1c] sm:$0xf]
        %v1357 = vld [vmem:[#allocation4 + $0x20] sm:$0xf]
        %v1358 = vld [vmem:[#allocation4 + $0x24] sm:$0xf]
        %v1359 = vld [vmem:[#allocation4 + $0x28] sm:$0xf]
        %v1360 = vld [vmem:[#allocation4 + $0x2c] sm:$0xf]
        %v1361 = vld [vmem:[#allocation4 + $0x30] sm:$0xf]
        %v1362 = vld [vmem:[#allocation4 + $0x34] sm:$0xf]
        %v1363 = vld [vmem:[#allocation4 + $0x38] sm:$0xf]
        %v1364 = vld [vmem:[#allocation4 + $0x3c] sm:$0xf]
        %s1365 = scalar_lea.vmem [#allocation4], 64
        %v1366 = vld [vmem:[%s1365] sm:$0xf]
        %v1367 = vld [vmem:[%s1365 + $0x4] sm:$0xf]
        %v1368 = vld [vmem:[%s1365 + $0x8] sm:$0xf]
        %v1369 = vld [vmem:[%s1365 + $0xc] sm:$0xf]
        %v1370 = vld [vmem:[%s1365 + $0x10] sm:$0xf]
        %v1371 = vld [vmem:[%s1365 + $0x14] sm:$0xf]
        %v1372 = vld [vmem:[%s1365 + $0x18] sm:$0xf]
        %v1373 = vld [vmem:[%s1365 + $0x1c] sm:$0xf]
        %v1374 = vld [vmem:[%s1365 + $0x20] sm:$0xf]
        %v1375 = vld [vmem:[%s1365 + $0x24] sm:$0xf]
        %v1376 = vld [vmem:[%s1365 + $0x28] sm:$0xf]
        %v1377 = vld [vmem:[%s1365 + $0x2c] sm:$0xf]
        %v1378 = vld [vmem:[%s1365 + $0x30] sm:$0xf]
        %v1379 = vld [vmem:[%s1365 + $0x34] sm:$0xf]
        %v1380 = vld [vmem:[%s1365 + $0x38] sm:$0xf]
        %v1381 = vld [vmem:[%s1365 + $0x3c] sm:$0xf]
        %s1382 = scalar_lea.vmem [#allocation4], 128
        %v1383 = vld [vmem:[%s1382] sm:$0xf]
        %v1384 = vld [vmem:[%s1382 + $0x4] sm:$0xf]
        %v1385 = vld [vmem:[%s1382 + $0x8] sm:$0xf]
        %v1386 = vld [vmem:[%s1382 + $0xc] sm:$0xf]
        %v1387 = vld [vmem:[%s1382 + $0x10] sm:$0xf]
        %v1388 = vld [vmem:[%s1382 + $0x14] sm:$0xf]
        %v1389 = vld [vmem:[%s1382 + $0x18] sm:$0xf]
        %v1390 = vld [vmem:[%s1382 + $0x1c] sm:$0xf]
        %v1391 = vld [vmem:[%s1382 + $0x20] sm:$0xf]
        %v1392 = vld [vmem:[%s1382 + $0x24] sm:$0xf]
        %v1393 = vld [vmem:[%s1382 + $0x28] sm:$0xf]
        %v1394 = vld [vmem:[%s1382 + $0x2c] sm:$0xf]
        %v1395 = vld [vmem:[%s1382 + $0x30] sm:$0xf]
        %v1396 = vld [vmem:[%s1382 + $0x34] sm:$0xf]
        %v1397 = vld [vmem:[%s1382 + $0x38] sm:$0xf]
        %v1398 = vld [vmem:[%s1382 + $0x3c] sm:$0xf]
        %s1399 = scalar_lea.vmem [#allocation4], 192
        %v1400 = vld [vmem:[%s1399] sm:$0xf]
        %v1401 = vld [vmem:[%s1399 + $0x4] sm:$0xf]
        %v1402 = vld [vmem:[%s1399 + $0x8] sm:$0xf]
        %v1403 = vld [vmem:[%s1399 + $0xc] sm:$0xf]
        %v1404 = vld [vmem:[%s1399 + $0x10] sm:$0xf]
        %v1405 = vld [vmem:[%s1399 + $0x14] sm:$0xf]
        %v1406 = vld [vmem:[%s1399 + $0x18] sm:$0xf]
        %v1407 = vld [vmem:[%s1399 + $0x1c] sm:$0xf]
        %v1408 = vld [vmem:[%s1399 + $0x20] sm:$0xf]
        %v1409 = vld [vmem:[%s1399 + $0x24] sm:$0xf]
        %v1410 = vld [vmem:[%s1399 + $0x28] sm:$0xf]
        %v1411 = vld [vmem:[%s1399 + $0x2c] sm:$0xf]
        %v1412 = vld [vmem:[%s1399 + $0x30] sm:$0xf]
        %v1413 = vld [vmem:[%s1399 + $0x34] sm:$0xf]
        %v1414 = vld [vmem:[%s1399 + $0x38] sm:$0xf]
        %v1415 = vld [vmem:[%s1399 + $0x3c] sm:$0xf]
        %s1416 = scalar_lea.vmem [#allocation4], 256
        %v1417 = vld [vmem:[%s1416] sm:$0xf]
        %v1418 = vld [vmem:[%s1416 + $0x4] sm:$0xf]
        %v1419 = vld [vmem:[%s1416 + $0x8] sm:$0xf]
        %v1420 = vld [vmem:[%s1416 + $0xc] sm:$0xf]
        %v1421 = vld [vmem:[%s1416 + $0x10] sm:$0xf]
        %v1422 = vld [vmem:[%s1416 + $0x14] sm:$0xf]
        %v1423 = vld [vmem:[%s1416 + $0x18] sm:$0xf]
        %v1424 = vld [vmem:[%s1416 + $0x1c] sm:$0xf]
        %v1425 = vld [vmem:[%s1416 + $0x20] sm:$0xf]
        %v1426 = vld [vmem:[%s1416 + $0x24] sm:$0xf]
        %v1427 = vld [vmem:[%s1416 + $0x28] sm:$0xf]
        %v1428 = vld [vmem:[%s1416 + $0x2c] sm:$0xf]
        %v1429 = vld [vmem:[%s1416 + $0x30] sm:$0xf]
        %v1430 = vld [vmem:[%s1416 + $0x34] sm:$0xf]
        %v1431 = vld [vmem:[%s1416 + $0x38] sm:$0xf]
        %v1432 = vld [vmem:[%s1416 + $0x3c] sm:$0xf]
        %v1433 = vld [vmem:[%s6] sm:$0x1]
        %v1450 = vunpack.c.l.b16 %v1349
        %v1451 = vunpack.c.l.b16 %v1350
        %v1452 = vunpack.c.l.b16 %v1351
        %v1453 = vunpack.c.l.b16 %v1352
        %v1454 = vunpack.c.l.b16 %v1353
        %v1455 = vunpack.c.l.b16 %v1354
        %v1456 = vunpack.c.l.b16 %v1355
        %v1457 = vunpack.c.l.b16 %v1356
        %v1458 = vunpack.c.l.b16 %v1357
        %v1459 = vunpack.c.l.b16 %v1358
        %v1460 = vunpack.c.l.b16 %v1359
        %v1461 = vunpack.c.l.b16 %v1360
        %v1462 = vunpack.c.l.b16 %v1361
        %v1463 = vunpack.c.l.b16 %v1362
        %v1464 = vunpack.c.l.b16 %v1363
        %v1465 = vunpack.c.l.b16 %v1364
        %v1466 = vpack.c.b16 %v1451, %v1450
        %v1467 = vpack.c.b16 %v1453, %v1452
        %v1468 = vpack.c.b16 %v1455, %v1454
        %v1469 = vpack.c.b16 %v1457, %v1456
        %v1470 = vpack.c.b16 %v1459, %v1458
        %v1471 = vpack.c.b16 %v1461, %v1460
        %v1472 = vpack.c.b16 %v1463, %v1462
        %v1473 = vpack.c.b16 %v1465, %v1464
        %1482 = vmatprep.subr.bf16.mxu0 0
        %1483 = vmatpush1.bf16.msra.mxu0 %v1473
        %1484 = vmatprep.subr.bf16.mxu0 0
        %1485 = vmatpush1.bf16.msra.mxu0 %v1472
        %1486 = vmatprep.subr.bf16.mxu0 0
        %1487 = vmatpush1.bf16.msra.mxu0 %v1471
        %1488 = vmatprep.subr.bf16.mxu0 0
        %1489 = vmatpush1.bf16.msra.mxu0 %v1470
        %1490 = vmatprep.subr.bf16.mxu0 0
        %1491 = vmatpush1.bf16.msra.mxu0 %v1469
        %1492 = vmatprep.subr.bf16.mxu0 0
        %1493 = vmatpush1.bf16.msra.mxu0 %v1468
        %1494 = vmatprep.subr.bf16.mxu0 0
        %1495 = vmatpush1.bf16.msra.mxu0 %v1467
        %1496 = vmatprep.subr.bf16.mxu0 0
        %1497 = vmatpush1.bf16.msra.mxu0 %v1466
        %1498 = vmatprep.subr.bf16.mxu0 0
        %1499 = vmatpush2.bf16.msra.mxu0 0
        %1500 = vmatprep.subr.bf16.mxu0 0
        %1501 = vmatpush2.bf16.msra.mxu0 0
        %1502 = vmatprep.subr.bf16.mxu0 0
        %1503 = vmatpush2.bf16.msra.mxu0 0
        %1504 = vmatprep.subr.bf16.mxu0 0
        %1505 = vmatpush2.bf16.msra.mxu0 0
        %1506 = vmatprep.subr.bf16.mxu0 0
        %1507 = vmatpush2.bf16.msra.mxu0 0
        %1508 = vmatprep.subr.bf16.mxu0 0
        %1509 = vmatpush2.bf16.msra.mxu0 0
        %1510 = vmatprep.subr.bf16.mxu0 0
        %1511 = vmatpush2.bf16.msra.mxu0 0
        %1512 = vmatprep.subr.bf16.mxu0 0
        %1513 = vmatpush2.bf16.msra.mxu0 0
        %1514 = vmatprep.mubr.bf16.mxu0 0
        %1515 = vmatmul.mubr.bf16.gmra.mxu0 %v1346
        %v1516 = vpop.f32.mrf.mxu0
        %v1517 = vadd.f32 0.0, %v1516
        %v1518 = vpop.f32.mrf.mxu0
        %v1519 = vpop.f32.mrf.mxu0
        %v1520 = vadd.f32 0.0, %v1519
        %v1521 = vpop.f32.mrf.mxu0
        %1522 = vmatprep.mubr.bf16.mxu0 0
        %1523 = vmatmul.mubr.bf16.gmra.mxu0 %v1347
        %v1524 = vpop.f32.mrf.mxu0
        %v1525 = vadd.f32 0.0, %v1524
        %v1526 = vpop.f32.mrf.mxu0
        %v1527 = vpop.f32.mrf.mxu0
        %v1528 = vadd.f32 0.0, %v1527
        %v1529 = vpop.f32.mrf.mxu0
        %1530 = vmatprep.mubr.bf16.mxu0 0
        %1531 = vmatmul.mubr.bf16.gmra.mxu0 %v1348
        %v1532 = vpop.f32.mrf.mxu0
        %v1533 = vadd.f32 0.0, %v1532
        %v1534 = vpop.f32.mrf.mxu0
        %v1535 = vpop.f32.mrf.mxu0
        %v1536 = vadd.f32 0.0, %v1535
        %v1537 = vpop.f32.mrf.mxu0
        %1538 = vdwg.mxu0
        %v1539 = vrot.slane %v1517, 6
        %v1540 = vrot.slane %v1520, 6
        %v1541 = vrot.slane %v1525, 6
        %v1542 = vrot.slane %v1528, 6
        %v1543 = vrot.slane %v1533, 6
        %v1544 = vrot.slane %v1536, 6
        %v1545 = vsel %vm826, %v1543, %v1544
        %v1546 = vsel %vm826, %v1542, %v1543
        %v1547 = vsel %vm826, %v1541, %v1542
        %v1548 = vsel %vm826, %v1540, %v1541
        %v1549 = vsel %vm826, %v1539, %v1540
        %v1550 = vsel %vm826, %v1544, %v1539
        %v1551 = vadd.f32 %v1550, 0.0
        %v1552 = vadd.f32 %v1549, 0.0
        %v1553 = vadd.f32 %v1548, 0.0
        %v1554 = vadd.f32 %v1547, 0.0
        %v1555 = vadd.f32 %v1546, 0.0
        %v1556 = vadd.f32 %v1545, 0.0
        %v1573 = vunpack.c.l.b16 %v1366
        %v1574 = vunpack.c.l.b16 %v1367
        %v1575 = vunpack.c.l.b16 %v1368
        %v1576 = vunpack.c.l.b16 %v1369
        %v1577 = vunpack.c.l.b16 %v1370
        %v1578 = vunpack.c.l.b16 %v1371
        %v1579 = vunpack.c.l.b16 %v1372
        %v1580 = vunpack.c.l.b16 %v1373
        %v1581 = vunpack.c.l.b16 %v1374
        %v1582 = vunpack.c.l.b16 %v1375
        %v1583 = vunpack.c.l.b16 %v1376
        %v1584 = vunpack.c.l.b16 %v1377
        %v1585 = vunpack.c.l.b16 %v1378
        %v1586 = vunpack.c.l.b16 %v1379
        %v1587 = vunpack.c.l.b16 %v1380
        %v1588 = vunpack.c.l.b16 %v1381
        %v1589 = vpack.c.b16 %v1574, %v1573
        %v1590 = vpack.c.b16 %v1576, %v1575
        %v1591 = vpack.c.b16 %v1578, %v1577
        %v1592 = vpack.c.b16 %v1580, %v1579
        %v1593 = vpack.c.b16 %v1582, %v1581
        %v1594 = vpack.c.b16 %v1584, %v1583
        %v1595 = vpack.c.b16 %v1586, %v1585
        %v1596 = vpack.c.b16 %v1588, %v1587
        %1605 = vmatprep.subr.bf16.mxu0 0
        %1606 = vmatpush1.bf16.msra.mxu0 %v1596
        %1607 = vmatprep.subr.bf16.mxu0 0
        %1608 = vmatpush1.bf16.msra.mxu0 %v1595
        %1609 = vmatprep.subr.bf16.mxu0 0
        %1610 = vmatpush1.bf16.msra.mxu0 %v1594
        %1611 = vmatprep.subr.bf16.mxu0 0
        %1612 = vmatpush1.bf16.msra.mxu0 %v1593
        %1613 = vmatprep.subr.bf16.mxu0 0
        %1614 = vmatpush1.bf16.msra.mxu0 %v1592
        %1615 = vmatprep.subr.bf16.mxu0 0
        %1616 = vmatpush1.bf16.msra.mxu0 %v1591
        %1617 = vmatprep.subr.bf16.mxu0 0
        %1618 = vmatpush1.bf16.msra.mxu0 %v1590
        %1619 = vmatprep.subr.bf16.mxu0 0
        %1620 = vmatpush1.bf16.msra.mxu0 %v1589
        %1621 = vmatprep.subr.bf16.mxu0 0
        %1622 = vmatpush2.bf16.msra.mxu0 0
        %1623 = vmatprep.subr.bf16.mxu0 0
        %1624 = vmatpush2.bf16.msra.mxu0 0
        %1625 = vmatprep.subr.bf16.mxu0 0
        %1626 = vmatpush2.bf16.msra.mxu0 0
        %1627 = vmatprep.subr.bf16.mxu0 0
        %1628 = vmatpush2.bf16.msra.mxu0 0
        %1629 = vmatprep.subr.bf16.mxu0 0
        %1630 = vmatpush2.bf16.msra.mxu0 0
        %1631 = vmatprep.subr.bf16.mxu0 0
        %1632 = vmatpush2.bf16.msra.mxu0 0
        %1633 = vmatprep.subr.bf16.mxu0 0
        %1634 = vmatpush2.bf16.msra.mxu0 0
        %1635 = vmatprep.subr.bf16.mxu0 0
        %1636 = vmatpush2.bf16.msra.mxu0 0
        %1637 = vmatprep.mubr.bf16.mxu0 0
        %1638 = vmatmul.mubr.bf16.gmra.mxu0 %v1346
        %v1639 = vpop.f32.mrf.mxu0
        %v1640 = vadd.f32 0.0, %v1639
        %v1641 = vpop.f32.mrf.mxu0
        %v1642 = vpop.f32.mrf.mxu0
        %v1643 = vadd.f32 0.0, %v1642
        %v1644 = vpop.f32.mrf.mxu0
        %1645 = vmatprep.mubr.bf16.mxu0 0
        %1646 = vmatmul.mubr.bf16.gmra.mxu0 %v1347
        %v1647 = vpop.f32.mrf.mxu0
        %v1648 = vadd.f32 0.0, %v1647
        %v1649 = vpop.f32.mrf.mxu0
        %v1650 = vpop.f32.mrf.mxu0
        %v1651 = vadd.f32 0.0, %v1650
        %v1652 = vpop.f32.mrf.mxu0
        %1653 = vmatprep.mubr.bf16.mxu0 0
        %1654 = vmatmul.mubr.bf16.gmra.mxu0 %v1348
        %v1655 = vpop.f32.mrf.mxu0
        %v1656 = vadd.f32 0.0, %v1655
        %v1657 = vpop.f32.mrf.mxu0
        %v1658 = vpop.f32.mrf.mxu0
        %v1659 = vadd.f32 0.0, %v1658
        %v1660 = vpop.f32.mrf.mxu0
        %1661 = vdwg.mxu0
        %v1662 = vrot.slane %v1640, 7
        %v1663 = vrot.slane %v1643, 7
        %v1664 = vrot.slane %v1648, 7
        %v1665 = vrot.slane %v1651, 7
        %v1666 = vrot.slane %v1656, 7
        %v1667 = vrot.slane %v1659, 7
        %v1668 = vsel %vm950, %v1666, %v1667
        %v1669 = vsel %vm950, %v1665, %v1666
        %v1670 = vsel %vm950, %v1664, %v1665
        %v1671 = vsel %vm950, %v1663, %v1664
        %v1672 = vsel %vm950, %v1662, %v1663
        %v1673 = vsel %vm950, %v1667, %v1662
        %v1674 = vadd.f32 %v1551, %v1673
        %v1675 = vadd.f32 %v1552, %v1672
        %v1676 = vadd.f32 %v1553, %v1671
        %v1677 = vadd.f32 %v1554, %v1670
        %v1678 = vadd.f32 %v1555, %v1669
        %v1679 = vadd.f32 %v1556, %v1668
        %v1696 = vunpack.c.l.b16 %v1383
        %v1697 = vunpack.c.l.b16 %v1384
        %v1698 = vunpack.c.l.b16 %v1385
        %v1699 = vunpack.c.l.b16 %v1386
        %v1700 = vunpack.c.l.b16 %v1387
        %v1701 = vunpack.c.l.b16 %v1388
        %v1702 = vunpack.c.l.b16 %v1389
        %v1703 = vunpack.c.l.b16 %v1390
        %v1704 = vunpack.c.l.b16 %v1391
        %v1705 = vunpack.c.l.b16 %v1392
        %v1706 = vunpack.c.l.b16 %v1393
        %v1707 = vunpack.c.l.b16 %v1394
        %v1708 = vunpack.c.l.b16 %v1395
        %v1709 = vunpack.c.l.b16 %v1396
        %v1710 = vunpack.c.l.b16 %v1397
        %v1711 = vunpack.c.l.b16 %v1398
        %v1712 = vpack.c.b16 %v1697, %v1696
        %v1713 = vpack.c.b16 %v1699, %v1698
        %v1714 = vpack.c.b16 %v1701, %v1700
        %v1715 = vpack.c.b16 %v1703, %v1702
        %v1716 = vpack.c.b16 %v1705, %v1704
        %v1717 = vpack.c.b16 %v1707, %v1706
        %v1718 = vpack.c.b16 %v1709, %v1708
        %v1719 = vpack.c.b16 %v1711, %v1710
        %1728 = vmatprep.subr.bf16.mxu0 0
        %1729 = vmatpush1.bf16.msra.mxu0 %v1719
        %1730 = vmatprep.subr.bf16.mxu0 0
        %1731 = vmatpush1.bf16.msra.mxu0 %v1718
        %1732 = vmatprep.subr.bf16.mxu0 0
        %1733 = vmatpush1.bf16.msra.mxu0 %v1717
        %1734 = vmatprep.subr.bf16.mxu0 0
        %1735 = vmatpush1.bf16.msra.mxu0 %v1716
        %1736 = vmatprep.subr.bf16.mxu0 0
        %1737 = vmatpush1.bf16.msra.mxu0 %v1715
        %1738 = vmatprep.subr.bf16.mxu0 0
        %1739 = vmatpush1.bf16.msra.mxu0 %v1714
        %1740 = vmatprep.subr.bf16.mxu0 0
        %1741 = vmatpush1.bf16.msra.mxu0 %v1713
        %1742 = vmatprep.subr.bf16.mxu0 0
        %1743 = vmatpush1.bf16.msra.mxu0 %v1712
        %1744 = vmatprep.subr.bf16.mxu0 0
        %1745 = vmatpush2.bf16.msra.mxu0 0
        %1746 = vmatprep.subr.bf16.mxu0 0
        %1747 = vmatpush2.bf16.msra.mxu0 0
        %1748 = vmatprep.subr.bf16.mxu0 0
        %1749 = vmatpush2.bf16.msra.mxu0 0
        %1750 = vmatprep.subr.bf16.mxu0 0
        %1751 = vmatpush2.bf16.msra.mxu0 0
        %1752 = vmatprep.subr.bf16.mxu0 0
        %1753 = vmatpush2.bf16.msra.mxu0 0
        %1754 = vmatprep.subr.bf16.mxu0 0
        %1755 = vmatpush2.bf16.msra.mxu0 0
        %1756 = vmatprep.subr.bf16.mxu0 0
        %1757 = vmatpush2.bf16.msra.mxu0 0
        %1758 = vmatprep.subr.bf16.mxu0 0
        %1759 = vmatpush2.bf16.msra.mxu0 0
        %1760 = vmatprep.mubr.bf16.mxu0 0
        %1761 = vmatmul.mubr.bf16.gmra.mxu0 %v1346
        %v1762 = vpop.f32.mrf.mxu0
        %v1763 = vadd.f32 0.0, %v1762
        %v1764 = vpop.f32.mrf.mxu0
        %v1765 = vpop.f32.mrf.mxu0
        %v1766 = vadd.f32 0.0, %v1765
        %v1767 = vpop.f32.mrf.mxu0
        %1768 = vmatprep.mubr.bf16.mxu0 0
        %1769 = vmatmul.mubr.bf16.gmra.mxu0 %v1347
        %v1770 = vpop.f32.mrf.mxu0
        %v1771 = vadd.f32 0.0, %v1770
        %v1772 = vpop.f32.mrf.mxu0
        %v1773 = vpop.f32.mrf.mxu0
        %v1774 = vadd.f32 0.0, %v1773
        %v1775 = vpop.f32.mrf.mxu0
        %1776 = vmatprep.mubr.bf16.mxu0 0
        %1777 = vmatmul.mubr.bf16.gmra.mxu0 %v1348
        %v1778 = vpop.f32.mrf.mxu0
        %v1779 = vadd.f32 0.0, %v1778
        %v1780 = vpop.f32.mrf.mxu0
        %v1781 = vpop.f32.mrf.mxu0
        %v1782 = vadd.f32 0.0, %v1781
        %v1783 = vpop.f32.mrf.mxu0
        %1784 = vdwg.mxu0
        %v1785 = vadd.f32 %v1674, %v1763
        %v1786 = vadd.f32 %v1675, %v1766
        %v1787 = vadd.f32 %v1676, %v1771
        %v1788 = vadd.f32 %v1677, %v1774
        %v1789 = vadd.f32 %v1678, %v1779
        %v1790 = vadd.f32 %v1679, %v1782
        %v1807 = vunpack.c.l.b16 %v1400
        %v1808 = vunpack.c.l.b16 %v1401
        %v1809 = vunpack.c.l.b16 %v1402
        %v1810 = vunpack.c.l.b16 %v1403
        %v1811 = vunpack.c.l.b16 %v1404
        %v1812 = vunpack.c.l.b16 %v1405
        %v1813 = vunpack.c.l.b16 %v1406
        %v1814 = vunpack.c.l.b16 %v1407
        %v1815 = vunpack.c.l.b16 %v1408
        %v1816 = vunpack.c.l.b16 %v1409
        %v1817 = vunpack.c.l.b16 %v1410
        %v1818 = vunpack.c.l.b16 %v1411
        %v1819 = vunpack.c.l.b16 %v1412
        %v1820 = vunpack.c.l.b16 %v1413
        %v1821 = vunpack.c.l.b16 %v1414
        %v1822 = vunpack.c.l.b16 %v1415
        %v1823 = vpack.c.b16 %v1808, %v1807
        %v1824 = vpack.c.b16 %v1810, %v1809
        %v1825 = vpack.c.b16 %v1812, %v1811
        %v1826 = vpack.c.b16 %v1814, %v1813
        %v1827 = vpack.c.b16 %v1816, %v1815
        %v1828 = vpack.c.b16 %v1818, %v1817
        %v1829 = vpack.c.b16 %v1820, %v1819
        %v1830 = vpack.c.b16 %v1822, %v1821
        %1839 = vmatprep.subr.bf16.mxu0 0
        %1840 = vmatpush1.bf16.msra.mxu0 %v1830
        %1841 = vmatprep.subr.bf16.mxu0 0
        %1842 = vmatpush1.bf16.msra.mxu0 %v1829
        %1843 = vmatprep.subr.bf16.mxu0 0
        %1844 = vmatpush1.bf16.msra.mxu0 %v1828
        %1845 = vmatprep.subr.bf16.mxu0 0
        %1846 = vmatpush1.bf16.msra.mxu0 %v1827
        %1847 = vmatprep.subr.bf16.mxu0 0
        %1848 = vmatpush1.bf16.msra.mxu0 %v1826
        %1849 = vmatprep.subr.bf16.mxu0 0
        %1850 = vmatpush1.bf16.msra.mxu0 %v1825
        %1851 = vmatprep.subr.bf16.mxu0 0
        %1852 = vmatpush1.bf16.msra.mxu0 %v1824
        %1853 = vmatprep.subr.bf16.mxu0 0
        %1854 = vmatpush1.bf16.msra.mxu0 %v1823
        %1855 = vmatprep.subr.bf16.mxu0 0
        %1856 = vmatpush2.bf16.msra.mxu0 0
        %1857 = vmatprep.subr.bf16.mxu0 0
        %1858 = vmatpush2.bf16.msra.mxu0 0
        %1859 = vmatprep.subr.bf16.mxu0 0
        %1860 = vmatpush2.bf16.msra.mxu0 0
        %1861 = vmatprep.subr.bf16.mxu0 0
        %1862 = vmatpush2.bf16.msra.mxu0 0
        %1863 = vmatprep.subr.bf16.mxu0 0
        %1864 = vmatpush2.bf16.msra.mxu0 0
        %1865 = vmatprep.subr.bf16.mxu0 0
        %1866 = vmatpush2.bf16.msra.mxu0 0
        %1867 = vmatprep.subr.bf16.mxu0 0
        %1868 = vmatpush2.bf16.msra.mxu0 0
        %1869 = vmatprep.subr.bf16.mxu0 0
        %1870 = vmatpush2.bf16.msra.mxu0 0
        %1871 = vmatprep.mubr.bf16.mxu0 0
        %1872 = vmatmul.mubr.bf16.gmra.mxu0 %v1346
        %v1873 = vpop.f32.mrf.mxu0
        %v1874 = vadd.f32 0.0, %v1873
        %v1875 = vpop.f32.mrf.mxu0
        %v1876 = vpop.f32.mrf.mxu0
        %v1877 = vadd.f32 0.0, %v1876
        %v1878 = vpop.f32.mrf.mxu0
        %1879 = vmatprep.mubr.bf16.mxu0 0
        %1880 = vmatmul.mubr.bf16.gmra.mxu0 %v1347
        %v1881 = vpop.f32.mrf.mxu0
        %v1882 = vadd.f32 0.0, %v1881
        %v1883 = vpop.f32.mrf.mxu0
        %v1884 = vpop.f32.mrf.mxu0
        %v1885 = vadd.f32 0.0, %v1884
        %v1886 = vpop.f32.mrf.mxu0
        %1887 = vmatprep.mubr.bf16.mxu0 0
        %1888 = vmatmul.mubr.bf16.gmra.mxu0 %v1348
        %v1889 = vpop.f32.mrf.mxu0
        %v1890 = vadd.f32 0.0, %v1889
        %v1891 = vpop.f32.mrf.mxu0
        %v1892 = vpop.f32.mrf.mxu0
        %v1893 = vadd.f32 0.0, %v1892
        %v1894 = vpop.f32.mrf.mxu0
        %1895 = vdwg.mxu0
        %v1896 = vrot.slane %v1874, 1
        %v1897 = vrot.slane %v1877, 1
        %v1898 = vrot.slane %v1882, 1
        %v1899 = vrot.slane %v1885, 1
        %v1900 = vrot.slane %v1890, 1
        %v1901 = vrot.slane %v1893, 1
        %v1902 = vsel %vm1185, %v1900, %v1901
        %v1903 = vsel %vm1185, %v1899, %v1900
        %v1904 = vsel %vm1185, %v1898, %v1899
        %v1905 = vsel %vm1185, %v1897, %v1898
        %v1906 = vsel %vm1185, %v1896, %v1897
        %v1907 = vsel %vm1185, %v1901, %v1896
        %v1908 = vadd.f32 %v1785, %v1906
        %v1909 = vadd.f32 %v1786, %v1905
        %v1910 = vadd.f32 %v1787, %v1904
        %v1911 = vadd.f32 %v1788, %v1903
        %v1912 = vadd.f32 %v1789, %v1902
        %v1913 = vadd.f32 %v1790, %v1907
        %v1930 = vunpack.c.l.b16 %v1417
        %v1931 = vunpack.c.l.b16 %v1418
        %v1932 = vunpack.c.l.b16 %v1419
        %v1933 = vunpack.c.l.b16 %v1420
        %v1934 = vunpack.c.l.b16 %v1421
        %v1935 = vunpack.c.l.b16 %v1422
        %v1936 = vunpack.c.l.b16 %v1423
        %v1937 = vunpack.c.l.b16 %v1424
        %v1938 = vunpack.c.l.b16 %v1425
        %v1939 = vunpack.c.l.b16 %v1426
        %v1940 = vunpack.c.l.b16 %v1427
        %v1941 = vunpack.c.l.b16 %v1428
        %v1942 = vunpack.c.l.b16 %v1429
        %v1943 = vunpack.c.l.b16 %v1430
        %v1944 = vunpack.c.l.b16 %v1431
        %v1945 = vunpack.c.l.b16 %v1432
        %v1946 = vpack.c.b16 %v1931, %v1930
        %v1947 = vpack.c.b16 %v1933, %v1932
        %v1948 = vpack.c.b16 %v1935, %v1934
        %v1949 = vpack.c.b16 %v1937, %v1936
        %v1950 = vpack.c.b16 %v1939, %v1938
        %v1951 = vpack.c.b16 %v1941, %v1940
        %v1952 = vpack.c.b16 %v1943, %v1942
        %v1953 = vpack.c.b16 %v1945, %v1944
        %1962 = vmatprep.subr.bf16.mxu0 0
        %1963 = vmatpush1.bf16.msra.mxu0 %v1953
        %1964 = vmatprep.subr.bf16.mxu0 0
        %1965 = vmatpush1.bf16.msra.mxu0 %v1952
        %1966 = vmatprep.subr.bf16.mxu0 0
        %1967 = vmatpush1.bf16.msra.mxu0 %v1951
        %1968 = vmatprep.subr.bf16.mxu0 0
        %1969 = vmatpush1.bf16.msra.mxu0 %v1950
        %1970 = vmatprep.subr.bf16.mxu0 0
        %1971 = vmatpush1.bf16.msra.mxu0 %v1949
        %1972 = vmatprep.subr.bf16.mxu0 0
        %1973 = vmatpush1.bf16.msra.mxu0 %v1948
        %1974 = vmatprep.subr.bf16.mxu0 0
        %1975 = vmatpush1.bf16.msra.mxu0 %v1947
        %1976 = vmatprep.subr.bf16.mxu0 0
        %1977 = vmatpush1.bf16.msra.mxu0 %v1946
        %1978 = vmatprep.subr.bf16.mxu0 0
        %1979 = vmatpush2.bf16.msra.mxu0 0
        %1980 = vmatprep.subr.bf16.mxu0 0
        %1981 = vmatpush2.bf16.msra.mxu0 0
        %1982 = vmatprep.subr.bf16.mxu0 0
        %1983 = vmatpush2.bf16.msra.mxu0 0
        %1984 = vmatprep.subr.bf16.mxu0 0
        %1985 = vmatpush2.bf16.msra.mxu0 0
        %1986 = vmatprep.subr.bf16.mxu0 0
        %1987 = vmatpush2.bf16.msra.mxu0 0
        %1988 = vmatprep.subr.bf16.mxu0 0
        %1989 = vmatpush2.bf16.msra.mxu0 0
        %1990 = vmatprep.subr.bf16.mxu0 0
        %1991 = vmatpush2.bf16.msra.mxu0 0
        %1992 = vmatprep.subr.bf16.mxu0 0
        %1993 = vmatpush2.bf16.msra.mxu0 0
        %1994 = vmatprep.mubr.bf16.mxu0 0
        %1995 = vmatmul.mubr.bf16.gmra.mxu0 %v1346
        %v1996 = vpop.f32.mrf.mxu0
        %v1997 = vadd.f32 0.0, %v1996
        %v1998 = vpop.f32.mrf.mxu0
        %v1999 = vpop.f32.mrf.mxu0
        %v2000 = vadd.f32 0.0, %v1999
        %v2001 = vpop.f32.mrf.mxu0
        %2002 = vmatprep.mubr.bf16.mxu0 0
        %2003 = vmatmul.mubr.bf16.gmra.mxu0 %v1347
        %v2004 = vpop.f32.mrf.mxu0
        %v2005 = vadd.f32 0.0, %v2004
        %v2006 = vpop.f32.mrf.mxu0
        %v2007 = vpop.f32.mrf.mxu0
        %v2008 = vadd.f32 0.0, %v2007
        %v2009 = vpop.f32.mrf.mxu0
        %2010 = vmatprep.mubr.bf16.mxu0 0
        %2011 = vmatmul.mubr.bf16.gmra.mxu0 %v1348
        %v2012 = vpop.f32.mrf.mxu0
        %v2013 = vadd.f32 0.0, %v2012
        %v2014 = vpop.f32.mrf.mxu0
        %v2015 = vpop.f32.mrf.mxu0
        %v2016 = vadd.f32 0.0, %v2015
        %v2017 = vpop.f32.mrf.mxu0
        %2018 = vdwg.mxu0
        %v2019 = vrot.slane %v1997, 2
        %v2020 = vrot.slane %v2000, 2
        %v2021 = vrot.slane %v2005, 2
        %v2022 = vrot.slane %v2008, 2
        %v2023 = vrot.slane %v2013, 2
        %v2024 = vrot.slane %v2016, 2
        %v2025 = vsel %vm1309, %v2023, %v2024
        %v2026 = vsel %vm1309, %v2022, %v2023
        %v2027 = vsel %vm1309, %v2021, %v2022
        %v2028 = vsel %vm1309, %v2020, %v2021
        %v2029 = vsel %vm1309, %v2019, %v2020
        %v2030 = vsel %vm1309, %v2024, %v2019
        %v2031 = vadd.f32 %v1908, %v2029
        %v2032 = vadd.f32 %v1909, %v2028
        %v2033 = vadd.f32 %v1910, %v2027
        %v2034 = vadd.f32 %v1911, %v2026
        %v2035 = vadd.f32 %v1912, %v2025
        %v2036 = vadd.f32 %v1913, %v2030
        %v2038 = vlaneseq
        %v2039 = vshrl.u32 %v2038, 7
        %v2040 = vsub.s32 0, %v2039
        %v2041 = vrot.slane %v1433, %v2040
        %v2043 = vadd.f32 %v2031, %v2041
        %v2044 = vadd.f32 %v2032, %v2041
        %v2045 = vadd.f32 %v2033, %v2041
        %v2046 = vadd.f32 %v2034, %v2041
        %v2047 = vadd.f32 %v2035, %v2041
        %v2048 = vadd.f32 %v2036, %v2041
        %v2049 = vtanh.pop %v2043
        %v2050 = vtanh.pop %v2044
        %v2051 = vtanh.pop %v2045
        %v2052 = vtanh.pop %v2046
        %v2053 = vtanh.pop %v2047
        %v2054 = vtanh.pop %v2048
        %v2055 = vsel %vm597, %v2049, 0.0
        %v2056 = vsel %vm598, %v2050, 0.0
        %v2057 = vsel %vm599, %v2051, 0.0
        %v2058 = vsel %vm600, %v2052, 0.0
        %v2059 = vsel %vm601, %v2053, 0.0
        %v2060 = vsel %vm602, %v2054, 0.0
        %v2061 = vpack.c.bf16 %v2056, %v2055
        %v2062 = vpack.c.bf16 %v2058, %v2057
        %v2063 = vpack.c.bf16 %v2060, %v2059
        %s2064 = scalar_lea.vmem [#allocation4], 320
        %v2065 = vld [vmem:[%s2064] sm:$0xf]
        %v2066 = vld [vmem:[%s2064 + $0x4] sm:$0xf]
        %v2067 = vld [vmem:[%s2064 + $0x8] sm:$0xf]
        %v2068 = vld [vmem:[%s2064 + $0xc] sm:$0xf]
        %v2069 = vld [vmem:[%s2064 + $0x10] sm:$0xf]
        %v2070 = vld [vmem:[%s2064 + $0x14] sm:$0xf]
        %v2071 = vld [vmem:[%s2064 + $0x18] sm:$0xf]
        %v2072 = vld [vmem:[%s2064 + $0x1c] sm:$0xf]
        %v2073 = vld [vmem:[%s2064 + $0x20] sm:$0xf]
        %v2074 = vld [vmem:[%s2064 + $0x24] sm:$0xf]
        %v2075 = vld [vmem:[%s2064 + $0x28] sm:$0xf]
        %v2076 = vld [vmem:[%s2064 + $0x2c] sm:$0xf]
        %v2077 = vld [vmem:[%s2064 + $0x30] sm:$0xf]
        %v2078 = vld [vmem:[%s2064 + $0x34] sm:$0xf]
        %v2079 = vld [vmem:[%s2064 + $0x38] sm:$0xf]
        %v2080 = vld [vmem:[%s2064 + $0x3c] sm:$0xf]
        %s2081 = scalar_lea.vmem [#allocation4], 384
        %v2082 = vld [vmem:[%s2081] sm:$0xf]
        %v2083 = vld [vmem:[%s2081 + $0x4] sm:$0xf]
        %v2084 = vld [vmem:[%s2081 + $0x8] sm:$0xf]
        %v2085 = vld [vmem:[%s2081 + $0xc] sm:$0xf]
        %v2086 = vld [vmem:[%s2081 + $0x10] sm:$0xf]
        %v2087 = vld [vmem:[%s2081 + $0x14] sm:$0xf]
        %v2088 = vld [vmem:[%s2081 + $0x18] sm:$0xf]
        %v2089 = vld [vmem:[%s2081 + $0x1c] sm:$0xf]
        %v2090 = vld [vmem:[%s2081 + $0x20] sm:$0xf]
        %v2091 = vld [vmem:[%s2081 + $0x24] sm:$0xf]
        %v2092 = vld [vmem:[%s2081 + $0x28] sm:$0xf]
        %v2093 = vld [vmem:[%s2081 + $0x2c] sm:$0xf]
        %v2094 = vld [vmem:[%s2081 + $0x30] sm:$0xf]
        %v2095 = vld [vmem:[%s2081 + $0x34] sm:$0xf]
        %v2096 = vld [vmem:[%s2081 + $0x38] sm:$0xf]
        %v2097 = vld [vmem:[%s2081 + $0x3c] sm:$0xf]
        %s2098 = scalar_lea.vmem [#allocation4], 448
        %v2099 = vld [vmem:[%s2098] sm:$0xf]
        %v2100 = vld [vmem:[%s2098 + $0x4] sm:$0xf]
        %v2101 = vld [vmem:[%s2098 + $0x8] sm:$0xf]
        %v2102 = vld [vmem:[%s2098 + $0xc] sm:$0xf]
        %v2103 = vld [vmem:[%s2098 + $0x10] sm:$0xf]
        %v2104 = vld [vmem:[%s2098 + $0x14] sm:$0xf]
        %v2105 = vld [vmem:[%s2098 + $0x18] sm:$0xf]
        %v2106 = vld [vmem:[%s2098 + $0x1c] sm:$0xf]
        %v2107 = vld [vmem:[%s2098 + $0x20] sm:$0xf]
        %v2108 = vld [vmem:[%s2098 + $0x24] sm:$0xf]
        %v2109 = vld [vmem:[%s2098 + $0x28] sm:$0xf]
        %v2110 = vld [vmem:[%s2098 + $0x2c] sm:$0xf]
        %v2111 = vld [vmem:[%s2098 + $0x30] sm:$0xf]
        %v2112 = vld [vmem:[%s2098 + $0x34] sm:$0xf]
        %v2113 = vld [vmem:[%s2098 + $0x38] sm:$0xf]
        %v2114 = vld [vmem:[%s2098 + $0x3c] sm:$0xf]
        %s2115 = scalar_lea.vmem [#allocation4], 512
        %v2116 = vld [vmem:[%s2115] sm:$0xf]
        %v2117 = vld [vmem:[%s2115 + $0x4] sm:$0xf]
        %v2118 = vld [vmem:[%s2115 + $0x8] sm:$0xf]
        %v2119 = vld [vmem:[%s2115 + $0xc] sm:$0xf]
        %v2120 = vld [vmem:[%s2115 + $0x10] sm:$0xf]
        %v2121 = vld [vmem:[%s2115 + $0x14] sm:$0xf]
        %v2122 = vld [vmem:[%s2115 + $0x18] sm:$0xf]
        %v2123 = vld [vmem:[%s2115 + $0x1c] sm:$0xf]
        %v2124 = vld [vmem:[%s2115 + $0x20] sm:$0xf]
        %v2125 = vld [vmem:[%s2115 + $0x24] sm:$0xf]
        %v2126 = vld [vmem:[%s2115 + $0x28] sm:$0xf]
        %v2127 = vld [vmem:[%s2115 + $0x2c] sm:$0xf]
        %v2128 = vld [vmem:[%s2115 + $0x30] sm:$0xf]
        %v2129 = vld [vmem:[%s2115 + $0x34] sm:$0xf]
        %v2130 = vld [vmem:[%s2115 + $0x38] sm:$0xf]
        %v2131 = vld [vmem:[%s2115 + $0x3c] sm:$0xf]
        %s2132 = scalar_lea.vmem [#allocation4], 576
        %v2133 = vld [vmem:[%s2132] sm:$0xf]
        %v2134 = vld [vmem:[%s2132 + $0x4] sm:$0xf]
        %v2135 = vld [vmem:[%s2132 + $0x8] sm:$0xf]
        %v2136 = vld [vmem:[%s2132 + $0xc] sm:$0xf]
        %v2137 = vld [vmem:[%s2132 + $0x10] sm:$0xf]
        %v2138 = vld [vmem:[%s2132 + $0x14] sm:$0xf]
        %v2139 = vld [vmem:[%s2132 + $0x18] sm:$0xf]
        %v2140 = vld [vmem:[%s2132 + $0x1c] sm:$0xf]
        %v2141 = vld [vmem:[%s2132 + $0x20] sm:$0xf]
        %v2142 = vld [vmem:[%s2132 + $0x24] sm:$0xf]
        %v2143 = vld [vmem:[%s2132 + $0x28] sm:$0xf]
        %v2144 = vld [vmem:[%s2132 + $0x2c] sm:$0xf]
        %v2145 = vld [vmem:[%s2132 + $0x30] sm:$0xf]
        %v2146 = vld [vmem:[%s2132 + $0x34] sm:$0xf]
        %v2147 = vld [vmem:[%s2132 + $0x38] sm:$0xf]
        %v2148 = vld [vmem:[%s2132 + $0x3c] sm:$0xf]
        %s2149 = scalar_lea.vmem %s6, 1
        %v2150 = vld [vmem:[%s2149] sm:$0x1]
        %v2167 = vunpack.c.l.b16 %v2065
        %v2168 = vunpack.c.l.b16 %v2066
        %v2169 = vunpack.c.l.b16 %v2067
        %v2170 = vunpack.c.l.b16 %v2068
        %v2171 = vunpack.c.l.b16 %v2069
        %v2172 = vunpack.c.l.b16 %v2070
        %v2173 = vunpack.c.l.b16 %v2071
        %v2174 = vunpack.c.l.b16 %v2072
        %v2175 = vunpack.c.l.b16 %v2073
        %v2176 = vunpack.c.l.b16 %v2074
        %v2177 = vunpack.c.l.b16 %v2075
        %v2178 = vunpack.c.l.b16 %v2076
        %v2179 = vunpack.c.l.b16 %v2077
        %v2180 = vunpack.c.l.b16 %v2078
        %v2181 = vunpack.c.l.b16 %v2079
        %v2182 = vunpack.c.l.b16 %v2080
        %v2183 = vpack.c.b16 %v2168, %v2167
        %v2184 = vpack.c.b16 %v2170, %v2169
        %v2185 = vpack.c.b16 %v2172, %v2171
        %v2186 = vpack.c.b16 %v2174, %v2173
        %v2187 = vpack.c.b16 %v2176, %v2175
        %v2188 = vpack.c.b16 %v2178, %v2177
        %v2189 = vpack.c.b16 %v2180, %v2179
        %v2190 = vpack.c.b16 %v2182, %v2181
        %2199 = vmatprep.subr.bf16.mxu0 0
        %2200 = vmatpush1.bf16.msra.mxu0 %v2190
        %2201 = vmatprep.subr.bf16.mxu0 0
        %2202 = vmatpush1.bf16.msra.mxu0 %v2189
        %2203 = vmatprep.subr.bf16.mxu0 0
        %2204 = vmatpush1.bf16.msra.mxu0 %v2188
        %2205 = vmatprep.subr.bf16.mxu0 0
        %2206 = vmatpush1.bf16.msra.mxu0 %v2187
        %2207 = vmatprep.subr.bf16.mxu0 0
        %2208 = vmatpush1.bf16.msra.mxu0 %v2186
        %2209 = vmatprep.subr.bf16.mxu0 0
        %2210 = vmatpush1.bf16.msra.mxu0 %v2185
        %2211 = vmatprep.subr.bf16.mxu0 0
        %2212 = vmatpush1.bf16.msra.mxu0 %v2184
        %2213 = vmatprep.subr.bf16.mxu0 0
        %2214 = vmatpush1.bf16.msra.mxu0 %v2183
        %2215 = vmatprep.subr.bf16.mxu0 0
        %2216 = vmatpush2.bf16.msra.mxu0 0
        %2217 = vmatprep.subr.bf16.mxu0 0
        %2218 = vmatpush2.bf16.msra.mxu0 0
        %2219 = vmatprep.subr.bf16.mxu0 0
        %2220 = vmatpush2.bf16.msra.mxu0 0
        %2221 = vmatprep.subr.bf16.mxu0 0
        %2222 = vmatpush2.bf16.msra.mxu0 0
        %2223 = vmatprep.subr.bf16.mxu0 0
        %2224 = vmatpush2.bf16.msra.mxu0 0
        %2225 = vmatprep.subr.bf16.mxu0 0
        %2226 = vmatpush2.bf16.msra.mxu0 0
        %2227 = vmatprep.subr.bf16.mxu0 0
        %2228 = vmatpush2.bf16.msra.mxu0 0
        %2229 = vmatprep.subr.bf16.mxu0 0
        %2230 = vmatpush2.bf16.msra.mxu0 0
        %2231 = vmatprep.mubr.bf16.mxu0 0
        %2232 = vmatmul.mubr.bf16.gmra.mxu0 %v2061
        %v2233 = vpop.f32.mrf.mxu0
        %v2234 = vadd.f32 0.0, %v2233
        %v2235 = vpop.f32.mrf.mxu0
        %v2236 = vpop.f32.mrf.mxu0
        %v2237 = vadd.f32 0.0, %v2236
        %v2238 = vpop.f32.mrf.mxu0
        %2239 = vmatprep.mubr.bf16.mxu0 0
        %2240 = vmatmul.mubr.bf16.gmra.mxu0 %v2062
        %v2241 = vpop.f32.mrf.mxu0
        %v2242 = vadd.f32 0.0, %v2241
        %v2243 = vpop.f32.mrf.mxu0
        %v2244 = vpop.f32.mrf.mxu0
        %v2245 = vadd.f32 0.0, %v2244
        %v2246 = vpop.f32.mrf.mxu0
        %2247 = vmatprep.mubr.bf16.mxu0 0
        %2248 = vmatmul.mubr.bf16.gmra.mxu0 %v2063
        %v2249 = vpop.f32.mrf.mxu0
        %v2250 = vadd.f32 0.0, %v2249
        %v2251 = vpop.f32.mrf.mxu0
        %v2252 = vpop.f32.mrf.mxu0
        %v2253 = vadd.f32 0.0, %v2252
        %v2254 = vpop.f32.mrf.mxu0
        %2255 = vdwg.mxu0
        %v2256 = vrot.slane %v2234, 6
        %v2257 = vrot.slane %v2237, 6
        %v2258 = vrot.slane %v2242, 6
        %v2259 = vrot.slane %v2245, 6
        %v2260 = vrot.slane %v2250, 6
        %v2261 = vrot.slane %v2253, 6
        %v2262 = vsel %vm826, %v2260, %v2261
        %v2263 = vsel %vm826, %v2259, %v2260
        %v2264 = vsel %vm826, %v2258, %v2259
        %v2265 = vsel %vm826, %v2257, %v2258
        %v2266 = vsel %vm826, %v2256, %v2257
        %v2267 = vsel %vm826, %v2261, %v2256
        %v2268 = vadd.f32 %v2267, 0.0
        %v2269 = vadd.f32 %v2266, 0.0
        %v2270 = vadd.f32 %v2265, 0.0
        %v2271 = vadd.f32 %v2264, 0.0
        %v2272 = vadd.f32 %v2263, 0.0
        %v2273 = vadd.f32 %v2262, 0.0
        %v2290 = vunpack.c.l.b16 %v2082
        %v2291 = vunpack.c.l.b16 %v2083
        %v2292 = vunpack.c.l.b16 %v2084
        %v2293 = vunpack.c.l.b16 %v2085
        %v2294 = vunpack.c.l.b16 %v2086
        %v2295 = vunpack.c.l.b16 %v2087
        %v2296 = vunpack.c.l.b16 %v2088
        %v2297 = vunpack.c.l.b16 %v2089
        %v2298 = vunpack.c.l.b16 %v2090
        %v2299 = vunpack.c.l.b16 %v2091
        %v2300 = vunpack.c.l.b16 %v2092
        %v2301 = vunpack.c.l.b16 %v2093
        %v2302 = vunpack.c.l.b16 %v2094
        %v2303 = vunpack.c.l.b16 %v2095
        %v2304 = vunpack.c.l.b16 %v2096
        %v2305 = vunpack.c.l.b16 %v2097
        %v2306 = vpack.c.b16 %v2291, %v2290
        %v2307 = vpack.c.b16 %v2293, %v2292
        %v2308 = vpack.c.b16 %v2295, %v2294
        %v2309 = vpack.c.b16 %v2297, %v2296
        %v2310 = vpack.c.b16 %v2299, %v2298
        %v2311 = vpack.c.b16 %v2301, %v2300
        %v2312 = vpack.c.b16 %v2303, %v2302
        %v2313 = vpack.c.b16 %v2305, %v2304
        %2322 = vmatprep.subr.bf16.mxu0 0
        %2323 = vmatpush1.bf16.msra.mxu0 %v2313
        %2324 = vmatprep.subr.bf16.mxu0 0
        %2325 = vmatpush1.bf16.msra.mxu0 %v2312
        %2326 = vmatprep.subr.bf16.mxu0 0
        %2327 = vmatpush1.bf16.msra.mxu0 %v2311
        %2328 = vmatprep.subr.bf16.mxu0 0
        %2329 = vmatpush1.bf16.msra.mxu0 %v2310
        %2330 = vmatprep.subr.bf16.mxu0 0
        %2331 = vmatpush1.bf16.msra.mxu0 %v2309
        %2332 = vmatprep.subr.bf16.mxu0 0
        %2333 = vmatpush1.bf16.msra.mxu0 %v2308
        %2334 = vmatprep.subr.bf16.mxu0 0
        %2335 = vmatpush1.bf16.msra.mxu0 %v2307
        %2336 = vmatprep.subr.bf16.mxu0 0
        %2337 = vmatpush1.bf16.msra.mxu0 %v2306
        %2338 = vmatprep.subr.bf16.mxu0 0
        %2339 = vmatpush2.bf16.msra.mxu0 0
        %2340 = vmatprep.subr.bf16.mxu0 0
        %2341 = vmatpush2.bf16.msra.mxu0 0
        %2342 = vmatprep.subr.bf16.mxu0 0
        %2343 = vmatpush2.bf16.msra.mxu0 0
        %2344 = vmatprep.subr.bf16.mxu0 0
        %2345 = vmatpush2.bf16.msra.mxu0 0
        %2346 = vmatprep.subr.bf16.mxu0 0
        %2347 = vmatpush2.bf16.msra.mxu0 0
        %2348 = vmatprep.subr.bf16.mxu0 0
        %2349 = vmatpush2.bf16.msra.mxu0 0
        %2350 = vmatprep.subr.bf16.mxu0 0
        %2351 = vmatpush2.bf16.msra.mxu0 0
        %2352 = vmatprep.subr.bf16.mxu0 0
        %2353 = vmatpush2.bf16.msra.mxu0 0
        %2354 = vmatprep.mubr.bf16.mxu0 0
        %2355 = vmatmul.mubr.bf16.gmra.mxu0 %v2061
        %v2356 = vpop.f32.mrf.mxu0
        %v2357 = vadd.f32 0.0, %v2356
        %v2358 = vpop.f32.mrf.mxu0
        %v2359 = vpop.f32.mrf.mxu0
        %v2360 = vadd.f32 0.0, %v2359
        %v2361 = vpop.f32.mrf.mxu0
        %2362 = vmatprep.mubr.bf16.mxu0 0
        %2363 = vmatmul.mubr.bf16.gmra.mxu0 %v2062
        %v2364 = vpop.f32.mrf.mxu0
        %v2365 = vadd.f32 0.0, %v2364
        %v2366 = vpop.f32.mrf.mxu0
        %v2367 = vpop.f32.mrf.mxu0
        %v2368 = vadd.f32 0.0, %v2367
        %v2369 = vpop.f32.mrf.mxu0
        %2370 = vmatprep.mubr.bf16.mxu0 0
        %2371 = vmatmul.mubr.bf16.gmra.mxu0 %v2063
        %v2372 = vpop.f32.mrf.mxu0
        %v2373 = vadd.f32 0.0, %v2372
        %v2374 = vpop.f32.mrf.mxu0
        %v2375 = vpop.f32.mrf.mxu0
        %v2376 = vadd.f32 0.0, %v2375
        %v2377 = vpop.f32.mrf.mxu0
        %2378 = vdwg.mxu0
        %v2379 = vrot.slane %v2357, 7
        %v2380 = vrot.slane %v2360, 7
        %v2381 = vrot.slane %v2365, 7
        %v2382 = vrot.slane %v2368, 7
        %v2383 = vrot.slane %v2373, 7
        %v2384 = vrot.slane %v2376, 7
        %v2385 = vsel %vm950, %v2383, %v2384
        %v2386 = vsel %vm950, %v2382, %v2383
        %v2387 = vsel %vm950, %v2381, %v2382
        %v2388 = vsel %vm950, %v2380, %v2381
        %v2389 = vsel %vm950, %v2379, %v2380
        %v2390 = vsel %vm950, %v2384, %v2379
        %v2391 = vadd.f32 %v2268, %v2390
        %v2392 = vadd.f32 %v2269, %v2389
        %v2393 = vadd.f32 %v2270, %v2388
        %v2394 = vadd.f32 %v2271, %v2387
        %v2395 = vadd.f32 %v2272, %v2386
        %v2396 = vadd.f32 %v2273, %v2385
        %v2413 = vunpack.c.l.b16 %v2099
        %v2414 = vunpack.c.l.b16 %v2100
        %v2415 = vunpack.c.l.b16 %v2101
        %v2416 = vunpack.c.l.b16 %v2102
        %v2417 = vunpack.c.l.b16 %v2103
        %v2418 = vunpack.c.l.b16 %v2104
        %v2419 = vunpack.c.l.b16 %v2105
        %v2420 = vunpack.c.l.b16 %v2106
        %v2421 = vunpack.c.l.b16 %v2107
        %v2422 = vunpack.c.l.b16 %v2108
        %v2423 = vunpack.c.l.b16 %v2109
        %v2424 = vunpack.c.l.b16 %v2110
        %v2425 = vunpack.c.l.b16 %v2111
        %v2426 = vunpack.c.l.b16 %v2112
        %v2427 = vunpack.c.l.b16 %v2113
        %v2428 = vunpack.c.l.b16 %v2114
        %v2429 = vpack.c.b16 %v2414, %v2413
        %v2430 = vpack.c.b16 %v2416, %v2415
        %v2431 = vpack.c.b16 %v2418, %v2417
        %v2432 = vpack.c.b16 %v2420, %v2419
        %v2433 = vpack.c.b16 %v2422, %v2421
        %v2434 = vpack.c.b16 %v2424, %v2423
        %v2435 = vpack.c.b16 %v2426, %v2425
        %v2436 = vpack.c.b16 %v2428, %v2427
        %2445 = vmatprep.subr.bf16.mxu0 0
        %2446 = vmatpush1.bf16.msra.mxu0 %v2436
        %2447 = vmatprep.subr.bf16.mxu0 0
        %2448 = vmatpush1.bf16.msra.mxu0 %v2435
        %2449 = vmatprep.subr.bf16.mxu0 0
        %2450 = vmatpush1.bf16.msra.mxu0 %v2434
        %2451 = vmatprep.subr.bf16.mxu0 0
        %2452 = vmatpush1.bf16.msra.mxu0 %v2433
        %2453 = vmatprep.subr.bf16.mxu0 0
        %2454 = vmatpush1.bf16.msra.mxu0 %v2432
        %2455 = vmatprep.subr.bf16.mxu0 0
        %2456 = vmatpush1.bf16.msra.mxu0 %v2431
        %2457 = vmatprep.subr.bf16.mxu0 0
        %2458 = vmatpush1.bf16.msra.mxu0 %v2430
        %2459 = vmatprep.subr.bf16.mxu0 0
        %2460 = vmatpush1.bf16.msra.mxu0 %v2429
        %2461 = vmatprep.subr.bf16.mxu0 0
        %2462 = vmatpush2.bf16.msra.mxu0 0
        %2463 = vmatprep.subr.bf16.mxu0 0
        %2464 = vmatpush2.bf16.msra.mxu0 0
        %2465 = vmatprep.subr.bf16.mxu0 0
        %2466 = vmatpush2.bf16.msra.mxu0 0
        %2467 = vmatprep.subr.bf16.mxu0 0
        %2468 = vmatpush2.bf16.msra.mxu0 0
        %2469 = vmatprep.subr.bf16.mxu0 0
        %2470 = vmatpush2.bf16.msra.mxu0 0
        %2471 = vmatprep.subr.bf16.mxu0 0
        %2472 = vmatpush2.bf16.msra.mxu0 0
        %2473 = vmatprep.subr.bf16.mxu0 0
        %2474 = vmatpush2.bf16.msra.mxu0 0
        %2475 = vmatprep.subr.bf16.mxu0 0
        %2476 = vmatpush2.bf16.msra.mxu0 0
        %2477 = vmatprep.mubr.bf16.mxu0 0
        %2478 = vmatmul.mubr.bf16.gmra.mxu0 %v2061
        %v2479 = vpop.f32.mrf.mxu0
        %v2480 = vadd.f32 0.0, %v2479
        %v2481 = vpop.f32.mrf.mxu0
        %v2482 = vpop.f32.mrf.mxu0
        %v2483 = vadd.f32 0.0, %v2482
        %v2484 = vpop.f32.mrf.mxu0
        %2485 = vmatprep.mubr.bf16.mxu0 0
        %2486 = vmatmul.mubr.bf16.gmra.mxu0 %v2062
        %v2487 = vpop.f32.mrf.mxu0
        %v2488 = vadd.f32 0.0, %v2487
        %v2489 = vpop.f32.mrf.mxu0
        %v2490 = vpop.f32.mrf.mxu0
        %v2491 = vadd.f32 0.0, %v2490
        %v2492 = vpop.f32.mrf.mxu0
        %2493 = vmatprep.mubr.bf16.mxu0 0
        %2494 = vmatmul.mubr.bf16.gmra.mxu0 %v2063
        %v2495 = vpop.f32.mrf.mxu0
        %v2496 = vadd.f32 0.0, %v2495
        %v2497 = vpop.f32.mrf.mxu0
        %v2498 = vpop.f32.mrf.mxu0
        %v2499 = vadd.f32 0.0, %v2498
        %v2500 = vpop.f32.mrf.mxu0
        %2501 = vdwg.mxu0
        %v2502 = vadd.f32 %v2391, %v2480
        %v2503 = vadd.f32 %v2392, %v2483
        %v2504 = vadd.f32 %v2393, %v2488
        %v2505 = vadd.f32 %v2394, %v2491
        %v2506 = vadd.f32 %v2395, %v2496
        %v2507 = vadd.f32 %v2396, %v2499
        %v2524 = vunpack.c.l.b16 %v2116
        %v2525 = vunpack.c.l.b16 %v2117
        %v2526 = vunpack.c.l.b16 %v2118
        %v2527 = vunpack.c.l.b16 %v2119
        %v2528 = vunpack.c.l.b16 %v2120
        %v2529 = vunpack.c.l.b16 %v2121
        %v2530 = vunpack.c.l.b16 %v2122
        %v2531 = vunpack.c.l.b16 %v2123
        %v2532 = vunpack.c.l.b16 %v2124
        %v2533 = vunpack.c.l.b16 %v2125
        %v2534 = vunpack.c.l.b16 %v2126
        %v2535 = vunpack.c.l.b16 %v2127
        %v2536 = vunpack.c.l.b16 %v2128
        %v2537 = vunpack.c.l.b16 %v2129
        %v2538 = vunpack.c.l.b16 %v2130
        %v2539 = vunpack.c.l.b16 %v2131
        %v2540 = vpack.c.b16 %v2525, %v2524
        %v2541 = vpack.c.b16 %v2527, %v2526
        %v2542 = vpack.c.b16 %v2529, %v2528
        %v2543 = vpack.c.b16 %v2531, %v2530
        %v2544 = vpack.c.b16 %v2533, %v2532
        %v2545 = vpack.c.b16 %v2535, %v2534
        %v2546 = vpack.c.b16 %v2537, %v2536
        %v2547 = vpack.c.b16 %v2539, %v2538
        %2556 = vmatprep.subr.bf16.mxu0 0
        %2557 = vmatpush1.bf16.msra.mxu0 %v2547
        %2558 = vmatprep.subr.bf16.mxu0 0
        %2559 = vmatpush1.bf16.msra.mxu0 %v2546
        %2560 = vmatprep.subr.bf16.mxu0 0
        %2561 = vmatpush1.bf16.msra.mxu0 %v2545
        %2562 = vmatprep.subr.bf16.mxu0 0
        %2563 = vmatpush1.bf16.msra.mxu0 %v2544
        %2564 = vmatprep.subr.bf16.mxu0 0
        %2565 = vmatpush1.bf16.msra.mxu0 %v2543
        %2566 = vmatprep.subr.bf16.mxu0 0
        %2567 = vmatpush1.bf16.msra.mxu0 %v2542
        %2568 = vmatprep.subr.bf16.mxu0 0
        %2569 = vmatpush1.bf16.msra.mxu0 %v2541
        %2570 = vmatprep.subr.bf16.mxu0 0
        %2571 = vmatpush1.bf16.msra.mxu0 %v2540
        %2572 = vmatprep.subr.bf16.mxu0 0
        %2573 = vmatpush2.bf16.msra.mxu0 0
        %2574 = vmatprep.subr.bf16.mxu0 0
        %2575 = vmatpush2.bf16.msra.mxu0 0
        %2576 = vmatprep.subr.bf16.mxu0 0
        %2577 = vmatpush2.bf16.msra.mxu0 0
        %2578 = vmatprep.subr.bf16.mxu0 0
        %2579 = vmatpush2.bf16.msra.mxu0 0
        %2580 = vmatprep.subr.bf16.mxu0 0
        %2581 = vmatpush2.bf16.msra.mxu0 0
        %2582 = vmatprep.subr.bf16.mxu0 0
        %2583 = vmatpush2.bf16.msra.mxu0 0
        %2584 = vmatprep.subr.bf16.mxu0 0
        %2585 = vmatpush2.bf16.msra.mxu0 0
        %2586 = vmatprep.subr.bf16.mxu0 0
        %2587 = vmatpush2.bf16.msra.mxu0 0
        %2588 = vmatprep.mubr.bf16.mxu0 0
        %2589 = vmatmul.mubr.bf16.gmra.mxu0 %v2061
        %v2590 = vpop.f32.mrf.mxu0
        %v2591 = vadd.f32 0.0, %v2590
        %v2592 = vpop.f32.mrf.mxu0
        %v2593 = vpop.f32.mrf.mxu0
        %v2594 = vadd.f32 0.0, %v2593
        %v2595 = vpop.f32.mrf.mxu0
        %2596 = vmatprep.mubr.bf16.mxu0 0
        %2597 = vmatmul.mubr.bf16.gmra.mxu0 %v2062
        %v2598 = vpop.f32.mrf.mxu0
        %v2599 = vadd.f32 0.0, %v2598
        %v2600 = vpop.f32.mrf.mxu0
        %v2601 = vpop.f32.mrf.mxu0
        %v2602 = vadd.f32 0.0, %v2601
        %v2603 = vpop.f32.mrf.mxu0
        %2604 = vmatprep.mubr.bf16.mxu0 0
        %2605 = vmatmul.mubr.bf16.gmra.mxu0 %v2063
        %v2606 = vpop.f32.mrf.mxu0
        %v2607 = vadd.f32 0.0, %v2606
        %v2608 = vpop.f32.mrf.mxu0
        %v2609 = vpop.f32.mrf.mxu0
        %v2610 = vadd.f32 0.0, %v2609
        %v2611 = vpop.f32.mrf.mxu0
        %2612 = vdwg.mxu0
        %v2613 = vrot.slane %v2591, 1
        %v2614 = vrot.slane %v2594, 1
        %v2615 = vrot.slane %v2599, 1
        %v2616 = vrot.slane %v2602, 1
        %v2617 = vrot.slane %v2607, 1
        %v2618 = vrot.slane %v2610, 1
        %v2619 = vsel %vm1185, %v2617, %v2618
        %v2620 = vsel %vm1185, %v2616, %v2617
        %v2621 = vsel %vm1185, %v2615, %v2616
        %v2622 = vsel %vm1185, %v2614, %v2615
        %v2623 = vsel %vm1185, %v2613, %v2614
        %v2624 = vsel %vm1185, %v2618, %v2613
        %v2625 = vadd.f32 %v2502, %v2623
        %v2626 = vadd.f32 %v2503, %v2622
        %v2627 = vadd.f32 %v2504, %v2621
        %v2628 = vadd.f32 %v2505, %v2620
        %v2629 = vadd.f32 %v2506, %v2619
        %v2630 = vadd.f32 %v2507, %v2624
        %v2647 = vunpack.c.l.b16 %v2133
        %v2648 = vunpack.c.l.b16 %v2134
        %v2649 = vunpack.c.l.b16 %v2135
        %v2650 = vunpack.c.l.b16 %v2136
        %v2651 = vunpack.c.l.b16 %v2137
        %v2652 = vunpack.c.l.b16 %v2138
        %v2653 = vunpack.c.l.b16 %v2139
        %v2654 = vunpack.c.l.b16 %v2140
        %v2655 = vunpack.c.l.b16 %v2141
        %v2656 = vunpack.c.l.b16 %v2142
        %v2657 = vunpack.c.l.b16 %v2143
        %v2658 = vunpack.c.l.b16 %v2144
        %v2659 = vunpack.c.l.b16 %v2145
        %v2660 = vunpack.c.l.b16 %v2146
        %v2661 = vunpack.c.l.b16 %v2147
        %v2662 = vunpack.c.l.b16 %v2148
        %v2663 = vpack.c.b16 %v2648, %v2647
        %v2664 = vpack.c.b16 %v2650, %v2649
        %v2665 = vpack.c.b16 %v2652, %v2651
        %v2666 = vpack.c.b16 %v2654, %v2653
        %v2667 = vpack.c.b16 %v2656, %v2655
        %v2668 = vpack.c.b16 %v2658, %v2657
        %v2669 = vpack.c.b16 %v2660, %v2659
        %v2670 = vpack.c.b16 %v2662, %v2661
        %2679 = vmatprep.subr.bf16.mxu0 0
        %2680 = vmatpush1.bf16.msra.mxu0 %v2670
        %2681 = vmatprep.subr.bf16.mxu0 0
        %2682 = vmatpush1.bf16.msra.mxu0 %v2669
        %2683 = vmatprep.subr.bf16.mxu0 0
        %2684 = vmatpush1.bf16.msra.mxu0 %v2668
        %2685 = vmatprep.subr.bf16.mxu0 0
        %2686 = vmatpush1.bf16.msra.mxu0 %v2667
        %2687 = vmatprep.subr.bf16.mxu0 0
        %2688 = vmatpush1.bf16.msra.mxu0 %v2666
        %2689 = vmatprep.subr.bf16.mxu0 0
        %2690 = vmatpush1.bf16.msra.mxu0 %v2665
        %2691 = vmatprep.subr.bf16.mxu0 0
        %2692 = vmatpush1.bf16.msra.mxu0 %v2664
        %2693 = vmatprep.subr.bf16.mxu0 0
        %2694 = vmatpush1.bf16.msra.mxu0 %v2663
        %2695 = vmatprep.subr.bf16.mxu0 0
        %2696 = vmatpush2.bf16.msra.mxu0 0
        %2697 = vmatprep.subr.bf16.mxu0 0
        %2698 = vmatpush2.bf16.msra.mxu0 0
        %2699 = vmatprep.subr.bf16.mxu0 0
        %2700 = vmatpush2.bf16.msra.mxu0 0
        %2701 = vmatprep.subr.bf16.mxu0 0
        %2702 = vmatpush2.bf16.msra.mxu0 0
        %2703 = vmatprep.subr.bf16.mxu0 0
        %2704 = vmatpush2.bf16.msra.mxu0 0
        %2705 = vmatprep.subr.bf16.mxu0 0
        %2706 = vmatpush2.bf16.msra.mxu0 0
        %2707 = vmatprep.subr.bf16.mxu0 0
        %2708 = vmatpush2.bf16.msra.mxu0 0
        %2709 = vmatprep.subr.bf16.mxu0 0
        %2710 = vmatpush2.bf16.msra.mxu0 0
        %2711 = vmatprep.mubr.bf16.mxu0 0
        %2712 = vmatmul.mubr.bf16.gmra.mxu0 %v2061
        %v2713 = vpop.f32.mrf.mxu0
        %v2714 = vadd.f32 0.0, %v2713
        %v2715 = vpop.f32.mrf.mxu0
        %v2716 = vpop.f32.mrf.mxu0
        %v2717 = vadd.f32 0.0, %v2716
        %v2718 = vpop.f32.mrf.mxu0
        %2719 = vmatprep.mubr.bf16.mxu0 0
        %2720 = vmatmul.mubr.bf16.gmra.mxu0 %v2062
        %v2721 = vpop.f32.mrf.mxu0
        %v2722 = vadd.f32 0.0, %v2721
        %v2723 = vpop.f32.mrf.mxu0
        %v2724 = vpop.f32.mrf.mxu0
        %v2725 = vadd.f32 0.0, %v2724
        %v2726 = vpop.f32.mrf.mxu0
        %2727 = vmatprep.mubr.bf16.mxu0 0
        %2728 = vmatmul.mubr.bf16.gmra.mxu0 %v2063
        %v2729 = vpop.f32.mrf.mxu0
        %v2730 = vadd.f32 0.0, %v2729
        %v2731 = vpop.f32.mrf.mxu0
        %v2732 = vpop.f32.mrf.mxu0
        %v2733 = vadd.f32 0.0, %v2732
        %v2734 = vpop.f32.mrf.mxu0
        %2735 = vdwg.mxu0
        %v2736 = vrot.slane %v2714, 2
        %v2737 = vrot.slane %v2717, 2
        %v2738 = vrot.slane %v2722, 2
        %v2739 = vrot.slane %v2725, 2
        %v2740 = vrot.slane %v2730, 2
        %v2741 = vrot.slane %v2733, 2
        %v2742 = vsel %vm1309, %v2740, %v2741
        %v2743 = vsel %vm1309, %v2739, %v2740
        %v2744 = vsel %vm1309, %v2738, %v2739
        %v2745 = vsel %vm1309, %v2737, %v2738
        %v2746 = vsel %vm1309, %v2736, %v2737
        %v2747 = vsel %vm1309, %v2741, %v2736
        %v2748 = vadd.f32 %v2625, %v2746
        %v2749 = vadd.f32 %v2626, %v2745
        %v2750 = vadd.f32 %v2627, %v2744
        %v2751 = vadd.f32 %v2628, %v2743
        %v2752 = vadd.f32 %v2629, %v2742
        %v2753 = vadd.f32 %v2630, %v2747
        %v2755 = vlaneseq
        %v2756 = vshrl.u32 %v2755, 7
        %v2757 = vsub.s32 0, %v2756
        %v2758 = vrot.slane %v2150, %v2757
        %v2760 = vadd.f32 %v2748, %v2758
        %v2761 = vadd.f32 %v2749, %v2758
        %v2762 = vadd.f32 %v2750, %v2758
        %v2763 = vadd.f32 %v2751, %v2758
        %v2764 = vadd.f32 %v2752, %v2758
        %v2765 = vadd.f32 %v2753, %v2758
        %v2766 = vtanh.pop %v2760
        %v2767 = vtanh.pop %v2761
        %v2768 = vtanh.pop %v2762
        %v2769 = vtanh.pop %v2763
        %v2770 = vtanh.pop %v2764
        %v2771 = vtanh.pop %v2765
        %v2772 = vsel %vm597, %v2766, 0.0
        %v2773 = vsel %vm598, %v2767, 0.0
        %v2774 = vsel %vm599, %v2768, 0.0
        %v2775 = vsel %vm600, %v2769, 0.0
        %v2776 = vsel %vm601, %v2770, 0.0
        %v2777 = vsel %vm602, %v2771, 0.0
        %v2778 = vpack.c.bf16 %v2773, %v2772
        %v2779 = vpack.c.bf16 %v2775, %v2774
        %v2780 = vpack.c.bf16 %v2777, %v2776
        %s2781 = scalar_lea.vmem [#allocation4], 640
        %v2782 = vld [vmem:[%s2781] sm:$0xf]
        %v2783 = vld [vmem:[%s2781 + $0x4] sm:$0xf]
        %v2784 = vld [vmem:[%s2781 + $0x8] sm:$0xf]
        %v2785 = vld [vmem:[%s2781 + $0xc] sm:$0xf]
        %v2786 = vld [vmem:[%s2781 + $0x10] sm:$0xf]
        %v2787 = vld [vmem:[%s2781 + $0x14] sm:$0xf]
        %v2788 = vld [vmem:[%s2781 + $0x18] sm:$0xf]
        %v2789 = vld [vmem:[%s2781 + $0x1c] sm:$0xf]
        %v2790 = vld [vmem:[%s2781 + $0x20] sm:$0xf]
        %v2791 = vld [vmem:[%s2781 + $0x24] sm:$0xf]
        %v2792 = vld [vmem:[%s2781 + $0x28] sm:$0xf]
        %v2793 = vld [vmem:[%s2781 + $0x2c] sm:$0xf]
        %v2794 = vld [vmem:[%s2781 + $0x30] sm:$0xf]
        %v2795 = vld [vmem:[%s2781 + $0x34] sm:$0xf]
        %v2796 = vld [vmem:[%s2781 + $0x38] sm:$0xf]
        %v2797 = vld [vmem:[%s2781 + $0x3c] sm:$0xf]
        %s2798 = scalar_lea.vmem [#allocation4], 704
        %v2799 = vld [vmem:[%s2798] sm:$0xf]
        %v2800 = vld [vmem:[%s2798 + $0x4] sm:$0xf]
        %v2801 = vld [vmem:[%s2798 + $0x8] sm:$0xf]
        %v2802 = vld [vmem:[%s2798 + $0xc] sm:$0xf]
        %v2803 = vld [vmem:[%s2798 + $0x10] sm:$0xf]
        %v2804 = vld [vmem:[%s2798 + $0x14] sm:$0xf]
        %v2805 = vld [vmem:[%s2798 + $0x18] sm:$0xf]
        %v2806 = vld [vmem:[%s2798 + $0x1c] sm:$0xf]
        %v2807 = vld [vmem:[%s2798 + $0x20] sm:$0xf]
        %v2808 = vld [vmem:[%s2798 + $0x24] sm:$0xf]
        %v2809 = vld [vmem:[%s2798 + $0x28] sm:$0xf]
        %v2810 = vld [vmem:[%s2798 + $0x2c] sm:$0xf]
        %v2811 = vld [vmem:[%s2798 + $0x30] sm:$0xf]
        %v2812 = vld [vmem:[%s2798 + $0x34] sm:$0xf]
        %v2813 = vld [vmem:[%s2798 + $0x38] sm:$0xf]
        %v2814 = vld [vmem:[%s2798 + $0x3c] sm:$0xf]
        %s2815 = scalar_lea.vmem [#allocation4], 768
        %v2816 = vld [vmem:[%s2815] sm:$0xf]
        %v2817 = vld [vmem:[%s2815 + $0x4] sm:$0xf]
        %v2818 = vld [vmem:[%s2815 + $0x8] sm:$0xf]
        %v2819 = vld [vmem:[%s2815 + $0xc] sm:$0xf]
        %v2820 = vld [vmem:[%s2815 + $0x10] sm:$0xf]
        %v2821 = vld [vmem:[%s2815 + $0x14] sm:$0xf]
        %v2822 = vld [vmem:[%s2815 + $0x18] sm:$0xf]
        %v2823 = vld [vmem:[%s2815 + $0x1c] sm:$0xf]
        %v2824 = vld [vmem:[%s2815 + $0x20] sm:$0xf]
        %v2825 = vld [vmem:[%s2815 + $0x24] sm:$0xf]
        %v2826 = vld [vmem:[%s2815 + $0x28] sm:$0xf]
        %v2827 = vld [vmem:[%s2815 + $0x2c] sm:$0xf]
        %v2828 = vld [vmem:[%s2815 + $0x30] sm:$0xf]
        %v2829 = vld [vmem:[%s2815 + $0x34] sm:$0xf]
        %v2830 = vld [vmem:[%s2815 + $0x38] sm:$0xf]
        %v2831 = vld [vmem:[%s2815 + $0x3c] sm:$0xf]
        %s2832 = scalar_lea.vmem [#allocation4], 832
        %v2833 = vld [vmem:[%s2832] sm:$0xf]
        %v2834 = vld [vmem:[%s2832 + $0x4] sm:$0xf]
        %v2835 = vld [vmem:[%s2832 + $0x8] sm:$0xf]
        %v2836 = vld [vmem:[%s2832 + $0xc] sm:$0xf]
        %v2837 = vld [vmem:[%s2832 + $0x10] sm:$0xf]
        %v2838 = vld [vmem:[%s2832 + $0x14] sm:$0xf]
        %v2839 = vld [vmem:[%s2832 + $0x18] sm:$0xf]
        %v2840 = vld [vmem:[%s2832 + $0x1c] sm:$0xf]
        %v2841 = vld [vmem:[%s2832 + $0x20] sm:$0xf]
        %v2842 = vld [vmem:[%s2832 + $0x24] sm:$0xf]
        %v2843 = vld [vmem:[%s2832 + $0x28] sm:$0xf]
        %v2844 = vld [vmem:[%s2832 + $0x2c] sm:$0xf]
        %v2845 = vld [vmem:[%s2832 + $0x30] sm:$0xf]
        %v2846 = vld [vmem:[%s2832 + $0x34] sm:$0xf]
        %v2847 = vld [vmem:[%s2832 + $0x38] sm:$0xf]
        %v2848 = vld [vmem:[%s2832 + $0x3c] sm:$0xf]
        %s2849 = scalar_lea.vmem [#allocation4], 896
        %v2850 = vld [vmem:[%s2849] sm:$0xf]
        %v2851 = vld [vmem:[%s2849 + $0x4] sm:$0xf]
        %v2852 = vld [vmem:[%s2849 + $0x8] sm:$0xf]
        %v2853 = vld [vmem:[%s2849 + $0xc] sm:$0xf]
        %v2854 = vld [vmem:[%s2849 + $0x10] sm:$0xf]
        %v2855 = vld [vmem:[%s2849 + $0x14] sm:$0xf]
        %v2856 = vld [vmem:[%s2849 + $0x18] sm:$0xf]
        %v2857 = vld [vmem:[%s2849 + $0x1c] sm:$0xf]
        %v2858 = vld [vmem:[%s2849 + $0x20] sm:$0xf]
        %v2859 = vld [vmem:[%s2849 + $0x24] sm:$0xf]
        %v2860 = vld [vmem:[%s2849 + $0x28] sm:$0xf]
        %v2861 = vld [vmem:[%s2849 + $0x2c] sm:$0xf]
        %v2862 = vld [vmem:[%s2849 + $0x30] sm:$0xf]
        %v2863 = vld [vmem:[%s2849 + $0x34] sm:$0xf]
        %v2864 = vld [vmem:[%s2849 + $0x38] sm:$0xf]
        %v2865 = vld [vmem:[%s2849 + $0x3c] sm:$0xf]
        %s2866 = scalar_lea.vmem %s6, 2
        %v2867 = vld [vmem:[%s2866] sm:$0x1]
        %v2884 = vunpack.c.l.b16 %v2782
        %v2885 = vunpack.c.l.b16 %v2783
        %v2886 = vunpack.c.l.b16 %v2784
        %v2887 = vunpack.c.l.b16 %v2785
        %v2888 = vunpack.c.l.b16 %v2786
        %v2889 = vunpack.c.l.b16 %v2787
        %v2890 = vunpack.c.l.b16 %v2788
        %v2891 = vunpack.c.l.b16 %v2789
        %v2892 = vunpack.c.l.b16 %v2790
        %v2893 = vunpack.c.l.b16 %v2791
        %v2894 = vunpack.c.l.b16 %v2792
        %v2895 = vunpack.c.l.b16 %v2793
        %v2896 = vunpack.c.l.b16 %v2794
        %v2897 = vunpack.c.l.b16 %v2795
        %v2898 = vunpack.c.l.b16 %v2796
        %v2899 = vunpack.c.l.b16 %v2797
        %v2900 = vpack.c.b16 %v2885, %v2884
        %v2901 = vpack.c.b16 %v2887, %v2886
        %v2902 = vpack.c.b16 %v2889, %v2888
        %v2903 = vpack.c.b16 %v2891, %v2890
        %v2904 = vpack.c.b16 %v2893, %v2892
        %v2905 = vpack.c.b16 %v2895, %v2894
        %v2906 = vpack.c.b16 %v2897, %v2896
        %v2907 = vpack.c.b16 %v2899, %v2898
        %2916 = vmatprep.subr.bf16.mxu0 0
        %2917 = vmatpush1.bf16.msra.mxu0 %v2907
        %2918 = vmatprep.subr.bf16.mxu0 0
        %2919 = vmatpush1.bf16.msra.mxu0 %v2906
        %2920 = vmatprep.subr.bf16.mxu0 0
        %2921 = vmatpush1.bf16.msra.mxu0 %v2905
        %2922 = vmatprep.subr.bf16.mxu0 0
        %2923 = vmatpush1.bf16.msra.mxu0 %v2904
        %2924 = vmatprep.subr.bf16.mxu0 0
        %2925 = vmatpush1.bf16.msra.mxu0 %v2903
        %2926 = vmatprep.subr.bf16.mxu0 0
        %2927 = vmatpush1.bf16.msra.mxu0 %v2902
        %2928 = vmatprep.subr.bf16.mxu0 0
        %2929 = vmatpush1.bf16.msra.mxu0 %v2901
        %2930 = vmatprep.subr.bf16.mxu0 0
        %2931 = vmatpush1.bf16.msra.mxu0 %v2900
        %2932 = vmatprep.subr.bf16.mxu0 0
        %2933 = vmatpush2.bf16.msra.mxu0 0
        %2934 = vmatprep.subr.bf16.mxu0 0
        %2935 = vmatpush2.bf16.msra.mxu0 0
        %2936 = vmatprep.subr.bf16.mxu0 0
        %2937 = vmatpush2.bf16.msra.mxu0 0
        %2938 = vmatprep.subr.bf16.mxu0 0
        %2939 = vmatpush2.bf16.msra.mxu0 0
        %2940 = vmatprep.subr.bf16.mxu0 0
        %2941 = vmatpush2.bf16.msra.mxu0 0
        %2942 = vmatprep.subr.bf16.mxu0 0
        %2943 = vmatpush2.bf16.msra.mxu0 0
        %2944 = vmatprep.subr.bf16.mxu0 0
        %2945 = vmatpush2.bf16.msra.mxu0 0
        %2946 = vmatprep.subr.bf16.mxu0 0
        %2947 = vmatpush2.bf16.msra.mxu0 0
        %2948 = vmatprep.mubr.bf16.mxu0 0
        %2949 = vmatmul.mubr.bf16.gmra.mxu0 %v2778
        %v2950 = vpop.f32.mrf.mxu0
        %v2951 = vadd.f32 0.0, %v2950
        %v2952 = vpop.f32.mrf.mxu0
        %v2953 = vpop.f32.mrf.mxu0
        %v2954 = vadd.f32 0.0, %v2953
        %v2955 = vpop.f32.mrf.mxu0
        %2956 = vmatprep.mubr.bf16.mxu0 0
        %2957 = vmatmul.mubr.bf16.gmra.mxu0 %v2779
        %v2958 = vpop.f32.mrf.mxu0
        %v2959 = vadd.f32 0.0, %v2958
        %v2960 = vpop.f32.mrf.mxu0
        %v2961 = vpop.f32.mrf.mxu0
        %v2962 = vadd.f32 0.0, %v2961
        %v2963 = vpop.f32.mrf.mxu0
        %2964 = vmatprep.mubr.bf16.mxu0 0
        %2965 = vmatmul.mubr.bf16.gmra.mxu0 %v2780
        %v2966 = vpop.f32.mrf.mxu0
        %v2967 = vadd.f32 0.0, %v2966
        %v2968 = vpop.f32.mrf.mxu0
        %v2969 = vpop.f32.mrf.mxu0
        %v2970 = vadd.f32 0.0, %v2969
        %v2971 = vpop.f32.mrf.mxu0
        %2972 = vdwg.mxu0
        %v2973 = vrot.slane %v2951, 6
        %v2974 = vrot.slane %v2954, 6
        %v2975 = vrot.slane %v2959, 6
        %v2976 = vrot.slane %v2962, 6
        %v2977 = vrot.slane %v2967, 6
        %v2978 = vrot.slane %v2970, 6
        %v2979 = vsel %vm826, %v2977, %v2978
        %v2980 = vsel %vm826, %v2976, %v2977
        %v2981 = vsel %vm826, %v2975, %v2976
        %v2982 = vsel %vm826, %v2974, %v2975
        %v2983 = vsel %vm826, %v2973, %v2974
        %v2984 = vsel %vm826, %v2978, %v2973
        %v2985 = vadd.f32 %v2984, 0.0
        %v2986 = vadd.f32 %v2983, 0.0
        %v2987 = vadd.f32 %v2982, 0.0
        %v2988 = vadd.f32 %v2981, 0.0
        %v2989 = vadd.f32 %v2980, 0.0
        %v2990 = vadd.f32 %v2979, 0.0
        %v3007 = vunpack.c.l.b16 %v2799
        %v3008 = vunpack.c.l.b16 %v2800
        %v3009 = vunpack.c.l.b16 %v2801
        %v3010 = vunpack.c.l.b16 %v2802
        %v3011 = vunpack.c.l.b16 %v2803
        %v3012 = vunpack.c.l.b16 %v2804
        %v3013 = vunpack.c.l.b16 %v2805
        %v3014 = vunpack.c.l.b16 %v2806
        %v3015 = vunpack.c.l.b16 %v2807
        %v3016 = vunpack.c.l.b16 %v2808
        %v3017 = vunpack.c.l.b16 %v2809
        %v3018 = vunpack.c.l.b16 %v2810
        %v3019 = vunpack.c.l.b16 %v2811
        %v3020 = vunpack.c.l.b16 %v2812
        %v3021 = vunpack.c.l.b16 %v2813
        %v3022 = vunpack.c.l.b16 %v2814
        %v3023 = vpack.c.b16 %v3008, %v3007
        %v3024 = vpack.c.b16 %v3010, %v3009
        %v3025 = vpack.c.b16 %v3012, %v3011
        %v3026 = vpack.c.b16 %v3014, %v3013
        %v3027 = vpack.c.b16 %v3016, %v3015
        %v3028 = vpack.c.b16 %v3018, %v3017
        %v3029 = vpack.c.b16 %v3020, %v3019
        %v3030 = vpack.c.b16 %v3022, %v3021
        %3039 = vmatprep.subr.bf16.mxu0 0
        %3040 = vmatpush1.bf16.msra.mxu0 %v3030
        %3041 = vmatprep.subr.bf16.mxu0 0
        %3042 = vmatpush1.bf16.msra.mxu0 %v3029
        %3043 = vmatprep.subr.bf16.mxu0 0
        %3044 = vmatpush1.bf16.msra.mxu0 %v3028
        %3045 = vmatprep.subr.bf16.mxu0 0
        %3046 = vmatpush1.bf16.msra.mxu0 %v3027
        %3047 = vmatprep.subr.bf16.mxu0 0
        %3048 = vmatpush1.bf16.msra.mxu0 %v3026
        %3049 = vmatprep.subr.bf16.mxu0 0
        %3050 = vmatpush1.bf16.msra.mxu0 %v3025
        %3051 = vmatprep.subr.bf16.mxu0 0
        %3052 = vmatpush1.bf16.msra.mxu0 %v3024
        %3053 = vmatprep.subr.bf16.mxu0 0
        %3054 = vmatpush1.bf16.msra.mxu0 %v3023
        %3055 = vmatprep.subr.bf16.mxu0 0
        %3056 = vmatpush2.bf16.msra.mxu0 0
        %3057 = vmatprep.subr.bf16.mxu0 0
        %3058 = vmatpush2.bf16.msra.mxu0 0
        %3059 = vmatprep.subr.bf16.mxu0 0
        %3060 = vmatpush2.bf16.msra.mxu0 0
        %3061 = vmatprep.subr.bf16.mxu0 0
        %3062 = vmatpush2.bf16.msra.mxu0 0
        %3063 = vmatprep.subr.bf16.mxu0 0
        %3064 = vmatpush2.bf16.msra.mxu0 0
        %3065 = vmatprep.subr.bf16.mxu0 0
        %3066 = vmatpush2.bf16.msra.mxu0 0
        %3067 = vmatprep.subr.bf16.mxu0 0
        %3068 = vmatpush2.bf16.msra.mxu0 0
        %3069 = vmatprep.subr.bf16.mxu0 0
        %3070 = vmatpush2.bf16.msra.mxu0 0
        %3071 = vmatprep.mubr.bf16.mxu0 0
        %3072 = vmatmul.mubr.bf16.gmra.mxu0 %v2778
        %v3073 = vpop.f32.mrf.mxu0
        %v3074 = vadd.f32 0.0, %v3073
        %v3075 = vpop.f32.mrf.mxu0
        %v3076 = vpop.f32.mrf.mxu0
        %v3077 = vadd.f32 0.0, %v3076
        %v3078 = vpop.f32.mrf.mxu0
        %3079 = vmatprep.mubr.bf16.mxu0 0
        %3080 = vmatmul.mubr.bf16.gmra.mxu0 %v2779
        %v3081 = vpop.f32.mrf.mxu0
        %v3082 = vadd.f32 0.0, %v3081
        %v3083 = vpop.f32.mrf.mxu0
        %v3084 = vpop.f32.mrf.mxu0
        %v3085 = vadd.f32 0.0, %v3084
        %v3086 = vpop.f32.mrf.mxu0
        %3087 = vmatprep.mubr.bf16.mxu0 0
        %3088 = vmatmul.mubr.bf16.gmra.mxu0 %v2780
        %v3089 = vpop.f32.mrf.mxu0
        %v3090 = vadd.f32 0.0, %v3089
        %v3091 = vpop.f32.mrf.mxu0
        %v3092 = vpop.f32.mrf.mxu0
        %v3093 = vadd.f32 0.0, %v3092
        %v3094 = vpop.f32.mrf.mxu0
        %3095 = vdwg.mxu0
        %v3096 = vrot.slane %v3074, 7
        %v3097 = vrot.slane %v3077, 7
        %v3098 = vrot.slane %v3082, 7
        %v3099 = vrot.slane %v3085, 7
        %v3100 = vrot.slane %v3090, 7
        %v3101 = vrot.slane %v3093, 7
        %v3102 = vsel %vm950, %v3100, %v3101
        %v3103 = vsel %vm950, %v3099, %v3100
        %v3104 = vsel %vm950, %v3098, %v3099
        %v3105 = vsel %vm950, %v3097, %v3098
        %v3106 = vsel %vm950, %v3096, %v3097
        %v3107 = vsel %vm950, %v3101, %v3096
        %v3108 = vadd.f32 %v2985, %v3107
        %v3109 = vadd.f32 %v2986, %v3106
        %v3110 = vadd.f32 %v2987, %v3105
        %v3111 = vadd.f32 %v2988, %v3104
        %v3112 = vadd.f32 %v2989, %v3103
        %v3113 = vadd.f32 %v2990, %v3102
        %v3130 = vunpack.c.l.b16 %v2816
        %v3131 = vunpack.c.l.b16 %v2817
        %v3132 = vunpack.c.l.b16 %v2818
        %v3133 = vunpack.c.l.b16 %v2819
        %v3134 = vunpack.c.l.b16 %v2820
        %v3135 = vunpack.c.l.b16 %v2821
        %v3136 = vunpack.c.l.b16 %v2822
        %v3137 = vunpack.c.l.b16 %v2823
        %v3138 = vunpack.c.l.b16 %v2824
        %v3139 = vunpack.c.l.b16 %v2825
        %v3140 = vunpack.c.l.b16 %v2826
        %v3141 = vunpack.c.l.b16 %v2827
        %v3142 = vunpack.c.l.b16 %v2828
        %v3143 = vunpack.c.l.b16 %v2829
        %v3144 = vunpack.c.l.b16 %v2830
        %v3145 = vunpack.c.l.b16 %v2831
        %v3146 = vpack.c.b16 %v3131, %v3130
        %v3147 = vpack.c.b16 %v3133, %v3132
        %v3148 = vpack.c.b16 %v3135, %v3134
        %v3149 = vpack.c.b16 %v3137, %v3136
        %v3150 = vpack.c.b16 %v3139, %v3138
        %v3151 = vpack.c.b16 %v3141, %v3140
        %v3152 = vpack.c.b16 %v3143, %v3142
        %v3153 = vpack.c.b16 %v3145, %v3144
        %3162 = vmatprep.subr.bf16.mxu0 0
        %3163 = vmatpush1.bf16.msra.mxu0 %v3153
        %3164 = vmatprep.subr.bf16.mxu0 0
        %3165 = vmatpush1.bf16.msra.mxu0 %v3152
        %3166 = vmatprep.subr.bf16.mxu0 0
        %3167 = vmatpush1.bf16.msra.mxu0 %v3151
        %3168 = vmatprep.subr.bf16.mxu0 0
        %3169 = vmatpush1.bf16.msra.mxu0 %v3150
        %3170 = vmatprep.subr.bf16.mxu0 0
        %3171 = vmatpush1.bf16.msra.mxu0 %v3149
        %3172 = vmatprep.subr.bf16.mxu0 0
        %3173 = vmatpush1.bf16.msra.mxu0 %v3148
        %3174 = vmatprep.subr.bf16.mxu0 0
        %3175 = vmatpush1.bf16.msra.mxu0 %v3147
        %3176 = vmatprep.subr.bf16.mxu0 0
        %3177 = vmatpush1.bf16.msra.mxu0 %v3146
        %3178 = vmatprep.subr.bf16.mxu0 0
        %3179 = vmatpush2.bf16.msra.mxu0 0
        %3180 = vmatprep.subr.bf16.mxu0 0
        %3181 = vmatpush2.bf16.msra.mxu0 0
        %3182 = vmatprep.subr.bf16.mxu0 0
        %3183 = vmatpush2.bf16.msra.mxu0 0
        %3184 = vmatprep.subr.bf16.mxu0 0
        %3185 = vmatpush2.bf16.msra.mxu0 0
        %3186 = vmatprep.subr.bf16.mxu0 0
        %3187 = vmatpush2.bf16.msra.mxu0 0
        %3188 = vmatprep.subr.bf16.mxu0 0
        %3189 = vmatpush2.bf16.msra.mxu0 0
        %3190 = vmatprep.subr.bf16.mxu0 0
        %3191 = vmatpush2.bf16.msra.mxu0 0
        %3192 = vmatprep.subr.bf16.mxu0 0
        %3193 = vmatpush2.bf16.msra.mxu0 0
        %3194 = vmatprep.mubr.bf16.mxu0 0
        %3195 = vmatmul.mubr.bf16.gmra.mxu0 %v2778
        %v3196 = vpop.f32.mrf.mxu0
        %v3197 = vadd.f32 0.0, %v3196
        %v3198 = vpop.f32.mrf.mxu0
        %v3199 = vpop.f32.mrf.mxu0
        %v3200 = vadd.f32 0.0, %v3199
        %v3201 = vpop.f32.mrf.mxu0
        %3202 = vmatprep.mubr.bf16.mxu0 0
        %3203 = vmatmul.mubr.bf16.gmra.mxu0 %v2779
        %v3204 = vpop.f32.mrf.mxu0
        %v3205 = vadd.f32 0.0, %v3204
        %v3206 = vpop.f32.mrf.mxu0
        %v3207 = vpop.f32.mrf.mxu0
        %v3208 = vadd.f32 0.0, %v3207
        %v3209 = vpop.f32.mrf.mxu0
        %3210 = vmatprep.mubr.bf16.mxu0 0
        %3211 = vmatmul.mubr.bf16.gmra.mxu0 %v2780
        %v3212 = vpop.f32.mrf.mxu0
        %v3213 = vadd.f32 0.0, %v3212
        %v3214 = vpop.f32.mrf.mxu0
        %v3215 = vpop.f32.mrf.mxu0
        %v3216 = vadd.f32 0.0, %v3215
        %v3217 = vpop.f32.mrf.mxu0
        %3218 = vdwg.mxu0
        %v3219 = vadd.f32 %v3108, %v3197
        %v3220 = vadd.f32 %v3109, %v3200
        %v3221 = vadd.f32 %v3110, %v3205
        %v3222 = vadd.f32 %v3111, %v3208
        %v3223 = vadd.f32 %v3112, %v3213
        %v3224 = vadd.f32 %v3113, %v3216
        %v3241 = vunpack.c.l.b16 %v2833
        %v3242 = vunpack.c.l.b16 %v2834
        %v3243 = vunpack.c.l.b16 %v2835
        %v3244 = vunpack.c.l.b16 %v2836
        %v3245 = vunpack.c.l.b16 %v2837
        %v3246 = vunpack.c.l.b16 %v2838
        %v3247 = vunpack.c.l.b16 %v2839
        %v3248 = vunpack.c.l.b16 %v2840
        %v3249 = vunpack.c.l.b16 %v2841
        %v3250 = vunpack.c.l.b16 %v2842
        %v3251 = vunpack.c.l.b16 %v2843
        %v3252 = vunpack.c.l.b16 %v2844
        %v3253 = vunpack.c.l.b16 %v2845
        %v3254 = vunpack.c.l.b16 %v2846
        %v3255 = vunpack.c.l.b16 %v2847
        %v3256 = vunpack.c.l.b16 %v2848
        %v3257 = vpack.c.b16 %v3242, %v3241
        %v3258 = vpack.c.b16 %v3244, %v3243
        %v3259 = vpack.c.b16 %v3246, %v3245
        %v3260 = vpack.c.b16 %v3248, %v3247
        %v3261 = vpack.c.b16 %v3250, %v3249
        %v3262 = vpack.c.b16 %v3252, %v3251
        %v3263 = vpack.c.b16 %v3254, %v3253
        %v3264 = vpack.c.b16 %v3256, %v3255
        %3273 = vmatprep.subr.bf16.mxu0 0
        %3274 = vmatpush1.bf16.msra.mxu0 %v3264
        %3275 = vmatprep.subr.bf16.mxu0 0
        %3276 = vmatpush1.bf16.msra.mxu0 %v3263
        %3277 = vmatprep.subr.bf16.mxu0 0
        %3278 = vmatpush1.bf16.msra.mxu0 %v3262
        %3279 = vmatprep.subr.bf16.mxu0 0
        %3280 = vmatpush1.bf16.msra.mxu0 %v3261
        %3281 = vmatprep.subr.bf16.mxu0 0
        %3282 = vmatpush1.bf16.msra.mxu0 %v3260
        %3283 = vmatprep.subr.bf16.mxu0 0
        %3284 = vmatpush1.bf16.msra.mxu0 %v3259
        %3285 = vmatprep.subr.bf16.mxu0 0
        %3286 = vmatpush1.bf16.msra.mxu0 %v3258
        %3287 = vmatprep.subr.bf16.mxu0 0
        %3288 = vmatpush1.bf16.msra.mxu0 %v3257
        %3289 = vmatprep.subr.bf16.mxu0 0
        %3290 = vmatpush2.bf16.msra.mxu0 0
        %3291 = vmatprep.subr.bf16.mxu0 0
        %3292 = vmatpush2.bf16.msra.mxu0 0
        %3293 = vmatprep.subr.bf16.mxu0 0
        %3294 = vmatpush2.bf16.msra.mxu0 0
        %3295 = vmatprep.subr.bf16.mxu0 0
        %3296 = vmatpush2.bf16.msra.mxu0 0
        %3297 = vmatprep.subr.bf16.mxu0 0
        %3298 = vmatpush2.bf16.msra.mxu0 0
        %3299 = vmatprep.subr.bf16.mxu0 0
        %3300 = vmatpush2.bf16.msra.mxu0 0
        %3301 = vmatprep.subr.bf16.mxu0 0
        %3302 = vmatpush2.bf16.msra.mxu0 0
        %3303 = vmatprep.subr.bf16.mxu0 0
        %3304 = vmatpush2.bf16.msra.mxu0 0
        %3305 = vmatprep.mubr.bf16.mxu0 0
        %3306 = vmatmul.mubr.bf16.gmra.mxu0 %v2778
        %v3307 = vpop.f32.mrf.mxu0
        %v3308 = vadd.f32 0.0, %v3307
        %v3309 = vpop.f32.mrf.mxu0
        %v3310 = vpop.f32.mrf.mxu0
        %v3311 = vadd.f32 0.0, %v3310
        %v3312 = vpop.f32.mrf.mxu0
        %3313 = vmatprep.mubr.bf16.mxu0 0
        %3314 = vmatmul.mubr.bf16.gmra.mxu0 %v2779
        %v3315 = vpop.f32.mrf.mxu0
        %v3316 = vadd.f32 0.0, %v3315
        %v3317 = vpop.f32.mrf.mxu0
        %v3318 = vpop.f32.mrf.mxu0
        %v3319 = vadd.f32 0.0, %v3318
        %v3320 = vpop.f32.mrf.mxu0
        %3321 = vmatprep.mubr.bf16.mxu0 0
        %3322 = vmatmul.mubr.bf16.gmra.mxu0 %v2780
        %v3323 = vpop.f32.mrf.mxu0
        %v3324 = vadd.f32 0.0, %v3323
        %v3325 = vpop.f32.mrf.mxu0
        %v3326 = vpop.f32.mrf.mxu0
        %v3327 = vadd.f32 0.0, %v3326
        %v3328 = vpop.f32.mrf.mxu0
        %3329 = vdwg.mxu0
        %v3330 = vrot.slane %v3308, 1
        %v3331 = vrot.slane %v3311, 1
        %v3332 = vrot.slane %v3316, 1
        %v3333 = vrot.slane %v3319, 1
        %v3334 = vrot.slane %v3324, 1
        %v3335 = vrot.slane %v3327, 1
        %v3336 = vsel %vm1185, %v3334, %v3335
        %v3337 = vsel %vm1185, %v3333, %v3334
        %v3338 = vsel %vm1185, %v3332, %v3333
        %v3339 = vsel %vm1185, %v3331, %v3332
        %v3340 = vsel %vm1185, %v3330, %v3331
        %v3341 = vsel %vm1185, %v3335, %v3330
        %v3342 = vadd.f32 %v3219, %v3340
        %v3343 = vadd.f32 %v3220, %v3339
        %v3344 = vadd.f32 %v3221, %v3338
        %v3345 = vadd.f32 %v3222, %v3337
        %v3346 = vadd.f32 %v3223, %v3336
        %v3347 = vadd.f32 %v3224, %v3341
        %v3364 = vunpack.c.l.b16 %v2850
        %v3365 = vunpack.c.l.b16 %v2851
        %v3366 = vunpack.c.l.b16 %v2852
        %v3367 = vunpack.c.l.b16 %v2853
        %v3368 = vunpack.c.l.b16 %v2854
        %v3369 = vunpack.c.l.b16 %v2855
        %v3370 = vunpack.c.l.b16 %v2856
        %v3371 = vunpack.c.l.b16 %v2857
        %v3372 = vunpack.c.l.b16 %v2858
        %v3373 = vunpack.c.l.b16 %v2859
        %v3374 = vunpack.c.l.b16 %v2860
        %v3375 = vunpack.c.l.b16 %v2861
        %v3376 = vunpack.c.l.b16 %v2862
        %v3377 = vunpack.c.l.b16 %v2863
        %v3378 = vunpack.c.l.b16 %v2864
        %v3379 = vunpack.c.l.b16 %v2865
        %v3380 = vpack.c.b16 %v3365, %v3364
        %v3381 = vpack.c.b16 %v3367, %v3366
        %v3382 = vpack.c.b16 %v3369, %v3368
        %v3383 = vpack.c.b16 %v3371, %v3370
        %v3384 = vpack.c.b16 %v3373, %v3372
        %v3385 = vpack.c.b16 %v3375, %v3374
        %v3386 = vpack.c.b16 %v3377, %v3376
        %v3387 = vpack.c.b16 %v3379, %v3378
        %3396 = vmatprep.subr.bf16.mxu0 0
        %3397 = vmatpush1.bf16.msra.mxu0 %v3387
        %3398 = vmatprep.subr.bf16.mxu0 0
        %3399 = vmatpush1.bf16.msra.mxu0 %v3386
        %3400 = vmatprep.subr.bf16.mxu0 0
        %3401 = vmatpush1.bf16.msra.mxu0 %v3385
        %3402 = vmatprep.subr.bf16.mxu0 0
        %3403 = vmatpush1.bf16.msra.mxu0 %v3384
        %3404 = vmatprep.subr.bf16.mxu0 0
        %3405 = vmatpush1.bf16.msra.mxu0 %v3383
        %3406 = vmatprep.subr.bf16.mxu0 0
        %3407 = vmatpush1.bf16.msra.mxu0 %v3382
        %3408 = vmatprep.subr.bf16.mxu0 0
        %3409 = vmatpush1.bf16.msra.mxu0 %v3381
        %3410 = vmatprep.subr.bf16.mxu0 0
        %3411 = vmatpush1.bf16.msra.mxu0 %v3380
        %3412 = vmatprep.subr.bf16.mxu0 0
        %3413 = vmatpush2.bf16.msra.mxu0 0
        %3414 = vmatprep.subr.bf16.mxu0 0
        %3415 = vmatpush2.bf16.msra.mxu0 0
        %3416 = vmatprep.subr.bf16.mxu0 0
        %3417 = vmatpush2.bf16.msra.mxu0 0
        %3418 = vmatprep.subr.bf16.mxu0 0
        %3419 = vmatpush2.bf16.msra.mxu0 0
        %3420 = vmatprep.subr.bf16.mxu0 0
        %3421 = vmatpush2.bf16.msra.mxu0 0
        %3422 = vmatprep.subr.bf16.mxu0 0
        %3423 = vmatpush2.bf16.msra.mxu0 0
        %3424 = vmatprep.subr.bf16.mxu0 0
        %3425 = vmatpush2.bf16.msra.mxu0 0
        %3426 = vmatprep.subr.bf16.mxu0 0
        %3427 = vmatpush2.bf16.msra.mxu0 0
        %3428 = vmatprep.mubr.bf16.mxu0 0
        %3429 = vmatmul.mubr.bf16.gmra.mxu0 %v2778
        %v3430 = vpop.f32.mrf.mxu0
        %v3431 = vadd.f32 0.0, %v3430
        %v3432 = vpop.f32.mrf.mxu0
        %v3433 = vpop.f32.mrf.mxu0
        %v3434 = vadd.f32 0.0, %v3433
        %v3435 = vpop.f32.mrf.mxu0
        %3436 = vmatprep.mubr.bf16.mxu0 0
        %3437 = vmatmul.mubr.bf16.gmra.mxu0 %v2779
        %v3438 = vpop.f32.mrf.mxu0
        %v3439 = vadd.f32 0.0, %v3438
        %v3440 = vpop.f32.mrf.mxu0
        %v3441 = vpop.f32.mrf.mxu0
        %v3442 = vadd.f32 0.0, %v3441
        %v3443 = vpop.f32.mrf.mxu0
        %3444 = vmatprep.mubr.bf16.mxu0 0
        %3445 = vmatmul.mubr.bf16.gmra.mxu0 %v2780
        %v3446 = vpop.f32.mrf.mxu0
        %v3447 = vadd.f32 0.0, %v3446
        %v3448 = vpop.f32.mrf.mxu0
        %v3449 = vpop.f32.mrf.mxu0
        %v3450 = vadd.f32 0.0, %v3449
        %v3451 = vpop.f32.mrf.mxu0
        %3452 = vdwg.mxu0
        %v3453 = vrot.slane %v3431, 2
        %v3454 = vrot.slane %v3434, 2
        %v3455 = vrot.slane %v3439, 2
        %v3456 = vrot.slane %v3442, 2
        %v3457 = vrot.slane %v3447, 2
        %v3458 = vrot.slane %v3450, 2
        %v3459 = vsel %vm1309, %v3457, %v3458
        %v3460 = vsel %vm1309, %v3456, %v3457
        %v3461 = vsel %vm1309, %v3455, %v3456
        %v3462 = vsel %vm1309, %v3454, %v3455
        %v3463 = vsel %vm1309, %v3453, %v3454
        %v3464 = vsel %vm1309, %v3458, %v3453
        %v3465 = vadd.f32 %v3342, %v3463
        %v3466 = vadd.f32 %v3343, %v3462
        %v3467 = vadd.f32 %v3344, %v3461
        %v3468 = vadd.f32 %v3345, %v3460
        %v3469 = vadd.f32 %v3346, %v3459
        %v3470 = vadd.f32 %v3347, %v3464
        %v3472 = vlaneseq
        %v3473 = vshrl.u32 %v3472, 7
        %v3474 = vsub.s32 0, %v3473
        %v3475 = vrot.slane %v2867, %v3474
        %v3477 = vadd.f32 %v3465, %v3475
        %v3478 = vadd.f32 %v3466, %v3475
        %v3479 = vadd.f32 %v3467, %v3475
        %v3480 = vadd.f32 %v3468, %v3475
        %v3481 = vadd.f32 %v3469, %v3475
        %v3482 = vadd.f32 %v3470, %v3475
        %v3483 = vtanh.pop %v3477
        %v3484 = vtanh.pop %v3478
        %v3485 = vtanh.pop %v3479
        %v3486 = vtanh.pop %v3480
        %v3487 = vtanh.pop %v3481
        %v3488 = vtanh.pop %v3482
        %v3489 = vsel %vm597, %v3483, 0.0
        %v3490 = vsel %vm598, %v3484, 0.0
        %v3491 = vsel %vm599, %v3485, 0.0
        %v3492 = vsel %vm600, %v3486, 0.0
        %v3493 = vsel %vm601, %v3487, 0.0
        %v3494 = vsel %vm602, %v3488, 0.0
        %v3495 = vpack.c.bf16 %v3490, %v3489
        %v3496 = vpack.c.bf16 %v3492, %v3491
        %v3497 = vpack.c.bf16 %v3494, %v3493
        %v3498 = vld [vmem:[#allocation6] sm:$0xf]
        %v3499 = vld [vmem:[#allocation6 + $0x4] sm:$0xf]
        %v3500 = vld [vmem:[#allocation6 + $0x8] sm:$0xf]
        %v3501 = vld [vmem:[#allocation6 + $0xc] sm:$0xf]
        %v3502 = vld [vmem:[#allocation6 + $0x10] sm:$0xf]
        %v3503 = vld [vmem:[#allocation6 + $0x14] sm:$0xf]
        %v3504 = vld [vmem:[#allocation6 + $0x18] sm:$0xf]
        %v3505 = vld [vmem:[#allocation6 + $0x1c] sm:$0xf]
        %v3506 = vld [vmem:[#allocation6 + $0x20] sm:$0xf]
        %v3507 = vld [vmem:[#allocation6 + $0x24] sm:$0xf]
        %v3508 = vld [vmem:[#allocation6 + $0x28] sm:$0xf]
        %v3509 = vld [vmem:[#allocation6 + $0x2c] sm:$0xf]
        %v3510 = vld [vmem:[#allocation6 + $0x30] sm:$0xf]
        %v3511 = vld [vmem:[#allocation6 + $0x34] sm:$0xf]
        %v3512 = vld [vmem:[#allocation6 + $0x38] sm:$0xf]
        %v3513 = vld [vmem:[#allocation6 + $0x3c] sm:$0xf]
        %s3514 = scalar_lea.vmem [#allocation6], 64
        %v3515 = vld [vmem:[%s3514] sm:$0xf]
        %v3516 = vld [vmem:[%s3514 + $0x4] sm:$0xf]
        %v3517 = vld [vmem:[%s3514 + $0x8] sm:$0xf]
        %v3518 = vld [vmem:[%s3514 + $0xc] sm:$0xf]
        %v3519 = vld [vmem:[%s3514 + $0x10] sm:$0xf]
        %v3520 = vld [vmem:[%s3514 + $0x14] sm:$0xf]
        %v3521 = vld [vmem:[%s3514 + $0x18] sm:$0xf]
        %v3522 = vld [vmem:[%s3514 + $0x1c] sm:$0xf]
        %v3523 = vld [vmem:[%s3514 + $0x20] sm:$0xf]
        %v3524 = vld [vmem:[%s3514 + $0x24] sm:$0xf]
        %v3525 = vld [vmem:[%s3514 + $0x28] sm:$0xf]
        %v3526 = vld [vmem:[%s3514 + $0x2c] sm:$0xf]
        %v3527 = vld [vmem:[%s3514 + $0x30] sm:$0xf]
        %v3528 = vld [vmem:[%s3514 + $0x34] sm:$0xf]
        %v3529 = vld [vmem:[%s3514 + $0x38] sm:$0xf]
        %v3530 = vld [vmem:[%s3514 + $0x3c] sm:$0xf]
        %s3531 = scalar_lea.vmem [#allocation6], 128
        %v3532 = vld [vmem:[%s3531] sm:$0xf]
        %v3533 = vld [vmem:[%s3531 + $0x4] sm:$0xf]
        %v3534 = vld [vmem:[%s3531 + $0x8] sm:$0xf]
        %v3535 = vld [vmem:[%s3531 + $0xc] sm:$0xf]
        %v3536 = vld [vmem:[%s3531 + $0x10] sm:$0xf]
        %v3537 = vld [vmem:[%s3531 + $0x14] sm:$0xf]
        %v3538 = vld [vmem:[%s3531 + $0x18] sm:$0xf]
        %v3539 = vld [vmem:[%s3531 + $0x1c] sm:$0xf]
        %v3540 = vld [vmem:[%s3531 + $0x20] sm:$0xf]
        %v3541 = vld [vmem:[%s3531 + $0x24] sm:$0xf]
        %v3542 = vld [vmem:[%s3531 + $0x28] sm:$0xf]
        %v3543 = vld [vmem:[%s3531 + $0x2c] sm:$0xf]
        %v3544 = vld [vmem:[%s3531 + $0x30] sm:$0xf]
        %v3545 = vld [vmem:[%s3531 + $0x34] sm:$0xf]
        %v3546 = vld [vmem:[%s3531 + $0x38] sm:$0xf]
        %v3547 = vld [vmem:[%s3531 + $0x3c] sm:$0xf]
        %s3548 = scalar_lea.vmem [#allocation6], 192
        %v3549 = vld [vmem:[%s3548] sm:$0xf]
        %v3550 = vld [vmem:[%s3548 + $0x4] sm:$0xf]
        %v3551 = vld [vmem:[%s3548 + $0x8] sm:$0xf]
        %v3552 = vld [vmem:[%s3548 + $0xc] sm:$0xf]
        %v3553 = vld [vmem:[%s3548 + $0x10] sm:$0xf]
        %v3554 = vld [vmem:[%s3548 + $0x14] sm:$0xf]
        %v3555 = vld [vmem:[%s3548 + $0x18] sm:$0xf]
        %v3556 = vld [vmem:[%s3548 + $0x1c] sm:$0xf]
        %v3557 = vld [vmem:[%s3548 + $0x20] sm:$0xf]
        %v3558 = vld [vmem:[%s3548 + $0x24] sm:$0xf]
        %v3559 = vld [vmem:[%s3548 + $0x28] sm:$0xf]
        %v3560 = vld [vmem:[%s3548 + $0x2c] sm:$0xf]
        %v3561 = vld [vmem:[%s3548 + $0x30] sm:$0xf]
        %v3562 = vld [vmem:[%s3548 + $0x34] sm:$0xf]
        %v3563 = vld [vmem:[%s3548 + $0x38] sm:$0xf]
        %v3564 = vld [vmem:[%s3548 + $0x3c] sm:$0xf]
        %s3565 = scalar_lea.vmem [#allocation6], 256
        %v3566 = vld [vmem:[%s3565] sm:$0xf]
        %v3567 = vld [vmem:[%s3565 + $0x4] sm:$0xf]
        %v3568 = vld [vmem:[%s3565 + $0x8] sm:$0xf]
        %v3569 = vld [vmem:[%s3565 + $0xc] sm:$0xf]
        %v3570 = vld [vmem:[%s3565 + $0x10] sm:$0xf]
        %v3571 = vld [vmem:[%s3565 + $0x14] sm:$0xf]
        %v3572 = vld [vmem:[%s3565 + $0x18] sm:$0xf]
        %v3573 = vld [vmem:[%s3565 + $0x1c] sm:$0xf]
        %v3574 = vld [vmem:[%s3565 + $0x20] sm:$0xf]
        %v3575 = vld [vmem:[%s3565 + $0x24] sm:$0xf]
        %v3576 = vld [vmem:[%s3565 + $0x28] sm:$0xf]
        %v3577 = vld [vmem:[%s3565 + $0x2c] sm:$0xf]
        %v3578 = vld [vmem:[%s3565 + $0x30] sm:$0xf]
        %v3579 = vld [vmem:[%s3565 + $0x34] sm:$0xf]
        %v3580 = vld [vmem:[%s3565 + $0x38] sm:$0xf]
        %v3581 = vld [vmem:[%s3565 + $0x3c] sm:$0xf]
        %v3582 = vld [vmem:[%s8] sm:$0x1]
        %v3599 = vunpack.c.l.b16 %v3498
        %v3600 = vunpack.c.l.b16 %v3499
        %v3601 = vunpack.c.l.b16 %v3500
        %v3602 = vunpack.c.l.b16 %v3501
        %v3603 = vunpack.c.l.b16 %v3502
        %v3604 = vunpack.c.l.b16 %v3503
        %v3605 = vunpack.c.l.b16 %v3504
        %v3606 = vunpack.c.l.b16 %v3505
        %v3607 = vunpack.c.l.b16 %v3506
        %v3608 = vunpack.c.l.b16 %v3507
        %v3609 = vunpack.c.l.b16 %v3508
        %v3610 = vunpack.c.l.b16 %v3509
        %v3611 = vunpack.c.l.b16 %v3510
        %v3612 = vunpack.c.l.b16 %v3511
        %v3613 = vunpack.c.l.b16 %v3512
        %v3614 = vunpack.c.l.b16 %v3513
        %v3615 = vpack.c.b16 %v3600, %v3599
        %v3616 = vpack.c.b16 %v3602, %v3601
        %v3617 = vpack.c.b16 %v3604, %v3603
        %v3618 = vpack.c.b16 %v3606, %v3605
        %v3619 = vpack.c.b16 %v3608, %v3607
        %v3620 = vpack.c.b16 %v3610, %v3609
        %v3621 = vpack.c.b16 %v3612, %v3611
        %v3622 = vpack.c.b16 %v3614, %v3613
        %3631 = vmatprep.subr.bf16.mxu0 0
        %3632 = vmatpush1.bf16.msra.mxu0 %v3622
        %3633 = vmatprep.subr.bf16.mxu0 0
        %3634 = vmatpush1.bf16.msra.mxu0 %v3621
        %3635 = vmatprep.subr.bf16.mxu0 0
        %3636 = vmatpush1.bf16.msra.mxu0 %v3620
        %3637 = vmatprep.subr.bf16.mxu0 0
        %3638 = vmatpush1.bf16.msra.mxu0 %v3619
        %3639 = vmatprep.subr.bf16.mxu0 0
        %3640 = vmatpush1.bf16.msra.mxu0 %v3618
        %3641 = vmatprep.subr.bf16.mxu0 0
        %3642 = vmatpush1.bf16.msra.mxu0 %v3617
        %3643 = vmatprep.subr.bf16.mxu0 0
        %3644 = vmatpush1.bf16.msra.mxu0 %v3616
        %3645 = vmatprep.subr.bf16.mxu0 0
        %3646 = vmatpush1.bf16.msra.mxu0 %v3615
        %3647 = vmatprep.subr.bf16.mxu0 0
        %3648 = vmatpush2.bf16.msra.mxu0 0
        %3649 = vmatprep.subr.bf16.mxu0 0
        %3650 = vmatpush2.bf16.msra.mxu0 0
        %3651 = vmatprep.subr.bf16.mxu0 0
        %3652 = vmatpush2.bf16.msra.mxu0 0
        %3653 = vmatprep.subr.bf16.mxu0 0
        %3654 = vmatpush2.bf16.msra.mxu0 0
        %3655 = vmatprep.subr.bf16.mxu0 0
        %3656 = vmatpush2.bf16.msra.mxu0 0
        %3657 = vmatprep.subr.bf16.mxu0 0
        %3658 = vmatpush2.bf16.msra.mxu0 0
        %3659 = vmatprep.subr.bf16.mxu0 0
        %3660 = vmatpush2.bf16.msra.mxu0 0
        %3661 = vmatprep.subr.bf16.mxu0 0
        %3662 = vmatpush2.bf16.msra.mxu0 0
        %3663 = vmatprep.mubr.bf16.mxu0 0
        %3664 = vmatmul.mubr.bf16.gmra.mxu0 %v3495
        %v3665 = vpop.f32.mrf.mxu0
        %v3666 = vpop.f32.mrf.mxu0
        %v3667 = vpop.f32.mrf.mxu0
        %v3668 = vadd.f32 0.0, %v3667
        %v3669 = vpop.f32.mrf.mxu0
        %3670 = vmatprep.mubr.bf16.mxu0 0
        %3671 = vmatmul.mubr.bf16.gmra.mxu0 %v3496
        %v3672 = vpop.f32.mrf.mxu0
        %v3673 = vadd.f32 0.0, %v3672
        %v3674 = vpop.f32.mrf.mxu0
        %v3675 = vpop.f32.mrf.mxu0
        %v3676 = vadd.f32 0.0, %v3675
        %v3677 = vpop.f32.mrf.mxu0
        %3678 = vmatprep.mubr.bf16.mxu0 0
        %3679 = vmatmul.mubr.bf16.gmra.mxu0 %v3497
        %v3680 = vpop.f32.mrf.mxu0
        %v3681 = vpop.f32.mrf.mxu0
        %v3682 = vpop.f32.mrf.mxu0
        %v3683 = vpop.f32.mrf.mxu0
        %3684 = vdwg.mxu0
        %v3685 = vrot.slane %v3668, 6
        %v3686 = vrot.slane %v3673, 6
        %v3687 = vrot.slane %v3676, 6
        %v3688 = vsel %vm826, %v3686, %v3687
        %v3689 = vsel %vm826, %v3685, %v3686
        %v3690 = vadd.f32 %v3689, 0.0
        %v3691 = vadd.f32 %v3688, 0.0
        %v3708 = vunpack.c.l.b16 %v3515
        %v3709 = vunpack.c.l.b16 %v3516
        %v3710 = vunpack.c.l.b16 %v3517
        %v3711 = vunpack.c.l.b16 %v3518
        %v3712 = vunpack.c.l.b16 %v3519
        %v3713 = vunpack.c.l.b16 %v3520
        %v3714 = vunpack.c.l.b16 %v3521
        %v3715 = vunpack.c.l.b16 %v3522
        %v3716 = vunpack.c.l.b16 %v3523
        %v3717 = vunpack.c.l.b16 %v3524
        %v3718 = vunpack.c.l.b16 %v3525
        %v3719 = vunpack.c.l.b16 %v3526
        %v3720 = vunpack.c.l.b16 %v3527
        %v3721 = vunpack.c.l.b16 %v3528
        %v3722 = vunpack.c.l.b16 %v3529
        %v3723 = vunpack.c.l.b16 %v3530
        %v3724 = vpack.c.b16 %v3709, %v3708
        %v3725 = vpack.c.b16 %v3711, %v3710
        %v3726 = vpack.c.b16 %v3713, %v3712
        %v3727 = vpack.c.b16 %v3715, %v3714
        %v3728 = vpack.c.b16 %v3717, %v3716
        %v3729 = vpack.c.b16 %v3719, %v3718
        %v3730 = vpack.c.b16 %v3721, %v3720
        %v3731 = vpack.c.b16 %v3723, %v3722
        %3740 = vmatprep.subr.bf16.mxu0 0
        %3741 = vmatpush1.bf16.msra.mxu0 %v3731
        %3742 = vmatprep.subr.bf16.mxu0 0
        %3743 = vmatpush1.bf16.msra.mxu0 %v3730
        %3744 = vmatprep.subr.bf16.mxu0 0
        %3745 = vmatpush1.bf16.msra.mxu0 %v3729
        %3746 = vmatprep.subr.bf16.mxu0 0
        %3747 = vmatpush1.bf16.msra.mxu0 %v3728
        %3748 = vmatprep.subr.bf16.mxu0 0
        %3749 = vmatpush1.bf16.msra.mxu0 %v3727
        %3750 = vmatprep.subr.bf16.mxu0 0
        %3751 = vmatpush1.bf16.msra.mxu0 %v3726
        %3752 = vmatprep.subr.bf16.mxu0 0
        %3753 = vmatpush1.bf16.msra.mxu0 %v3725
        %3754 = vmatprep.subr.bf16.mxu0 0
        %3755 = vmatpush1.bf16.msra.mxu0 %v3724
        %3756 = vmatprep.subr.bf16.mxu0 0
        %3757 = vmatpush2.bf16.msra.mxu0 0
        %3758 = vmatprep.subr.bf16.mxu0 0
        %3759 = vmatpush2.bf16.msra.mxu0 0
        %3760 = vmatprep.subr.bf16.mxu0 0
        %3761 = vmatpush2.bf16.msra.mxu0 0
        %3762 = vmatprep.subr.bf16.mxu0 0
        %3763 = vmatpush2.bf16.msra.mxu0 0
        %3764 = vmatprep.subr.bf16.mxu0 0
        %3765 = vmatpush2.bf16.msra.mxu0 0
        %3766 = vmatprep.subr.bf16.mxu0 0
        %3767 = vmatpush2.bf16.msra.mxu0 0
        %3768 = vmatprep.subr.bf16.mxu0 0
        %3769 = vmatpush2.bf16.msra.mxu0 0
        %3770 = vmatprep.subr.bf16.mxu0 0
        %3771 = vmatpush2.bf16.msra.mxu0 0
        %3772 = vmatprep.mubr.bf16.mxu0 0
        %3773 = vmatmul.mubr.bf16.gmra.mxu0 %v3495
        %v3774 = vpop.f32.mrf.mxu0
        %v3775 = vpop.f32.mrf.mxu0
        %v3776 = vpop.f32.mrf.mxu0
        %v3777 = vadd.f32 0.0, %v3776
        %v3778 = vpop.f32.mrf.mxu0
        %3779 = vmatprep.mubr.bf16.mxu0 0
        %3780 = vmatmul.mubr.bf16.gmra.mxu0 %v3496
        %v3781 = vpop.f32.mrf.mxu0
        %v3782 = vadd.f32 0.0, %v3781
        %v3783 = vpop.f32.mrf.mxu0
        %v3784 = vpop.f32.mrf.mxu0
        %v3785 = vadd.f32 0.0, %v3784
        %v3786 = vpop.f32.mrf.mxu0
        %3787 = vmatprep.mubr.bf16.mxu0 0
        %3788 = vmatmul.mubr.bf16.gmra.mxu0 %v3497
        %v3789 = vpop.f32.mrf.mxu0
        %v3790 = vpop.f32.mrf.mxu0
        %v3791 = vpop.f32.mrf.mxu0
        %v3792 = vpop.f32.mrf.mxu0
        %3793 = vdwg.mxu0
        %v3794 = vrot.slane %v3777, 7
        %v3795 = vrot.slane %v3782, 7
        %v3796 = vrot.slane %v3785, 7
        %v3797 = vsel %vm950, %v3795, %v3796
        %v3798 = vsel %vm950, %v3794, %v3795
        %v3799 = vadd.f32 %v3690, %v3798
        %v3800 = vadd.f32 %v3691, %v3797
        %v3817 = vunpack.c.l.b16 %v3532
        %v3818 = vunpack.c.l.b16 %v3533
        %v3819 = vunpack.c.l.b16 %v3534
        %v3820 = vunpack.c.l.b16 %v3535
        %v3821 = vunpack.c.l.b16 %v3536
        %v3822 = vunpack.c.l.b16 %v3537
        %v3823 = vunpack.c.l.b16 %v3538
        %v3824 = vunpack.c.l.b16 %v3539
        %v3825 = vunpack.c.l.b16 %v3540
        %v3826 = vunpack.c.l.b16 %v3541
        %v3827 = vunpack.c.l.b16 %v3542
        %v3828 = vunpack.c.l.b16 %v3543
        %v3829 = vunpack.c.l.b16 %v3544
        %v3830 = vunpack.c.l.b16 %v3545
        %v3831 = vunpack.c.l.b16 %v3546
        %v3832 = vunpack.c.l.b16 %v3547
        %v3833 = vpack.c.b16 %v3818, %v3817
        %v3834 = vpack.c.b16 %v3820, %v3819
        %v3835 = vpack.c.b16 %v3822, %v3821
        %v3836 = vpack.c.b16 %v3824, %v3823
        %v3837 = vpack.c.b16 %v3826, %v3825
        %v3838 = vpack.c.b16 %v3828, %v3827
        %v3839 = vpack.c.b16 %v3830, %v3829
        %v3840 = vpack.c.b16 %v3832, %v3831
        %3849 = vmatprep.subr.bf16.mxu0 0
        %3850 = vmatpush1.bf16.msra.mxu0 %v3840
        %3851 = vmatprep.subr.bf16.mxu0 0
        %3852 = vmatpush1.bf16.msra.mxu0 %v3839
        %3853 = vmatprep.subr.bf16.mxu0 0
        %3854 = vmatpush1.bf16.msra.mxu0 %v3838
        %3855 = vmatprep.subr.bf16.mxu0 0
        %3856 = vmatpush1.bf16.msra.mxu0 %v3837
        %3857 = vmatprep.subr.bf16.mxu0 0
        %3858 = vmatpush1.bf16.msra.mxu0 %v3836
        %3859 = vmatprep.subr.bf16.mxu0 0
        %3860 = vmatpush1.bf16.msra.mxu0 %v3835
        %3861 = vmatprep.subr.bf16.mxu0 0
        %3862 = vmatpush1.bf16.msra.mxu0 %v3834
        %3863 = vmatprep.subr.bf16.mxu0 0
        %3864 = vmatpush1.bf16.msra.mxu0 %v3833
        %3865 = vmatprep.subr.bf16.mxu0 0
        %3866 = vmatpush2.bf16.msra.mxu0 0
        %3867 = vmatprep.subr.bf16.mxu0 0
        %3868 = vmatpush2.bf16.msra.mxu0 0
        %3869 = vmatprep.subr.bf16.mxu0 0
        %3870 = vmatpush2.bf16.msra.mxu0 0
        %3871 = vmatprep.subr.bf16.mxu0 0
        %3872 = vmatpush2.bf16.msra.mxu0 0
        %3873 = vmatprep.subr.bf16.mxu0 0
        %3874 = vmatpush2.bf16.msra.mxu0 0
        %3875 = vmatprep.subr.bf16.mxu0 0
        %3876 = vmatpush2.bf16.msra.mxu0 0
        %3877 = vmatprep.subr.bf16.mxu0 0
        %3878 = vmatpush2.bf16.msra.mxu0 0
        %3879 = vmatprep.subr.bf16.mxu0 0
        %3880 = vmatpush2.bf16.msra.mxu0 0
        %3881 = vmatprep.mubr.bf16.mxu0 0
        %3882 = vmatmul.mubr.bf16.gmra.mxu0 %v3495
        %v3883 = vpop.f32.mrf.mxu0
        %v3884 = vpop.f32.mrf.mxu0
        %v3885 = vpop.f32.mrf.mxu0
        %v3886 = vpop.f32.mrf.mxu0
        %3887 = vmatprep.mubr.bf16.mxu0 0
        %3888 = vmatmul.mubr.bf16.gmra.mxu0 %v3496
        %v3889 = vpop.f32.mrf.mxu0
        %v3890 = vadd.f32 0.0, %v3889
        %v3891 = vpop.f32.mrf.mxu0
        %v3892 = vpop.f32.mrf.mxu0
        %v3893 = vadd.f32 0.0, %v3892
        %v3894 = vpop.f32.mrf.mxu0
        %3895 = vmatprep.mubr.bf16.mxu0 0
        %3896 = vmatmul.mubr.bf16.gmra.mxu0 %v3497
        %v3897 = vpop.f32.mrf.mxu0
        %v3898 = vpop.f32.mrf.mxu0
        %v3899 = vpop.f32.mrf.mxu0
        %v3900 = vpop.f32.mrf.mxu0
        %3901 = vdwg.mxu0
        %v3902 = vadd.f32 %v3799, %v3890
        %v3903 = vadd.f32 %v3800, %v3893
        %v3920 = vunpack.c.l.b16 %v3549
        %v3921 = vunpack.c.l.b16 %v3550
        %v3922 = vunpack.c.l.b16 %v3551
        %v3923 = vunpack.c.l.b16 %v3552
        %v3924 = vunpack.c.l.b16 %v3553
        %v3925 = vunpack.c.l.b16 %v3554
        %v3926 = vunpack.c.l.b16 %v3555
        %v3927 = vunpack.c.l.b16 %v3556
        %v3928 = vunpack.c.l.b16 %v3557
        %v3929 = vunpack.c.l.b16 %v3558
        %v3930 = vunpack.c.l.b16 %v3559
        %v3931 = vunpack.c.l.b16 %v3560
        %v3932 = vunpack.c.l.b16 %v3561
        %v3933 = vunpack.c.l.b16 %v3562
        %v3934 = vunpack.c.l.b16 %v3563
        %v3935 = vunpack.c.l.b16 %v3564
        %v3936 = vpack.c.b16 %v3921, %v3920
        %v3937 = vpack.c.b16 %v3923, %v3922
        %v3938 = vpack.c.b16 %v3925, %v3924
        %v3939 = vpack.c.b16 %v3927, %v3926
        %v3940 = vpack.c.b16 %v3929, %v3928
        %v3941 = vpack.c.b16 %v3931, %v3930
        %v3942 = vpack.c.b16 %v3933, %v3932
        %v3943 = vpack.c.b16 %v3935, %v3934
        %3952 = vmatprep.subr.bf16.mxu0 0
        %3953 = vmatpush1.bf16.msra.mxu0 %v3943
        %3954 = vmatprep.subr.bf16.mxu0 0
        %3955 = vmatpush1.bf16.msra.mxu0 %v3942
        %3956 = vmatprep.subr.bf16.mxu0 0
        %3957 = vmatpush1.bf16.msra.mxu0 %v3941
        %3958 = vmatprep.subr.bf16.mxu0 0
        %3959 = vmatpush1.bf16.msra.mxu0 %v3940
        %3960 = vmatprep.subr.bf16.mxu0 0
        %3961 = vmatpush1.bf16.msra.mxu0 %v3939
        %3962 = vmatprep.subr.bf16.mxu0 0
        %3963 = vmatpush1.bf16.msra.mxu0 %v3938
        %3964 = vmatprep.subr.bf16.mxu0 0
        %3965 = vmatpush1.bf16.msra.mxu0 %v3937
        %3966 = vmatprep.subr.bf16.mxu0 0
        %3967 = vmatpush1.bf16.msra.mxu0 %v3936
        %3968 = vmatprep.subr.bf16.mxu0 0
        %3969 = vmatpush2.bf16.msra.mxu0 0
        %3970 = vmatprep.subr.bf16.mxu0 0
        %3971 = vmatpush2.bf16.msra.mxu0 0
        %3972 = vmatprep.subr.bf16.mxu0 0
        %3973 = vmatpush2.bf16.msra.mxu0 0
        %3974 = vmatprep.subr.bf16.mxu0 0
        %3975 = vmatpush2.bf16.msra.mxu0 0
        %3976 = vmatprep.subr.bf16.mxu0 0
        %3977 = vmatpush2.bf16.msra.mxu0 0
        %3978 = vmatprep.subr.bf16.mxu0 0
        %3979 = vmatpush2.bf16.msra.mxu0 0
        %3980 = vmatprep.subr.bf16.mxu0 0
        %3981 = vmatpush2.bf16.msra.mxu0 0
        %3982 = vmatprep.subr.bf16.mxu0 0
        %3983 = vmatpush2.bf16.msra.mxu0 0
        %3984 = vmatprep.mubr.bf16.mxu0 0
        %3985 = vmatmul.mubr.bf16.gmra.mxu0 %v3495
        %v3986 = vpop.f32.mrf.mxu0
        %v3987 = vpop.f32.mrf.mxu0
        %v3988 = vpop.f32.mrf.mxu0
        %v3989 = vpop.f32.mrf.mxu0
        %3990 = vmatprep.mubr.bf16.mxu0 0
        %3991 = vmatmul.mubr.bf16.gmra.mxu0 %v3496
        %v3992 = vpop.f32.mrf.mxu0
        %v3993 = vadd.f32 0.0, %v3992
        %v3994 = vpop.f32.mrf.mxu0
        %v3995 = vpop.f32.mrf.mxu0
        %v3996 = vadd.f32 0.0, %v3995
        %v3997 = vpop.f32.mrf.mxu0
        %3998 = vmatprep.mubr.bf16.mxu0 0
        %3999 = vmatmul.mubr.bf16.gmra.mxu0 %v3497
        %v4000 = vpop.f32.mrf.mxu0
        %v4001 = vadd.f32 0.0, %v4000
        %v4002 = vpop.f32.mrf.mxu0
        %v4003 = vpop.f32.mrf.mxu0
        %v4004 = vpop.f32.mrf.mxu0
        %4005 = vdwg.mxu0
        %v4006 = vrot.slane %v3993, 1
        %v4007 = vrot.slane %v3996, 1
        %v4008 = vrot.slane %v4001, 1
        %v4009 = vsel %vm1185, %v4007, %v4008
        %v4010 = vsel %vm1185, %v4006, %v4007
        %v4011 = vadd.f32 %v3902, %v4010
        %v4012 = vadd.f32 %v3903, %v4009
        %v4029 = vunpack.c.l.b16 %v3566
        %v4030 = vunpack.c.l.b16 %v3567
        %v4031 = vunpack.c.l.b16 %v3568
        %v4032 = vunpack.c.l.b16 %v3569
        %v4033 = vunpack.c.l.b16 %v3570
        %v4034 = vunpack.c.l.b16 %v3571
        %v4035 = vunpack.c.l.b16 %v3572
        %v4036 = vunpack.c.l.b16 %v3573
        %v4037 = vunpack.c.l.b16 %v3574
        %v4038 = vunpack.c.l.b16 %v3575
        %v4039 = vunpack.c.l.b16 %v3576
        %v4040 = vunpack.c.l.b16 %v3577
        %v4041 = vunpack.c.l.b16 %v3578
        %v4042 = vunpack.c.l.b16 %v3579
        %v4043 = vunpack.c.l.b16 %v3580
        %v4044 = vunpack.c.l.b16 %v3581
        %v4045 = vpack.c.b16 %v4030, %v4029
        %v4046 = vpack.c.b16 %v4032, %v4031
        %v4047 = vpack.c.b16 %v4034, %v4033
        %v4048 = vpack.c.b16 %v4036, %v4035
        %v4049 = vpack.c.b16 %v4038, %v4037
        %v4050 = vpack.c.b16 %v4040, %v4039
        %v4051 = vpack.c.b16 %v4042, %v4041
        %v4052 = vpack.c.b16 %v4044, %v4043
        %4061 = vmatprep.subr.bf16.mxu0 0
        %4062 = vmatpush1.bf16.msra.mxu0 %v4052
        %4063 = vmatprep.subr.bf16.mxu0 0
        %4064 = vmatpush1.bf16.msra.mxu0 %v4051
        %4065 = vmatprep.subr.bf16.mxu0 0
        %4066 = vmatpush1.bf16.msra.mxu0 %v4050
        %4067 = vmatprep.subr.bf16.mxu0 0
        %4068 = vmatpush1.bf16.msra.mxu0 %v4049
        %4069 = vmatprep.subr.bf16.mxu0 0
        %4070 = vmatpush1.bf16.msra.mxu0 %v4048
        %4071 = vmatprep.subr.bf16.mxu0 0
        %4072 = vmatpush1.bf16.msra.mxu0 %v4047
        %4073 = vmatprep.subr.bf16.mxu0 0
        %4074 = vmatpush1.bf16.msra.mxu0 %v4046
        %4075 = vmatprep.subr.bf16.mxu0 0
        %4076 = vmatpush1.bf16.msra.mxu0 %v4045
        %4077 = vmatprep.subr.bf16.mxu0 0
        %4078 = vmatpush2.bf16.msra.mxu0 0
        %4079 = vmatprep.subr.bf16.mxu0 0
        %4080 = vmatpush2.bf16.msra.mxu0 0
        %4081 = vmatprep.subr.bf16.mxu0 0
        %4082 = vmatpush2.bf16.msra.mxu0 0
        %4083 = vmatprep.subr.bf16.mxu0 0
        %4084 = vmatpush2.bf16.msra.mxu0 0
        %4085 = vmatprep.subr.bf16.mxu0 0
        %4086 = vmatpush2.bf16.msra.mxu0 0
        %4087 = vmatprep.subr.bf16.mxu0 0
        %4088 = vmatpush2.bf16.msra.mxu0 0
        %4089 = vmatprep.subr.bf16.mxu0 0
        %4090 = vmatpush2.bf16.msra.mxu0 0
        %4091 = vmatprep.subr.bf16.mxu0 0
        %4092 = vmatpush2.bf16.msra.mxu0 0
        %4093 = vmatprep.mubr.bf16.mxu0 0
        %4094 = vmatmul.mubr.bf16.gmra.mxu0 %v3495
        %v4095 = vpop.f32.mrf.mxu0
        %v4096 = vpop.f32.mrf.mxu0
        %v4097 = vpop.f32.mrf.mxu0
        %v4098 = vpop.f32.mrf.mxu0
        %4099 = vmatprep.mubr.bf16.mxu0 0
        %4100 = vmatmul.mubr.bf16.gmra.mxu0 %v3496
        %v4101 = vpop.f32.mrf.mxu0
        %v4102 = vadd.f32 0.0, %v4101
        %v4103 = vpop.f32.mrf.mxu0
        %v4104 = vpop.f32.mrf.mxu0
        %v4105 = vadd.f32 0.0, %v4104
        %v4106 = vpop.f32.mrf.mxu0
        %4107 = vmatprep.mubr.bf16.mxu0 0
        %4108 = vmatmul.mubr.bf16.gmra.mxu0 %v3497
        %v4109 = vpop.f32.mrf.mxu0
        %v4110 = vadd.f32 0.0, %v4109
        %v4111 = vpop.f32.mrf.mxu0
        %v4112 = vpop.f32.mrf.mxu0
        %v4113 = vpop.f32.mrf.mxu0
        %4114 = vdwg.mxu0
        %v4115 = vrot.slane %v4102, 2
        %v4116 = vrot.slane %v4105, 2
        %v4117 = vrot.slane %v4110, 2
        %v4118 = vsel %vm1309, %v4116, %v4117
        %v4119 = vsel %vm1309, %v4115, %v4116
        %v4120 = vadd.f32 %v4011, %v4119
        %v4121 = vadd.f32 %v4012, %v4118
        %v4123 = vlaneseq
        %v4124 = vshrl.u32 %v4123, 7
        %v4125 = vsub.s32 0, %v4124
        %v4126 = vrot.slane %v3582, %v4125
        %v4128 = vadd.f32 %v4120, %v4126
        %v4129 = vadd.f32 %v4121, %v4126
        %4130 = vst [vmem:[%s528] sm:$0xff] %v4128
        %4131 = vst [vmem:[%s528 + $0x8] sm:$0xff] %v4129
        %s4132 = smul.u32 2, %s27
        %p4133 = scmp.lt.s32.totalorder %s26, 1
        %s4134 = scalar_select %p4133, %s26, 1
        %p4135 = scmp.lt.s32.totalorder %s4132, 3
        %s4136 = scalar_select %p4135, %s4132, 3
        %s4137 = smul.addr %s4134, 4
        %s4138 = sadd.s32 %s4136, %s4137
        %s4139 = smul.addr %s4138, 8
        %s4140 = scalar_lea.vmem %s9, %s4139
        // Predicated region
        $region69: #{postnet_forward.1} parent=55 // pred_check
          %p4141 = pneg %p276
        $region70: #{postnet_forward.1} parent=55 // pred_check_branch
          %4143 = sbr.rel (%p4141) target = $region72
        $region71: #{postnet_forward.1} parent=55 // pred_region
          %s4144 = smul.u32 2, %s27
        $region72: #{postnet_forward.1} parent=55 // pred_fallthru
          _
      $region56: #{postnet_forward.1} parent=5 // pred_fallthru
        _
      %p4145 = scmp.le.s32.totalorder 2, %s17
      // Predicated region
      $region73: #{postnet_forward.1} parent=5 // pred_check
        %p4146 = pneg %p4145
      $region74: #{postnet_forward.1} parent=5 // pred_check_branch
        %4148 = sbr.rel (%p4146) target = $region76
      $region75: #{postnet_forward.1} parent=5 // pred_region
        %s4149 = ssub.s32 %s17, 2
        // Predicated region
        $region77: #{postnet_forward.1} parent=75 // pred_check
          %p4150 = pneg %p282
        $region78: #{postnet_forward.1} parent=75 // pred_check_branch
          %4152 = sbr.rel (%p4150) target = $region80
        $region79: #{postnet_forward.1} parent=75 // pred_region
          %s4153 = smul.u32 2, %s29
          %p4154 = scmp.lt.s32.totalorder %s28, 1
          %s4155 = scalar_select %p4154, %s28, 1
          %p4156 = scmp.lt.s32.totalorder %s4153, 3
          %s4157 = scalar_select %p4156, %s4153, 3
          %s4158 = smul.addr %s4155, 4
          %s4159 = sadd.s32 %s4157, %s4158
          %s4160 = smul.addr %s4159, 8
          %s4161 = scalar_lea.vmem %s9, %s4160
        $region80: #{postnet_forward.1} parent=75 // pred_fallthru
          _
      $region76: #{postnet_forward.1} parent=5 // pred_fallthru
        _
    $region6: #{postnet_forward.1} parent=1 // loop_footer
      %s21 = sadd.s32 1, %s17
    $region7: #{postnet_forward.1} parent=1 // loop_footer_branch
      %16 = sbr.rel target = $region3
    $region8: #{postnet_forward.1} parent=1 // loop_exit
      _
    %4162 = vsyncpa [#allocation3], 1
    %s4163 = scalar_lea.sflag [#allocation3], 1
    %4164 = vsyncpa %s4163, 1
    %4165 = vsyncpa [#allocation5], 1

</llo_original>
